<compile_context>
chip_gen: v7x
topology: tpu7x:2x2x1
jax: 0.10.0
libtpu: 0.0.40
codegen_flags: <defaults>
</compile_context>

<pallas_src>
import numpy as np
import jax
import jax.numpy as jnp
from jax.experimental import pallas as pl
from jax.experimental.pallas import tpu as pltpu

# ---------------- configuration (small synthetic SMPL-X) ----------------
NUM_VERTS     = 512          # real SMPL-X has 10475; kept small & 128-aligned
NUM_JOINTS    = 55           # global + 21 body + jaw + 2 eyes + 30 hand joints
BETAS_DIM     = 16
EXPR_DIM      = 8
NUM_PCA       = 6            # hand-pose PCA components per hand
NUM_FACES     = 64
NUM_LMK       = 8            # static face landmarks (real model: 51)
NUM_DYN_LMK   = 4            # dynamic contour landmarks per bin (real: 17)
POSE_BODY_DIM = 3 + 21 * 3 + 3 + 3 + 3          # 75
POSE_DIM      = POSE_BODY_DIM + 2 * NUM_PCA     # PCA-compressed pose input
P_DIM         = 9 * (NUM_JOINTS - 1)            # 486 pose-blend features
JOINTS_PAD    = 64                              # Jn=55 padded for MXU K-dim
TILE_CAP      = 2048                            # max lane tile (VMEM-safe on v5e)

SMPLX_PARENTS = np.array(
    [-1, 0, 0, 0, 1, 2, 3, 4, 5, 6, 7, 8, 9, 9, 9, 12, 13, 14, 16, 17, 18,
     19, 15, 15, 15, 20, 25, 26, 20, 28, 29, 20, 31, 32, 20, 34, 35, 20, 37,
     38, 21, 40, 41, 21, 43, 44, 21, 46, 47, 21, 49, 50, 21, 52, 53],
    dtype=np.int32)

VERTEX_IDS = {'nose': 9120, 'reye': 9929, 'leye': 9448, 'rear': 616, 'lear': 6,
              'rthumb': 8079, 'rindex': 7669, 'rmiddle': 7794, 'rring': 7905,
              'rpinky': 8022, 'lthumb': 5361, 'lindex': 4933, 'lmiddle': 5058,
              'lring': 5169, 'lpinky': 5286, 'LBigToe': 5770, 'LSmallToe': 5780,
              'LHeel': 8846, 'RBigToe': 8463, 'RSmallToe': 8474, 'RHeel': 8635}


def _round_up(x, m):
    return ((x + m - 1) // m) * m


def _cdiv(a, b):
    return -(-a // b)


def _pick_tile(V, cap=TILE_CAP):
    """Smallest even split count k with a lane-aligned tile <= cap.
    Keeps the grid >=2 steps (and usually even) so v7x's two TensorCores both
    get work while staying inside v5e's 16 MiB scoped-VMEM default."""
    k = 2
    while True:
        tile = _round_up(_cdiv(V, k), 128)
        if tile <= cap:
            return tile
        k += 2


# =========================== Pallas kernel ================================
# Fused blendshapes + linear blend skinning, one vertex tile per grid step.

def _make_fused_kernel(batch, with_delta):
    def kernel(*refs):
        if with_delta:
            (coef_ref, dx_ref, dy_ref, dz_ref, vt_ref, wT_ref, AT_ref,
             delta_ref, o_ref) = refs
        else:
            (coef_ref, dx_ref, dy_ref, dz_ref, vt_ref, wT_ref, AT_ref,
             o_ref) = refs
            delta_ref = None

        c = coef_ref[...]                                   # (B, Kp) bf16
        vt = vt_ref[...]                                    # (3, tile) f32
        # Per-coordinate blendshape dots (bf16 in, f32 accumulate).
        vx = jnp.dot(c, dx_ref[...], preferred_element_type=jnp.float32) + vt[0:1, :]
        vy = jnp.dot(c, dy_ref[...], preferred_element_type=jnp.float32) + vt[1:2, :]
        vz = jnp.dot(c, dz_ref[...], preferred_element_type=jnp.float32) + vt[2:3, :]

        # Per-vertex 3x4 transforms for all batches in one MXU push.
        # AT rows are [b, col j, row i]  ->  T_all[b*12 + j*3 + i, v].
        T_all = jnp.dot(AT_ref[...], wT_ref[...],
                        preferred_element_type=jnp.float32)  # (B*12, tile)

        for b in range(batch):                               # static & tiny
            Tb = T_all[b * 12:(b + 1) * 12]                  # (12, tile)
            vxb, vyb, vzb = vx[b:b + 1], vy[b:b + 1], vz[b:b + 1]
            if with_delta:
                d = delta_ref[b]                             # (3, tile)
                vxb = vxb + d[0:1, :]
                vyb = vyb + d[1:2, :]
                vzb = vzb + d[2:3, :]
            # Tb[0:3]=T[:3,0], Tb[3:6]=T[:3,1], Tb[6:9]=T[:3,2], Tb[9:12]=T[:3,3]
            o_ref[b] = Tb[0:3] * vxb + Tb[3:6] * vyb + Tb[6:9] * vzb + Tb[9:12]
    return kernel


def pallas_fused_blend_skin(coefs, dirs_x, dirs_y, dirs_z, vt_c, wT_pad, A,
                            tile_v, Vp, delta_c=None):
    """verts_c = LBS( coefs @ dirs + v_template (+delta), weights, A ).

    coefs:(B,Kp) bf16, dirs_*:(Kp,Vp) bf16, vt_c:(3,Vp) f32, wT_pad:(Jp,Vp) f32,
    A:(B,Jn,4,4) f32  ->  (B,3,Vp) f32 (zero in padded vertex columns).
    """
    B, Kp = coefs.shape
    Jp = wT_pad.shape[0]
    Jn = A.shape[1]

    # Column-grouped 3x4 transform rows: AT[b, j*3+i, joint] = A[b, joint, i, j]
    A3 = jnp.transpose(A[:, :, :3, :], (0, 3, 2, 1)).reshape(B, 12, Jn)
    AT = jnp.pad(A3, ((0, 0), (0, 0), (0, Jp - Jn))).reshape(B * 12, Jp)

    grid = (Vp // tile_v,)
    in_specs = [
        pl.BlockSpec((B, Kp), lambda i: (0, 0)),
        pl.BlockSpec((Kp, tile_v), lambda i: (0, i)),
        pl.BlockSpec((Kp, tile_v), lambda i: (0, i)),
        pl.BlockSpec((Kp, tile_v), lambda i: (0, i)),
        pl.BlockSpec((3, tile_v), lambda i: (0, i)),
        pl.BlockSpec((Jp, tile_v), lambda i: (0, i)),
        pl.BlockSpec((B * 12, Jp), lambda i: (0, 0)),
    ]
    args = [coefs, dirs_x, dirs_y, dirs_z, vt_c, wT_pad, AT]
    with_delta = delta_c is not None
    if with_delta:
        if delta_c.shape[-1] != Vp:
            delta_c = jnp.pad(delta_c,
                              ((0, 0), (0, 0), (0, Vp - delta_c.shape[-1])))
        in_specs.append(pl.BlockSpec((B, 3, tile_v), lambda i: (0, 0, i)))
        args.append(delta_c)

    bytes_accessed = int(3 * Kp * Vp * 2 + Jp * Vp * 4 + 3 * Vp * 4
                         + B * 3 * Vp * 4 + B * Kp * 2 + B * 12 * Jp * 4
                         + (B * 3 * Vp * 4 if with_delta else 0))
    flops = int(2 * B * Kp * 3 * Vp + 2 * (B * 12) * Jp * Vp + 12 * B * 3 * Vp)

    return pl.pallas_call(
        _make_fused_kernel(B, with_delta),
        out_shape=jax.ShapeDtypeStruct((B, 3, Vp), jnp.float32),
        grid=grid,
        in_specs=in_specs,
        out_specs=pl.BlockSpec((B, 3, tile_v), lambda i: (0, 0, i)),
        compiler_params=pltpu.CompilerParams(
            dimension_semantics=("parallel",),
            vmem_limit_bytes=48 * 1024 * 1024),
        cost_estimate=pl.CostEstimate(flops=flops, transcendentals=0,
                                      bytes_accessed=bytes_accessed),
    )(*args)


# ============================ JAX glue (small ops) =========================

def _quat2mat(quat):
    nq = quat / jnp.linalg.norm(quat, axis=1, keepdims=True)
    w, x, y, z = nq[:, 0], nq[:, 1], nq[:, 2], nq[:, 3]
    B = quat.shape[0]
    w2, x2, y2, z2 = w * w, x * x, y * y, z * z
    wx, wy, wz = w * x, w * y, w * z
    xy, xz, yz = x * y, x * z, y * z
    rot = jnp.stack([w2 + x2 - y2 - z2, 2 * xy - 2 * wz, 2 * wy + 2 * xz,
                     2 * wz + 2 * xy, w2 - x2 + y2 - z2, 2 * yz - 2 * wx,
                     2 * xz - 2 * wy, 2 * wx + 2 * yz, w2 - x2 - y2 + z2],
                    axis=1).reshape(B, 3, 3)
    return rot


def _batch_rodrigues(theta):
    l1norm = jnp.linalg.norm(theta + 1e-8, axis=1)
    angle = l1norm[:, None]
    normalized = theta / angle
    angle = angle * 0.5
    quat = jnp.concatenate([jnp.cos(angle), jnp.sin(angle) * normalized], axis=1)
    return _quat2mat(quat)


def _build_levels(parents):
    parents = np.asarray(parents)
    nj = parents.shape[0]
    depth = np.zeros(nj, dtype=np.int64)
    for i in range(1, nj):
        depth[i] = depth[parents[i]] + 1
    return [np.nonzero(depth == d)[0].astype(np.int32)
            for d in range(1, int(depth.max()) + 1)]


def _batch_rigid_levels(Rs, Js, parents):
    """Level-batched global rigid transformation (same math as the sequential
    per-joint chain, but one batched (B, n_level, 4, 4) matmul per tree depth)."""
    N, nj = Rs.shape[0], Rs.shape[1]
    parents_np = np.asarray(parents)
    dtype = Rs.dtype

    # Vectorized local bone transforms.
    t_local = jnp.concatenate(
        [Js[:, :1], Js[:, 1:] - Js[:, parents_np[1:]]], axis=1)[..., None]
    top = jnp.concatenate([Rs, t_local], axis=-1)                 # (N, nj, 3, 4)
    bottom = jnp.broadcast_to(jnp.array([0., 0., 0., 1.], dtype=dtype),
                              (N, nj, 1, 4))
    A_local = jnp.concatenate([top, bottom], axis=2)              # (N, nj, 4, 4)

    resolved = A_local[:, :1]                                     # root
    order = [0]
    pos = {0: 0}
    for lvl in _build_levels(parents_np):
        par_pos = np.array([pos[int(parents_np[j])] for j in lvl], dtype=np.int32)
        parent_T = resolved[:, par_pos]                           # (N, L, 4, 4)
        child_T = jnp.matmul(parent_T, A_local[:, lvl])           # (N, L, 4, 4)
        resolved = jnp.concatenate([resolved, child_T], axis=1)
        for j in lvl:
            pos[int(j)] = len(order)
            order.append(int(j))
    inv = np.empty(nj, dtype=np.int32)
    for p, j in enumerate(order):
        inv[j] = p
    results = resolved[:, inv]                                    # (N, nj, 4, 4)

    new_J = results[:, :, :3, 3]
    t0 = jnp.matmul(results[:, :, :, :3], Js[..., None])          # (N, nj, 4, 1)
    init_bone = jnp.concatenate([jnp.zeros((N, nj, 4, 3), dtype), t0], axis=3)
    return new_J, results - init_bone


def _batch_rigid_ref(Rs, Js, parents):
    """Sequential per-joint chain exactly mirroring the PyTorch reference."""
    N, nj = Rs.shape[0], Rs.shape[1]
    Js_u = Js[..., None]

    def make_A(Rm, t):
        R_homo = jnp.concatenate([Rm, jnp.zeros((N, 1, 3), Rm.dtype)], axis=1)
        t_homo = jnp.concatenate([t, jnp.ones((N, 1, 1), t.dtype)], axis=1)
        return jnp.concatenate([R_homo, t_homo], axis=2)

    results = [make_A(Rs[:, 0], Js_u[:, 0])]
    for i in range(1, nj):
        p = int(parents[i])
        A_here = make_A(Rs[:, i], Js_u[:, i] - Js_u[:, p])
        results.append(jnp.matmul(results[p], A_here))
    results = jnp.stack(results, axis=1)
    new_J = results[:, :, :3, 3]
    Js_w0 = jnp.concatenate([Js_u, jnp.zeros((N, nj, 1, 1), Js.dtype)], axis=2)
    init_bone = jnp.matmul(results, Js_w0)
    init_bone = jnp.concatenate([jnp.zeros((N, nj, 4, 3), Js.dtype), init_bone],
                                axis=3)
    return new_J, results - init_bone


def _find_dynamic_lmk(R, dyn_faces_idx, dyn_b_coords, neck_kin_chain):
    rot_mats = R[:, neck_kin_chain]
    b = R.shape[0]
    rel = jnp.broadcast_to(jnp.eye(3, dtype=R.dtype), (b, 3, 3))
    for idx in range(len(neck_kin_chain)):
        rel = jnp.matmul(rot_mats[:, idx], rel)
    sy = jnp.sqrt(rel[:, 0, 0] ** 2 + rel[:, 1, 0] ** 2)
    euler = jnp.arctan2(-rel[:, 2, 0], sy)
    y_rot = jnp.round(jnp.minimum(-euler * 180.0 / np.pi, 39.0)).astype(jnp.int32)
    neg_mask = (y_rot < 0).astype(jnp.int32)
    mask = (y_rot < -39).astype(jnp.int32)
    neg_vals = mask * 78 + (1 - mask) * (39 - y_rot)
    y_rot = neg_mask * neg_vals + (1 - neg_mask) * y_rot
    return dyn_faces_idx[y_rot], dyn_b_coords[y_rot]


def _find_joint_kin_chain(joint_id, parents):
    chain, cur = [], joint_id
    while cur != -1:
        chain.append(cur)
        cur = int(parents[cur])
    return np.array(chain, dtype=np.int32)


# ===================== precomputed derived buffers ==========================

def add_derived_params(params):
    """Precompute per-coordinate blend-dirs (bf16), regressed joint dirs,
    padded skinning weights and the vertex tile size once."""
    V = params['v_template'].shape[0]
    Jn = params['J_regressor'].shape[0]
    shapedirs_full = jnp.concatenate([params['shapedirs'], params['exprdirs']],
                                     axis=-1)                    # (V, 3, L)
    L = shapedirs_full.shape[-1]
    K = L + P_DIM
    Kp = _round_up(K, 8)

    tile_v = _pick_tile(V)
    Vp = _round_up(V, tile_v)

    # fused blendshape dirs, one (Kp, Vp) matrix per coordinate
    sd = jnp.transpose(shapedirs_full, (2, 1, 0))                # (L, 3, V)
    pd = jnp.transpose(params['posedirs'].reshape(P_DIM, V, 3), (0, 2, 1))
    dirs = jnp.concatenate([sd, pd], axis=0)                     # (K, 3, V)
    dirs = jnp.pad(dirs, ((0, Kp - K), (0, 0), (0, Vp - V))).astype(jnp.bfloat16)
    dirs_x, dirs_y, dirs_z = dirs[:, 0], dirs[:, 1], dirs[:, 2]

    vt_c = jnp.pad(params['v_template'].T, ((0, 0), (0, Vp - V)))  # (3, Vp) f32

    # joints = J_template + shape @ J_dirs   (replaces a lane-sparse kernel)
    J_template = params['J_regressor'] @ params['v_template']     # (Jn, 3)
    J_dirs_flat = jnp.einsum('jv,vkl->ljk', params['J_regressor'],
                             shapedirs_full).reshape(L, Jn * 3)

    # skinning weights, transposed + joint axis zero-padded to 64 (f32 keeps the
    # 5e-3 tolerance comfortable; this stream is <10% of the dirs traffic)
    wT_pad = jnp.pad(params['weights'].T,
                     ((0, JOINTS_PAD - Jn), (0, Vp - V)))

    return {**params,
            'dirs_x': dirs_x, 'dirs_y': dirs_y, 'dirs_z': dirs_z,
            'vt_c': vt_c, 'J_template': J_template, 'J_dirs_flat': J_dirs_flat,
            'weights_T_pad': wT_pad, 'tile_v': int(tile_v), 'Vp': int(Vp),
            'Kp': int(Kp)}


# ============================== forward pass ===============================

def smplx_forward(params, pose, shape, trans=None, scale=1.0, delta=None,
                  use_pallas=True):
    b = pose.shape[0]
    V = params['v_template'].shape[0]
    HI = jax.lax.Precision.HIGHEST

    # ---- pose: PCA hands -> full axis-angle -> rotation matrices ------------
    npca = NUM_PCA
    part_pose = pose[:, :-2 * npca]
    lh = pose[:, -2 * npca:-npca] @ params['left_hand_components']
    rh = pose[:, -npca:] @ params['right_hand_components']
    full_pose = jnp.concatenate([part_pose, lh, rh], axis=1) + params['pose_mean']
    R = _batch_rodrigues(full_pose.reshape(-1, 3)).reshape(b, NUM_JOINTS, 3, 3)
    lrotmin = (R[:, 1:] - jnp.eye(3, dtype=R.dtype)).reshape(b, -1)    # (B, 486)

    if use_pallas:
        # joints from precomputed regressed blend dirs (tiny, lane-sparse -> JAX)
        J = (params['J_template'][None]
             + (shape @ params['J_dirs_flat']).reshape(b, NUM_JOINTS, 3))
        # kinematic tree, level-batched (A depends only on R and J)
        J_transformed, A = _batch_rigid_levels(R, J, params['parents'])
        # fused shape+pose blendshapes + template + LBS skinning in ONE kernel
        coefs = jnp.concatenate([shape, lrotmin], axis=1)              # (B, 510)
        coefs = jnp.pad(coefs, ((0, 0), (0, params['Kp'] - coefs.shape[1])))
        coefs = coefs.astype(jnp.bfloat16)
        delta_c = None if delta is None else jnp.transpose(delta, (0, 2, 1))
        verts_c = pallas_fused_blend_skin(
            coefs, params['dirs_x'], params['dirs_y'], params['dirs_z'],
            params['vt_c'], params['weights_T_pad'], A,
            params['tile_v'], params['Vp'], delta_c=delta_c)
        verts = jnp.transpose(verts_c[:, :, :V], (0, 2, 1))            # (B, V, 3)
    else:
        shapedirs = jnp.concatenate([params['shapedirs'], params['exprdirs']],
                                    axis=-1)
        v_shaped = jnp.einsum('bl,mkl->bmk', shape, shapedirs,
                              precision=HI) + params['v_template']
        J = jnp.einsum('bik,ji->bjk', v_shaped, params['J_regressor'],
                       precision=HI)
        v_posed = jnp.matmul(lrotmin, params['posedirs'],
                             precision=HI).reshape(b, V, 3) + v_shaped
        if delta is not None:
            v_posed = v_posed + delta
        J_transformed, A = _batch_rigid_ref(R, J, params['parents'])
        T = jnp.einsum('vj,bjf->bvf', params['weights'],
                       A.reshape(b, NUM_JOINTS, 16),
                       precision=HI).reshape(b, V, 4, 4)
        v_posed_homo = jnp.concatenate(
            [v_posed, jnp.ones((b, V, 1), v_posed.dtype)], axis=2)
        verts = jnp.einsum('bvij,bvj->bvi', T, v_posed_homo, precision=HI)[:, :, :3]

    if trans is not None:
        if trans.ndim == 2:
            trans = trans[:, None, :]
        verts = verts + trans
        J_transformed = J_transformed + trans

    # ---- extra joints + (dynamic) facial landmarks (gather-heavy glue) -------
    extra_joints = verts[:, params['extra_joints_idxs']]
    joints = jnp.concatenate([J_transformed, extra_joints], axis=1)
    lmk_faces_idx = jnp.broadcast_to(params['lmk_faces_idx'][None], (b, NUM_LMK))
    lmk_bary = jnp.broadcast_to(params['lmk_bary_coords'][None], (b, NUM_LMK, 3))
    dyn_faces_idx, dyn_bary = _find_dynamic_lmk(
        R, params['dynamic_lmk_faces_idx'], params['dynamic_lmk_bary_coords'],
        params['neck_kin_chain'])
    lmk_faces_idx = jnp.concatenate([lmk_faces_idx, dyn_faces_idx], axis=1)
    lmk_bary = jnp.concatenate([lmk_bary, dyn_bary], axis=1)
    lmk_faces = params['faces'][lmk_faces_idx.reshape(-1)].reshape(b, -1, 3)
    lmk_faces = lmk_faces + jnp.arange(b, dtype=lmk_faces.dtype)[:, None, None] * V
    lmk_vertices = verts.reshape(-1, 3)[lmk_faces]                     # (B, L, 3, 3)
    landmarks = jnp.einsum('blfi,blf->bli', lmk_vertices, lmk_bary)
    joints = jnp.concatenate([joints, landmarks], axis=1)

    verts = verts * scale
    joints = joints * scale
    return verts, joints


# ========================= synthetic parameters ============================

def build_params(key):
    keys = jax.random.split(key, 16)
    V, Jn = NUM_VERTS, NUM_JOINTS
    shapedirs = jax.random.normal(keys[0], (V, 3, BETAS_DIM)) * 0.03
    exprdirs = jax.random.normal(keys[1], (V, 3, EXPR_DIM)) * 0.01
    v_template = jax.random.normal(keys[2], (V, 3)) * 0.5
    J_regressor = jax.nn.softmax(jax.random.normal(keys[3], (Jn, V)), axis=1)
    # stored exactly like the PyTorch buffer: (num_pose, V*3), column = v*3+k
    posedirs = jax.random.normal(keys[4], (P_DIM, 3 * V)) * 0.01
    weights = jax.nn.softmax(jax.random.normal(keys[5], (V, Jn)) * 2.0, axis=1)
    left_hand_components = jax.random.normal(keys[6], (NUM_PCA, 45)) * 0.1
    right_hand_components = jax.random.normal(keys[7], (NUM_PCA, 45)) * 0.1
    left_hand_mean = jax.random.normal(keys[8], (45,)) * 0.05
    right_hand_mean = jax.random.normal(keys[9], (45,)) * 0.05
    pose_mean = jnp.concatenate(
        [jnp.zeros(POSE_BODY_DIM), left_hand_mean, right_hand_mean])
    faces = jax.random.randint(keys[10], (NUM_FACES, 3), 0, V, dtype=jnp.int32)
    lmk_faces_idx = jax.random.randint(keys[11], (NUM_LMK,), 0, NUM_FACES,
                                       dtype=jnp.int32)
    lmk_bary_coords = jax.nn.softmax(jax.random.normal(keys[12], (NUM_LMK, 3)), -1)
    dynamic_lmk_faces_idx = jax.random.randint(keys[13], (79, NUM_DYN_LMK), 0,
                                               NUM_FACES, dtype=jnp.int32)
    dynamic_lmk_bary_coords = jax.nn.softmax(
        jax.random.normal(keys[14], (79, NUM_DYN_LMK, 3)), axis=-1)
    # TODO(synk): real SMPL-X has 10475 vertices; with the reduced synthetic mesh
    # the hard-coded vertex ids are remapped modulo NUM_VERTS.
    extra_names = ['nose', 'reye', 'leye', 'rear', 'lear',
                   'LBigToe', 'LSmallToe', 'LHeel', 'RBigToe', 'RSmallToe', 'RHeel',
                   'lthumb', 'lindex', 'lmiddle', 'lring', 'lpinky',
                   'rthumb', 'rindex', 'rmiddle', 'rring', 'rpinky']
    extra_ids = np.array([VERTEX_IDS[n] for n in extra_names], dtype=np.int64) % V
    neck_kin_chain = _find_joint_kin_chain(12, SMPLX_PARENTS)
    params = dict(shapedirs=shapedirs, exprdirs=exprdirs, v_template=v_template,
                  J_regressor=J_regressor, posedirs=posedirs, weights=weights,
                  left_hand_components=left_hand_components,
                  right_hand_components=right_hand_components,
                  pose_mean=pose_mean, faces=faces, lmk_faces_idx=lmk_faces_idx,
                  lmk_bary_coords=lmk_bary_coords,
                  dynamic_lmk_faces_idx=dynamic_lmk_faces_idx,
                  dynamic_lmk_bary_coords=dynamic_lmk_bary_coords,
                  extra_joints_idxs=jnp.asarray(extra_ids, dtype=jnp.int32),
                  parents=SMPLX_PARENTS, neck_kin_chain=neck_kin_chain)
    return add_derived_params(params)


# ================================== main ===================================

if __name__ == "__main__":
    key = jax.random.PRNGKey(0)
    kp, k1, k2, k3 = jax.random.split(key, 4)
    params = build_params(kp)

    B = 2
    pose = jax.random.normal(k1, (B, POSE_DIM)) * 0.2                # (2, 87)
    shape = jax.random.normal(k2, (B, BETAS_DIM + EXPR_DIM)) * 0.5   # (2, 24)
    trans = jax.random.normal(k3, (B, 3)) * 0.1

    fwd = jax.jit(lambda p, s, t: smplx_forward(params, p, s, trans=t,
                                                scale=1.5, use_pallas=True))
    verts, joints = fwd(pose, shape, trans)
    jax.block_until_ready((verts, joints))

    # pure-JAX reference (same math, f32, sequential chain, no Pallas)
    ref = jax.jit(lambda p, s, t: smplx_forward(params, p, s, trans=t,
                                                scale=1.5, use_pallas=False))
    verts_ref, joints_ref = ref(pose, shape, trans)
    jax.block_until_ready((verts_ref, joints_ref))

    assert verts.shape == (B, NUM_VERTS, 3)
    assert joints.shape == (B, NUM_JOINTS + 21 + NUM_LMK + NUM_DYN_LMK, 3)
    max_v = float(jnp.max(jnp.abs(verts - verts_ref)))
    max_j = float(jnp.max(jnp.abs(joints - joints_ref)))
    if max_v > 5e-3 or max_j > 5e-3:
        raise AssertionError(f"mismatch vs reference: verts {max_v}, joints {max_j}")
    print("KERNEL_OK")
</pallas_src>

<mosaic_0001>
module attributes {stable_mosaic.version = 11 : i64} {
  func.func @kernel(%arg0: i32, %arg1: memref<2x512xbf16, #tpu.memory_space<vmem>>, %arg2: memref<512x256xbf16, #tpu.memory_space<vmem>>, %arg3: memref<512x256xbf16, #tpu.memory_space<vmem>>, %arg4: memref<512x256xbf16, #tpu.memory_space<vmem>>, %arg5: memref<3x256xf32, #tpu.memory_space<vmem>>, %arg6: memref<64x256xf32, #tpu.memory_space<vmem>>, %arg7: memref<24x64xf32, #tpu.memory_space<vmem>>, %arg8: memref<2x3x256xf32, #tpu.memory_space<vmem>>) attributes {dimension_semantics = [#tpu.dimension_semantics<parallel>], iteration_bounds = array<i64: 2>, scalar_prefetch = 0 : i64, scratch_operands = 0 : i64, tpu.core_type = #tpu.core_type<tc>, window_params = [{pipeline_mode = #tpu.pipeline_mode<synchronous>, transform_indices = @transform_0, window_bounds = array<i64: 2, 512>}, {transform_indices = @transform_1, window_bounds = array<i64: 512, 256>}, {transform_indices = @transform_2, window_bounds = array<i64: 512, 256>}, {transform_indices = @transform_3, window_bounds = array<i64: 512, 256>}, {transform_indices = @transform_4, window_bounds = array<i64: 3, 256>}, {transform_indices = @transform_5, window_bounds = array<i64: 64, 256>}, {pipeline_mode = #tpu.pipeline_mode<synchronous>, transform_indices = @transform_6, window_bounds = array<i64: 24, 64>}, {transform_indices = @transform_7, window_bounds = array<i64: 2, 3, 256>}]} {
    %c0 = arith.constant 0 : index
    %c0_0 = arith.constant 0 : index
    %0 = vector.load %arg1[%c0, %c0_0] : memref<2x512xbf16, #tpu.memory_space<vmem>>, vector<2x512xbf16>
    %c0_1 = arith.constant 0 : index
    %c0_2 = arith.constant 0 : index
    %1 = vector.load %arg5[%c0_1, %c0_2] : memref<3x256xf32, #tpu.memory_space<vmem>>, vector<3x256xf32>
    %c0_3 = arith.constant 0 : index
    %c0_4 = arith.constant 0 : index
    %2 = vector.load %arg2[%c0_3, %c0_4] : memref<512x256xbf16, #tpu.memory_space<vmem>>, vector<512x256xbf16>
    %cst = arith.constant dense<0.000000e+00> : vector<2x256xf32>
    %3 = tpu.matmul %0, %2, %cst {dimension_numbers = #tpu.dot_dimension_numbers<[1], [0], [0], [1], [0, 0, 1, 1], [], []>} : vector<2x512xbf16>, vector<512x256xbf16>, vector<2x256xf32> -> vector<2x256xf32>
    %4 = vector.extract_strided_slice %1 {offsets = [0, 0], sizes = [1, 256], strides = [1, 1]} : vector<3x256xf32> to vector<1x256xf32>
    %5 = vector.broadcast %4 : vector<1x256xf32> to vector<2x256xf32>
    %6 = arith.addf %3, %5 : vector<2x256xf32>
    %c0_5 = arith.constant 0 : index
    %c0_6 = arith.constant 0 : index
    %7 = vector.load %arg3[%c0_5, %c0_6] : memref<512x256xbf16, #tpu.memory_space<vmem>>, vector<512x256xbf16>
    %cst_7 = arith.constant dense<0.000000e+00> : vector<2x256xf32>
    %8 = tpu.matmul %0, %7, %cst_7 {dimension_numbers = #tpu.dot_dimension_numbers<[1], [0], [0], [1], [0, 0, 1, 1], [], []>} : vector<2x512xbf16>, vector<512x256xbf16>, vector<2x256xf32> -> vector<2x256xf32>
    %9 = vector.extract_strided_slice %1 {offsets = [1, 0], sizes = [1, 256], strides = [1, 1]} : vector<3x256xf32> to vector<1x256xf32>
    %10 = vector.broadcast %9 : vector<1x256xf32> to vector<2x256xf32>
    %11 = arith.addf %8, %10 : vector<2x256xf32>
    %c0_8 = arith.constant 0 : index
    %c0_9 = arith.constant 0 : index
    %12 = vector.load %arg4[%c0_8, %c0_9] : memref<512x256xbf16, #tpu.memory_space<vmem>>, vector<512x256xbf16>
    %cst_10 = arith.constant dense<0.000000e+00> : vector<2x256xf32>
    %13 = tpu.matmul %0, %12, %cst_10 {dimension_numbers = #tpu.dot_dimension_numbers<[1], [0], [0], [1], [0, 0, 1, 1], [], []>} : vector<2x512xbf16>, vector<512x256xbf16>, vector<2x256xf32> -> vector<2x256xf32>
    %14 = vector.extract_strided_slice %1 {offsets = [2, 0], sizes = [1, 256], strides = [1, 1]} : vector<3x256xf32> to vector<1x256xf32>
    %15 = vector.broadcast %14 : vector<1x256xf32> to vector<2x256xf32>
    %16 = arith.addf %13, %15 : vector<2x256xf32>
    %c0_11 = arith.constant 0 : index
    %c0_12 = arith.constant 0 : index
    %17 = vector.load %arg7[%c0_11, %c0_12] : memref<24x64xf32, #tpu.memory_space<vmem>>, vector<24x64xf32>
    %c0_13 = arith.constant 0 : index
    %c0_14 = arith.constant 0 : index
    %18 = vector.load %arg6[%c0_13, %c0_14] : memref<64x256xf32, #tpu.memory_space<vmem>>, vector<64x256xf32>
    %cst_15 = arith.constant dense<0.000000e+00> : vector<24x256xf32>
    %19 = tpu.matmul %17, %18, %cst_15 {dimension_numbers = #tpu.dot_dimension_numbers<[1], [0], [0], [1], [0, 0, 1, 1], [], []>} : vector<24x64xf32>, vector<64x256xf32>, vector<24x256xf32> -> vector<24x256xf32>
    %20 = vector.extract_strided_slice %19 {offsets = [0, 0], sizes = [12, 256], strides = [1, 1]} : vector<24x256xf32> to vector<12x256xf32>
    %21 = vector.extract_strided_slice %6 {offsets = [0, 0], sizes = [1, 256], strides = [1, 1]} : vector<2x256xf32> to vector<1x256xf32>
    %22 = vector.extract_strided_slice %11 {offsets = [0, 0], sizes = [1, 256], strides = [1, 1]} : vector<2x256xf32> to vector<1x256xf32>
    %23 = vector.extract_strided_slice %16 {offsets = [0, 0], sizes = [1, 256], strides = [1, 1]} : vector<2x256xf32> to vector<1x256xf32>
    %24 = vector.extract_strided_slice %20 {offsets = [0, 0], sizes = [3, 256], strides = [1, 1]} : vector<12x256xf32> to vector<3x256xf32>
    %25 = vector.broadcast %21 : vector<1x256xf32> to vector<3x256xf32>
    %26 = arith.mulf %24, %25 : vector<3x256xf32>
    %27 = vector.extract_strided_slice %20 {offsets = [3, 0], sizes = [3, 256], strides = [1, 1]} : vector<12x256xf32> to vector<3x256xf32>
    %28 = vector.broadcast %22 : vector<1x256xf32> to vector<3x256xf32>
    %29 = arith.mulf %27, %28 : vector<3x256xf32>
    %30 = arith.addf %26, %29 : vector<3x256xf32>
    %31 = vector.extract_strided_slice %20 {offsets = [6, 0], sizes = [3, 256], strides = [1, 1]} : vector<12x256xf32> to vector<3x256xf32>
    %32 = vector.broadcast %23 : vector<1x256xf32> to vector<3x256xf32>
    %33 = arith.mulf %31, %32 : vector<3x256xf32>
    %34 = arith.addf %30, %33 : vector<3x256xf32>
    %35 = vector.extract_strided_slice %20 {offsets = [9, 0], sizes = [3, 256], strides = [1, 1]} : vector<12x256xf32> to vector<3x256xf32>
    %36 = arith.addf %34, %35 : vector<3x256xf32>
    %c0_16 = arith.constant 0 : index
    %c0_17 = arith.constant 0 : index
    %c0_18 = arith.constant 0 : index
    %37 = vector.load %arg8[%c0_16, %c0_17, %c0_18] : memref<2x3x256xf32, #tpu.memory_space<vmem>>, vector<1x3x256xf32>
    %38 = vector.shape_cast %37 : vector<1x3x256xf32> to vector<3x256xf32>
    %39 = vector.shape_cast %36 : vector<3x256xf32> to vector<1x3x256xf32>
    tpu.vector_store %arg8[%c0_16, %c0_17, %c0_18], %39 {strides = array<i32>} : memref<2x3x256xf32, #tpu.memory_space<vmem>>, vector<1x3x256xf32>,
    %40 = vector.extract_strided_slice %19 {offsets = [12, 0], sizes = [12, 256], strides = [1, 1]} : vector<24x256xf32> to vector<12x256xf32>
    %41 = vector.extract_strided_slice %6 {offsets = [1, 0], sizes = [1, 256], strides = [1, 1]} : vector<2x256xf32> to vector<1x256xf32>
    %42 = vector.extract_strided_slice %11 {offsets = [1, 0], sizes = [1, 256], strides = [1, 1]} : vector<2x256xf32> to vector<1x256xf32>
    %43 = vector.extract_strided_slice %16 {offsets = [1, 0], sizes = [1, 256], strides = [1, 1]} : vector<2x256xf32> to vector<1x256xf32>
    %44 = vector.extract_strided_slice %40 {offsets = [0, 0], sizes = [3, 256], strides = [1, 1]} : vector<12x256xf32> to vector<3x256xf32>
    %45 = vector.broadcast %41 : vector<1x256xf32> to vector<3x256xf32>
    %46 = arith.mulf %44, %45 : vector<3x256xf32>
    %47 = vector.extract_strided_slice %40 {offsets = [3, 0], sizes = [3, 256], strides = [1, 1]} : vector<12x256xf32> to vector<3x256xf32>
    %48 = vector.broadcast %42 : vector<1x256xf32> to vector<3x256xf32>
    %49 = arith.mulf %47, %48 : vector<3x256xf32>
    %50 = arith.addf %46, %49 : vector<3x256xf32>
    %51 = vector.extract_strided_slice %40 {offsets = [6, 0], sizes = [3, 256], strides = [1, 1]} : vector<12x256xf32> to vector<3x256xf32>
    %52 = vector.broadcast %43 : vector<1x256xf32> to vector<3x256xf32>
    %53 = arith.mulf %51, %52 : vector<3x256xf32>
    %54 = arith.addf %50, %53 : vector<3x256xf32>
    %55 = vector.extract_strided_slice %40 {offsets = [9, 0], sizes = [3, 256], strides = [1, 1]} : vector<12x256xf32> to vector<3x256xf32>
    %56 = arith.addf %54, %55 : vector<3x256xf32>
    %c1 = arith.constant 1 : index
    %c0_19 = arith.constant 0 : index
    %c0_20 = arith.constant 0 : index
    %57 = vector.load %arg8[%c1, %c0_19, %c0_20] : memref<2x3x256xf32, #tpu.memory_space<vmem>>, vector<1x3x256xf32>
    %58 = vector.shape_cast %57 : vector<1x3x256xf32> to vector<3x256xf32>
    %59 = vector.shape_cast %56 : vector<3x256xf32> to vector<1x3x256xf32>
    tpu.vector_store %arg8[%c1, %c0_19, %c0_20], %59 {strides = array<i32>} : memref<2x3x256xf32, #tpu.memory_space<vmem>>, vector<1x3x256xf32>,
    return
  }
  func.func @transform_0(%arg0: i32) -> (i32, i32) {
    %c0_i32 = arith.constant 0 : i32
    %c0_i32_0 = arith.constant 0 : i32
    %c0_i32_1 = arith.constant 0 : i32
    return %c0_i32, %c0_i32_0 : i32, i32
  }
  func.func @transform_1(%arg0: i32) -> (i32, i32) {
    %c0_i32 = arith.constant 0 : i32
    %c0_i32_0 = arith.constant 0 : i32
    return %c0_i32, %arg0 : i32, i32
  }
  func.func @transform_2(%arg0: i32) -> (i32, i32) {
    %c0_i32 = arith.constant 0 : i32
    %c0_i32_0 = arith.constant 0 : i32
    return %c0_i32, %arg0 : i32, i32
  }
  func.func @transform_3(%arg0: i32) -> (i32, i32) {
    %c0_i32 = arith.constant 0 : i32
    %c0_i32_0 = arith.constant 0 : i32
    return %c0_i32, %arg0 : i32, i32
  }
  func.func @transform_4(%arg0: i32) -> (i32, i32) {
    %c0_i32 = arith.constant 0 : i32
    %c0_i32_0 = arith.constant 0 : i32
    return %c0_i32, %arg0 : i32, i32
  }
  func.func @transform_5(%arg0: i32) -> (i32, i32) {
    %c0_i32 = arith.constant 0 : i32
    %c0_i32_0 = arith.constant 0 : i32
    return %c0_i32, %arg0 : i32, i32
  }
  func.func @transform_6(%arg0: i32) -> (i32, i32) {
    %c0_i32 = arith.constant 0 : i32
    %c0_i32_0 = arith.constant 0 : i32
    %c0_i32_1 = arith.constant 0 : i32
    return %c0_i32, %c0_i32_0 : i32, i32
  }
  func.func @transform_7(%arg0: i32) -> (i32, i32, i32) {
    %c0_i32 = arith.constant 0 : i32
    %c0_i32_0 = arith.constant 0 : i32
    %c0_i32_1 = arith.constant 0 : i32
    return %c0_i32, %c0_i32_0, %arg0 : i32, i32, i32
  }
}

</mosaic_0001>

<llo_original>
// kernel: _lambda_.1
$region0: #{_lambda_.1}
  #allocation0 [shape = 'u32[]', space=smem, size = 0x4, offset = 0x4, fixed_abs, tag = 'smem constant byte address 0x4 - core index']
  #allocation1 [shape = 'u32[144,128]{1,0:T(1,128)}', space=vmem, size = 0x12000, scoped, tag = 'internal scratch']
  %s0 = inlined_call_operand.vmem [shape: bf16[2,512], index: 0, kind: input, shape index: {}]
  %s1 = inlined_call_operand.vmem [shape: bf16[512,512], index: 1, kind: input, shape index: {}]
  %s2 = inlined_call_operand.vmem [shape: bf16[512,512], index: 2, kind: input, shape index: {}]
  %s3 = inlined_call_operand.vmem [shape: bf16[512,512], index: 3, kind: input, shape index: {}]
  %s4 = inlined_call_operand.vmem [shape: f32[3,512], index: 4, kind: input, shape index: {}]
  %s5 = inlined_call_operand.vmem [shape: f32[64,512], index: 5, kind: input, shape index: {}]
  %s6 = inlined_call_operand.vmem [shape: f32[24,64], index: 6, kind: input, shape index: {}]
  %s7 = inlined_call_operand.vmem [shape: f32[2,3,512], index: 7, kind: output, shape index: {}]
  %s8 = sld [smem:[#allocation0]]
  $region232: #{_lambda_.1} parent=0
    _
  %s10 = ssub.s32 1, %s8
  %s11 = scalar_select 0, %s10, %s8
  $region1: #{_lambda_.1} parent=0
    #allocation2 [shape = 'u8[524288]{0}', space=vmem, size = 0x80000, scoped, tag = 'input window, operand 1']
    #allocation3 [shape = 'u8[524288]{0}', space=vmem, size = 0x80000, scoped, tag = 'input window, operand 2']
    #allocation4 [shape = 'u8[524288]{0}', space=vmem, size = 0x80000, scoped, tag = 'input window, operand 3']
    #allocation5 [shape = 'u8[131072]{0}', space=vmem, size = 0x20000, scoped, tag = 'input window, operand 5']
    #allocation6 [shape = 'u8[16384]{0}', space=vmem, size = 0x4000, scoped, tag = 'output window, operand 0']
    loop: start=0, step=1, limit=4
    $region2: #{_lambda_.1} parent=1 // loop_pre_header
      _
    $region3: #{_lambda_.1} parent=1 // loop_header
      %s13 = sphi 0, %s17
      %p14 = scmp.ge.s32.totalorder %s13, 4
      %s21 = sphi 0, %s21
      %s23 = sphi 0, %s21
      %s24 = sphi 0, %s23
      %s38 = sphi 0, %s24
      %s44 = sphi 0, %s46
      %s47 = sphi 0, %s44
      %s48 = sphi 0, %s47
      %s64 = sphi 0, %s48
      %s70 = sphi 0, %s72
      %s73 = sphi 0, %s70
      %s74 = sphi 0, %s73
      %s90 = sphi 0, %s74
      %s96 = sphi 0, %s98
      %s99 = sphi 0, %s96
      %s100 = sphi 0, %s99
      %s116 = sphi 0, %s100
      %s122 = sphi 0, %s124
      %s125 = sphi 0, %s122
      %s126 = sphi 0, %s125
      %s142 = sphi 0, %s126
      %s148 = sphi 0, %s150
      %s151 = sphi 0, %s148
      %s152 = sphi 0, %s151
      %s168 = sphi 0, %s152
      %s172 = sphi 0, %s172
      %s174 = sphi 0, %s172
      %s175 = sphi 0, %s174
      %s189 = sphi 0, %s175
      %s195 = sphi 0, %s197
      %s198 = sphi 0, %s195
      %s199 = sphi 0, %s198
      %s215 = sphi 0, %s199
    $region4: #{_lambda_.1} parent=1 // loop_header_branch
      %16 = sbr.rel (%p14) target = $region8
    $region5: #{_lambda_.1} parent=1 // loop_body
      %s18 = ssub.s32 %s13, 1
      %s19 = ssub.s32 %s13, 2
      %s20 = sadd.s32 %s13, 1
      %s22 = sadd.s32 %s21, 1
      %p25 = scmp.eq.s32.totalorder %s13, 1
      %p26 = scmp.ne.s32.totalorder %s21, %s23
      %p27 = scmp.eq.s32.totalorder %s13, 0
      %p28 = por %p26, %p27
      %p29 = scmp.ne.s32.totalorder %s21, %s23
      %p30 = scmp.eq.s32.totalorder %s18, 1
      %p31 = por %p29, %p30
      %p32 = scmp.ne.s32.totalorder %s23, %s24
      %p33 = scmp.eq.s32.totalorder %s18, 0
      %p34 = por %p32, %p33
      %p35 = scmp.ne.s32.totalorder %s23, %s24
      %p36 = scmp.eq.s32.totalorder %s19, 1
      %p37 = por %p35, %p36
      %p39 = scmp.ne.s32.totalorder %s24, %s38
      %p40 = scmp.eq.s32.totalorder %s19, 0
      %p41 = por %p39, %p40
      %s42 = ssub.s32 %s13, %s20
      %p43 = scmp.eq.s32.totalorder %s42, 0
      %s45 = sadd.s32 %s44, 1
      %s46 = scalar_select %p43, %s44, %s45
      %p49 = pneg %p43
      %p50 = scmp.eq.s32.totalorder %s13, 1
      %p51 = por %p49, %p50
      %p52 = scmp.ne.s32.totalorder %s44, %s47
      %p53 = scmp.eq.s32.totalorder %s13, 0
      %p54 = por %p52, %p53
      %p55 = scmp.ne.s32.totalorder %s44, %s47
      %p56 = scmp.eq.s32.totalorder %s18, 1
      %p57 = por %p55, %p56
      %p58 = scmp.ne.s32.totalorder %s47, %s48
      %p59 = scmp.eq.s32.totalorder %s18, 0
      %p60 = por %p58, %p59
      %p61 = scmp.ne.s32.totalorder %s47, %s48
      %p62 = scmp.eq.s32.totalorder %s19, 1
      %p63 = por %p61, %p62
      %p65 = scmp.ne.s32.totalorder %s48, %s64
      %p66 = scmp.eq.s32.totalorder %s19, 0
      %p67 = por %p65, %p66
      %s68 = ssub.s32 %s13, %s20
      %p69 = scmp.eq.s32.totalorder %s68, 0
      %s71 = sadd.s32 %s70, 1
      %s72 = scalar_select %p69, %s70, %s71
      %p75 = pneg %p69
      %p76 = scmp.eq.s32.totalorder %s13, 1
      %p77 = por %p75, %p76
      %p78 = scmp.ne.s32.totalorder %s70, %s73
      %p79 = scmp.eq.s32.totalorder %s13, 0
      %p80 = por %p78, %p79
      %p81 = scmp.ne.s32.totalorder %s70, %s73
      %p82 = scmp.eq.s32.totalorder %s18, 1
      %p83 = por %p81, %p82
      %p84 = scmp.ne.s32.totalorder %s73, %s74
      %p85 = scmp.eq.s32.totalorder %s18, 0
      %p86 = por %p84, %p85
      %p87 = scmp.ne.s32.totalorder %s73, %s74
      %p88 = scmp.eq.s32.totalorder %s19, 1
      %p89 = por %p87, %p88
      %p91 = scmp.ne.s32.totalorder %s74, %s90
      %p92 = scmp.eq.s32.totalorder %s19, 0
      %p93 = por %p91, %p92
      %s94 = ssub.s32 %s13, %s20
      %p95 = scmp.eq.s32.totalorder %s94, 0
      %s97 = sadd.s32 %s96, 1
      %s98 = scalar_select %p95, %s96, %s97
      %p101 = pneg %p95
      %p102 = scmp.eq.s32.totalorder %s13, 1
      %p103 = por %p101, %p102
      %p104 = scmp.ne.s32.totalorder %s96, %s99
      %p105 = scmp.eq.s32.totalorder %s13, 0
      %p106 = por %p104, %p105
      %p107 = scmp.ne.s32.totalorder %s96, %s99
      %p108 = scmp.eq.s32.totalorder %s18, 1
      %p109 = por %p107, %p108
      %p110 = scmp.ne.s32.totalorder %s99, %s100
      %p111 = scmp.eq.s32.totalorder %s18, 0
      %p112 = por %p110, %p111
      %p113 = scmp.ne.s32.totalorder %s99, %s100
      %p114 = scmp.eq.s32.totalorder %s19, 1
      %p115 = por %p113, %p114
      %p117 = scmp.ne.s32.totalorder %s100, %s116
      %p118 = scmp.eq.s32.totalorder %s19, 0
      %p119 = por %p117, %p118
      %s120 = ssub.s32 %s13, %s20
      %p121 = scmp.eq.s32.totalorder %s120, 0
      %s123 = sadd.s32 %s122, 1
      %s124 = scalar_select %p121, %s122, %s123
      %p127 = pneg %p121
      %p128 = scmp.eq.s32.totalorder %s13, 1
      %p129 = por %p127, %p128
      %p130 = scmp.ne.s32.totalorder %s122, %s125
      %p131 = scmp.eq.s32.totalorder %s13, 0
      %p132 = por %p130, %p131
      %p133 = scmp.ne.s32.totalorder %s122, %s125
      %p134 = scmp.eq.s32.totalorder %s18, 1
      %p135 = por %p133, %p134
      %p136 = scmp.ne.s32.totalorder %s125, %s126
      %p137 = scmp.eq.s32.totalorder %s18, 0
      %p138 = por %p136, %p137
      %p139 = scmp.ne.s32.totalorder %s125, %s126
      %p140 = scmp.eq.s32.totalorder %s19, 1
      %p141 = por %p139, %p140
      %p143 = scmp.ne.s32.totalorder %s126, %s142
      %p144 = scmp.eq.s32.totalorder %s19, 0
      %p145 = por %p143, %p144
      %s146 = ssub.s32 %s13, %s20
      %p147 = scmp.eq.s32.totalorder %s146, 0
      %s149 = sadd.s32 %s148, 1
      %s150 = scalar_select %p147, %s148, %s149
      %p153 = pneg %p147
      %p154 = scmp.eq.s32.totalorder %s13, 1
      %p155 = por %p153, %p154
      %p156 = scmp.ne.s32.totalorder %s148, %s151
      %p157 = scmp.eq.s32.totalorder %s13, 0
      %p158 = por %p156, %p157
      %p159 = scmp.ne.s32.totalorder %s148, %s151
      %p160 = scmp.eq.s32.totalorder %s18, 1
      %p161 = por %p159, %p160
      %p162 = scmp.ne.s32.totalorder %s151, %s152
      %p163 = scmp.eq.s32.totalorder %s18, 0
      %p164 = por %p162, %p163
      %p165 = scmp.ne.s32.totalorder %s151, %s152
      %p166 = scmp.eq.s32.totalorder %s19, 1
      %p167 = por %p165, %p166
      %p169 = scmp.ne.s32.totalorder %s152, %s168
      %p170 = scmp.eq.s32.totalorder %s19, 0
      %p171 = por %p169, %p170
      %s173 = sadd.s32 %s172, 1
      %p176 = scmp.eq.s32.totalorder %s13, 1
      %p177 = scmp.ne.s32.totalorder %s172, %s174
      %p178 = scmp.eq.s32.totalorder %s13, 0
      %p179 = por %p177, %p178
      %p180 = scmp.ne.s32.totalorder %s172, %s174
      %p181 = scmp.eq.s32.totalorder %s18, 1
      %p182 = por %p180, %p181
      %p183 = scmp.ne.s32.totalorder %s174, %s175
      %p184 = scmp.eq.s32.totalorder %s18, 0
      %p185 = por %p183, %p184
      %p186 = scmp.ne.s32.totalorder %s174, %s175
      %p187 = scmp.eq.s32.totalorder %s19, 1
      %p188 = por %p186, %p187
      %p190 = scmp.ne.s32.totalorder %s175, %s189
      %p191 = scmp.eq.s32.totalorder %s19, 0
      %p192 = por %p190, %p191
      %s193 = ssub.s32 %s13, %s20
      %p194 = scmp.eq.s32.totalorder %s193, 0
      %s196 = sadd.s32 %s195, 1
      %s197 = scalar_select %p194, %s195, %s196
      %p200 = pneg %p194
      %p201 = scmp.eq.s32.totalorder %s13, 1
      %p202 = por %p200, %p201
      %p203 = scmp.ne.s32.totalorder %s195, %s198
      %p204 = scmp.eq.s32.totalorder %s13, 0
      %p205 = por %p203, %p204
      %p206 = scmp.ne.s32.totalorder %s195, %s198
      %p207 = scmp.eq.s32.totalorder %s18, 1
      %p208 = por %p206, %p207
      %p209 = scmp.ne.s32.totalorder %s198, %s199
      %p210 = scmp.eq.s32.totalorder %s18, 0
      %p211 = por %p209, %p210
      %p212 = scmp.ne.s32.totalorder %s198, %s199
      %p213 = scmp.eq.s32.totalorder %s19, 1
      %p214 = por %p212, %p213
      %p216 = scmp.ne.s32.totalorder %s199, %s215
      %p217 = scmp.eq.s32.totalorder %s19, 0
      %p218 = por %p216, %p217
      %p219 = scmp.le.s32.totalorder 1, %s13
      %p220 = scmp.lt.s32.totalorder %s13, 3
      %p221 = pnand %p219, %p220
      %p222 = pneg %p221
      // Predicated region
      $region9: #{_lambda_.1} parent=5 // pred_check
        _
      $region10: #{_lambda_.1} parent=5 // pred_check_branch
        %224 = sbr.rel (%p221) target = $region12
      $region11: #{_lambda_.1} parent=5 // pred_region
        %s225 = ssub.s32 %s13, 1
        // Predicated region
        $region13: #{_lambda_.1} parent=11 // pred_check
          %p226 = pneg %p34
        $region14: #{_lambda_.1} parent=11 // pred_check_branch
          %228 = sbr.rel (%p226) target = $region16
        $region15: #{_lambda_.1} parent=11 // pred_region
          _
        $region16: #{_lambda_.1} parent=11 // pred_fallthru
          _
        // Predicated region
        $region17: #{_lambda_.1} parent=11 // pred_check
          %p229 = pneg %p185
        $region18: #{_lambda_.1} parent=11 // pred_check_branch
          %231 = sbr.rel (%p229) target = $region20
        $region19: #{_lambda_.1} parent=11 // pred_region
          _
        $region20: #{_lambda_.1} parent=11 // pred_fallthru
          _
      $region12: #{_lambda_.1} parent=5 // pred_fallthru
        _
      %p232 = scmp.lt.s32.totalorder %s13, 2
      // Predicated region
      $region21: #{_lambda_.1} parent=5 // pred_check
        %p233 = pneg %p232
      $region22: #{_lambda_.1} parent=5 // pred_check_branch
        %235 = sbr.rel (%p233) target = $region24
      $region23: #{_lambda_.1} parent=5 // pred_region
        // Predicated region
        $region25: #{_lambda_.1} parent=23 // pred_check
          %p236 = pneg %p54
        $region26: #{_lambda_.1} parent=23 // pred_check_branch
          %238 = sbr.rel (%p236) target = $region28
        $region27: #{_lambda_.1} parent=23 // pred_region
          %s239 = sand.u32 %s44, 1
          %s240 = sand.u32 %s44, 1
          %s241 = smul.addr %s240, 512
          %s242 = scalar_lea.vmem [#allocation2], %s241
          %s243 = smul.u32 2, %s13
          %s244 = smul.addr %s243, 4
          %s245 = scalar_lea.vmem %s1, %s244
          // Predicated region
          $region29: #{_lambda_.1} parent=27 // pred_check
            _
          $region30: #{_lambda_.1} parent=27 // pred_check_branch
            %247 = sbr.rel (0) target = $region32
          $region31: #{_lambda_.1} parent=27 // pred_region
            // Predicated region
            $region33: #{_lambda_.1} parent=31 // pred_check
              _
            $region34: #{_lambda_.1} parent=31 // pred_check_branch
              %249 = sbr.rel (0) target = $region36
            $region35: #{_lambda_.1} parent=31 // pred_region
              // Predicated region
              $region48: #{_lambda_.1} parent=35 // pred_check
                _
              $region49: #{_lambda_.1} parent=35 // pred_check_branch
                %390 = sbr.rel (0) target = $region51
              $region50: #{_lambda_.1} parent=35 // pred_region
                loop: start=0, step=1, limit=1
                $region52: #{_lambda_.1} parent=50 // loop_pre_header
                  _
                $region53: #{_lambda_.1} parent=50 // loop_header
                  %s392 = sphi 0, %s396
                  %p393 = scmp.ge.s32.totalorder %s392, 1
                  %s397 = sphi %s245, %s245
                  %s398 = sphi %s242, %s242
                $region54: #{_lambda_.1} parent=50 // loop_header_branch
                  %395 = sbr.rel (%p393) target = $region58
                $region55: #{_lambda_.1} parent=50 // loop_body
                  %v399 = vld [vmem:[%s397] sm:$0xff]
                  %400 = vst [vmem:[%s398] sm:$0xff] %v399
                  %v401 = vld [vmem:[%s397 + $0x10] sm:$0xff]
                  %402 = vst [vmem:[%s398 + $0x8] sm:$0xff] %v401
                  %v403 = vld [vmem:[%s397 + $0x20] sm:$0xff]
                  %404 = vst [vmem:[%s398 + $0x10] sm:$0xff] %v403
                  %v405 = vld [vmem:[%s397 + $0x30] sm:$0xff]
                  %406 = vst [vmem:[%s398 + $0x18] sm:$0xff] %v405
                  %v407 = vld [vmem:[%s397 + $0x40] sm:$0xff]
                  %408 = vst [vmem:[%s398 + $0x20] sm:$0xff] %v407
                  %v409 = vld [vmem:[%s397 + $0x50] sm:$0xff]
                  %410 = vst [vmem:[%s398 + $0x28] sm:$0xff] %v409
                  %v411 = vld [vmem:[%s397 + $0x60] sm:$0xff]
                  %412 = vst [vmem:[%s398 + $0x30] sm:$0xff] %v411
                  %v413 = vld [vmem:[%s397 + $0x70] sm:$0xff]
                  %414 = vst [vmem:[%s398 + $0x38] sm:$0xff] %v413
                  %v415 = vld [vmem:[%s397 + $0x80] sm:$0xff]
                  %416 = vst [vmem:[%s398 + $0x40] sm:$0xff] %v415
                  %v417 = vld [vmem:[%s397 + $0x90] sm:$0xff]
                  %418 = vst [vmem:[%s398 + $0x48] sm:$0xff] %v417
                  %v419 = vld [vmem:[%s397 + $0xa0] sm:$0xff]
                  %420 = vst [vmem:[%s398 + $0x50] sm:$0xff] %v419
                  %v421 = vld [vmem:[%s397 + $0xb0] sm:$0xff]
                  %422 = vst [vmem:[%s398 + $0x58] sm:$0xff] %v421
                  %v423 = vld [vmem:[%s397 + $0xc0] sm:$0xff]
                  %424 = vst [vmem:[%s398 + $0x60] sm:$0xff] %v423
                  %v425 = vld [vmem:[%s397 + $0xd0] sm:$0xff]
                  %426 = vst [vmem:[%s398 + $0x68] sm:$0xff] %v425
                  %v427 = vld [vmem:[%s397 + $0xe0] sm:$0xff]
                  %428 = vst [vmem:[%s398 + $0x70] sm:$0xff] %v427
                  %v429 = vld [vmem:[%s397 + $0xf0] sm:$0xff]
                  %430 = vst [vmem:[%s398 + $0x78] sm:$0xff] %v429
                  %v431 = vld [vmem:[%s397 + $0x100] sm:$0xff]
                  %432 = vst [vmem:[%s398 + $0x80] sm:$0xff] %v431
                  %v433 = vld [vmem:[%s397 + $0x110] sm:$0xff]
                  %434 = vst [vmem:[%s398 + $0x88] sm:$0xff] %v433
                  %v435 = vld [vmem:[%s397 + $0x120] sm:$0xff]
                  %436 = vst [vmem:[%s398 + $0x90] sm:$0xff] %v435
                  %v437 = vld [vmem:[%s397 + $0x130] sm:$0xff]
                  %438 = vst [vmem:[%s398 + $0x98] sm:$0xff] %v437
                  %v439 = vld [vmem:[%s397 + $0x140] sm:$0xff]
                  %440 = vst [vmem:[%s398 + $0xa0] sm:$0xff] %v439
                  %v441 = vld [vmem:[%s397 + $0x150] sm:$0xff]
                  %442 = vst [vmem:[%s398 + $0xa8] sm:$0xff] %v441
                  %v443 = vld [vmem:[%s397 + $0x160] sm:$0xff]
                  %444 = vst [vmem:[%s398 + $0xb0] sm:$0xff] %v443
                  %v445 = vld [vmem:[%s397 + $0x170] sm:$0xff]
                  %446 = vst [vmem:[%s398 + $0xb8] sm:$0xff] %v445
                  %v447 = vld [vmem:[%s397 + $0x180] sm:$0xff]
                  %448 = vst [vmem:[%s398 + $0xc0] sm:$0xff] %v447
                  %v449 = vld [vmem:[%s397 + $0x190] sm:$0xff]
                  %450 = vst [vmem:[%s398 + $0xc8] sm:$0xff] %v449
                  %v451 = vld [vmem:[%s397 + $0x1a0] sm:$0xff]
                  %452 = vst [vmem:[%s398 + $0xd0] sm:$0xff] %v451
                  %v453 = vld [vmem:[%s397 + $0x1b0] sm:$0xff]
                  %454 = vst [vmem:[%s398 + $0xd8] sm:$0xff] %v453
                  %v455 = vld [vmem:[%s397 + $0x1c0] sm:$0xff]
                  %456 = vst [vmem:[%s398 + $0xe0] sm:$0xff] %v455
                  %v457 = vld [vmem:[%s397 + $0x1d0] sm:$0xff]
                  %458 = vst [vmem:[%s398 + $0xe8] sm:$0xff] %v457
                  %v459 = vld [vmem:[%s397 + $0x1e0] sm:$0xff]
                  %460 = vst [vmem:[%s398 + $0xf0] sm:$0xff] %v459
                  %v461 = vld [vmem:[%s397 + $0x1f0] sm:$0xff]
                  %462 = vst [vmem:[%s398 + $0xf8] sm:$0xff] %v461
                  %v463 = vld [vmem:[%s397 + $0x200] sm:$0xff]
                  %464 = vst [vmem:[%s398 + $0x100] sm:$0xff] %v463
                  %v465 = vld [vmem:[%s397 + $0x210] sm:$0xff]
                  %466 = vst [vmem:[%s398 + $0x108] sm:$0xff] %v465
                  %v467 = vld [vmem:[%s397 + $0x220] sm:$0xff]
                  %468 = vst [vmem:[%s398 + $0x110] sm:$0xff] %v467
                  %v469 = vld [vmem:[%s397 + $0x230] sm:$0xff]
                  %470 = vst [vmem:[%s398 + $0x118] sm:$0xff] %v469
                  %v471 = vld [vmem:[%s397 + $0x240] sm:$0xff]
                  %472 = vst [vmem:[%s398 + $0x120] sm:$0xff] %v471
                  %v473 = vld [vmem:[%s397 + $0x250] sm:$0xff]
                  %474 = vst [vmem:[%s398 + $0x128] sm:$0xff] %v473
                  %v475 = vld [vmem:[%s397 + $0x260] sm:$0xff]
                  %476 = vst [vmem:[%s398 + $0x130] sm:$0xff] %v475
                  %v477 = vld [vmem:[%s397 + $0x270] sm:$0xff]
                  %478 = vst [vmem:[%s398 + $0x138] sm:$0xff] %v477
                  %v479 = vld [vmem:[%s397 + $0x280] sm:$0xff]
                  %480 = vst [vmem:[%s398 + $0x140] sm:$0xff] %v479
                  %v481 = vld [vmem:[%s397 + $0x290] sm:$0xff]
                  %482 = vst [vmem:[%s398 + $0x148] sm:$0xff] %v481
                  %v483 = vld [vmem:[%s397 + $0x2a0] sm:$0xff]
                  %484 = vst [vmem:[%s398 + $0x150] sm:$0xff] %v483
                  %v485 = vld [vmem:[%s397 + $0x2b0] sm:$0xff]
                  %486 = vst [vmem:[%s398 + $0x158] sm:$0xff] %v485
                  %v487 = vld [vmem:[%s397 + $0x2c0] sm:$0xff]
                  %488 = vst [vmem:[%s398 + $0x160] sm:$0xff] %v487
                  %v489 = vld [vmem:[%s397 + $0x2d0] sm:$0xff]
                  %490 = vst [vmem:[%s398 + $0x168] sm:$0xff] %v489
                  %v491 = vld [vmem:[%s397 + $0x2e0] sm:$0xff]
                  %492 = vst [vmem:[%s398 + $0x170] sm:$0xff] %v491
                  %v493 = vld [vmem:[%s397 + $0x2f0] sm:$0xff]
                  %494 = vst [vmem:[%s398 + $0x178] sm:$0xff] %v493
                  %v495 = vld [vmem:[%s397 + $0x300] sm:$0xff]
                  %496 = vst [vmem:[%s398 + $0x180] sm:$0xff] %v495
                  %v497 = vld [vmem:[%s397 + $0x310] sm:$0xff]
                  %498 = vst [vmem:[%s398 + $0x188] sm:$0xff] %v497
                  %v499 = vld [vmem:[%s397 + $0x320] sm:$0xff]
                  %500 = vst [vmem:[%s398 + $0x190] sm:$0xff] %v499
                  %v501 = vld [vmem:[%s397 + $0x330] sm:$0xff]
                  %502 = vst [vmem:[%s398 + $0x198] sm:$0xff] %v501
                  %v503 = vld [vmem:[%s397 + $0x340] sm:$0xff]
                  %504 = vst [vmem:[%s398 + $0x1a0] sm:$0xff] %v503
                  %v505 = vld [vmem:[%s397 + $0x350] sm:$0xff]
                  %506 = vst [vmem:[%s398 + $0x1a8] sm:$0xff] %v505
                  %v507 = vld [vmem:[%s397 + $0x360] sm:$0xff]
                  %508 = vst [vmem:[%s398 + $0x1b0] sm:$0xff] %v507
                  %v509 = vld [vmem:[%s397 + $0x370] sm:$0xff]
                  %510 = vst [vmem:[%s398 + $0x1b8] sm:$0xff] %v509
                  %v511 = vld [vmem:[%s397 + $0x380] sm:$0xff]
                  %512 = vst [vmem:[%s398 + $0x1c0] sm:$0xff] %v511
                  %v513 = vld [vmem:[%s397 + $0x390] sm:$0xff]
                  %514 = vst [vmem:[%s398 + $0x1c8] sm:$0xff] %v513
                  %v515 = vld [vmem:[%s397 + $0x3a0] sm:$0xff]
                  %516 = vst [vmem:[%s398 + $0x1d0] sm:$0xff] %v515
                  %v517 = vld [vmem:[%s397 + $0x3b0] sm:$0xff]
                  %518 = vst [vmem:[%s398 + $0x1d8] sm:$0xff] %v517
                  %v519 = vld [vmem:[%s397 + $0x3c0] sm:$0xff]
                  %520 = vst [vmem:[%s398 + $0x1e0] sm:$0xff] %v519
                  %v521 = vld [vmem:[%s397 + $0x3d0] sm:$0xff]
                  %522 = vst [vmem:[%s398 + $0x1e8] sm:$0xff] %v521
                  %v523 = vld [vmem:[%s397 + $0x3e0] sm:$0xff]
                  %524 = vst [vmem:[%s398 + $0x1f0] sm:$0xff] %v523
                  %v525 = vld [vmem:[%s397 + $0x3f0] sm:$0xff]
                  %526 = vst [vmem:[%s398 + $0x1f8] sm:$0xff] %v525
                $region56: #{_lambda_.1} parent=50 // loop_footer
                  %s396 = sadd.s32 1, %s392
                $region57: #{_lambda_.1} parent=50 // loop_footer_branch
                  %391 = sbr.rel target = $region53
                $region58: #{_lambda_.1} parent=50 // loop_exit
                  _
              $region51: #{_lambda_.1} parent=35 // pred_fallthru
                _
              // Predicated region
              $region59: #{_lambda_.1} parent=35 // pred_check
                _
              $region60: #{_lambda_.1} parent=35 // pred_check_branch
                %528 = sbr.rel target = $region62
              $region61: #{_lambda_.1} parent=35 // pred_region
                _
              $region62: #{_lambda_.1} parent=35 // pred_fallthru
                _
            $region36: #{_lambda_.1} parent=31 // pred_fallthru
              _
            // Predicated region
            $region37: #{_lambda_.1} parent=31 // pred_check
              _
            $region38: #{_lambda_.1} parent=31 // pred_check_branch
              %251 = sbr.rel target = $region40
            $region39: #{_lambda_.1} parent=31 // pred_region
              loop: start=0, step=1, limit=1
              $region41: #{_lambda_.1} parent=39 // loop_pre_header
                _
              $region42: #{_lambda_.1} parent=39 // loop_header
                %s254 = sphi 0, %s258
                %p255 = scmp.ge.s32.totalorder %s254, 1
                %s259 = sphi %s245, %s245
                %s260 = sphi %s242, %s242
              $region43: #{_lambda_.1} parent=39 // loop_header_branch
                %257 = sbr.rel (%p255) target = $region47
              $region44: #{_lambda_.1} parent=39 // loop_body
                %v261 = vld [vmem:[%s259] sm:$0xff]
                %262 = vst [vmem:[%s260] sm:$0xff] %v261
                %v263 = vld [vmem:[%s259 + $0x10] sm:$0xff]
                %264 = vst [vmem:[%s260 + $0x8] sm:$0xff] %v263
                %v265 = vld [vmem:[%s259 + $0x20] sm:$0xff]
                %266 = vst [vmem:[%s260 + $0x10] sm:$0xff] %v265
                %v267 = vld [vmem:[%s259 + $0x30] sm:$0xff]
                %268 = vst [vmem:[%s260 + $0x18] sm:$0xff] %v267
                %v269 = vld [vmem:[%s259 + $0x40] sm:$0xff]
                %270 = vst [vmem:[%s260 + $0x20] sm:$0xff] %v269
                %v271 = vld [vmem:[%s259 + $0x50] sm:$0xff]
                %272 = vst [vmem:[%s260 + $0x28] sm:$0xff] %v271
                %v273 = vld [vmem:[%s259 + $0x60] sm:$0xff]
                %274 = vst [vmem:[%s260 + $0x30] sm:$0xff] %v273
                %v275 = vld [vmem:[%s259 + $0x70] sm:$0xff]
                %276 = vst [vmem:[%s260 + $0x38] sm:$0xff] %v275
                %v277 = vld [vmem:[%s259 + $0x80] sm:$0xff]
                %278 = vst [vmem:[%s260 + $0x40] sm:$0xff] %v277
                %v279 = vld [vmem:[%s259 + $0x90] sm:$0xff]
                %280 = vst [vmem:[%s260 + $0x48] sm:$0xff] %v279
                %v281 = vld [vmem:[%s259 + $0xa0] sm:$0xff]
                %282 = vst [vmem:[%s260 + $0x50] sm:$0xff] %v281
                %v283 = vld [vmem:[%s259 + $0xb0] sm:$0xff]
                %284 = vst [vmem:[%s260 + $0x58] sm:$0xff] %v283
                %v285 = vld [vmem:[%s259 + $0xc0] sm:$0xff]
                %286 = vst [vmem:[%s260 + $0x60] sm:$0xff] %v285
                %v287 = vld [vmem:[%s259 + $0xd0] sm:$0xff]
                %288 = vst [vmem:[%s260 + $0x68] sm:$0xff] %v287
                %v289 = vld [vmem:[%s259 + $0xe0] sm:$0xff]
                %290 = vst [vmem:[%s260 + $0x70] sm:$0xff] %v289
                %v291 = vld [vmem:[%s259 + $0xf0] sm:$0xff]
                %292 = vst [vmem:[%s260 + $0x78] sm:$0xff] %v291
                %v293 = vld [vmem:[%s259 + $0x100] sm:$0xff]
                %294 = vst [vmem:[%s260 + $0x80] sm:$0xff] %v293
                %v295 = vld [vmem:[%s259 + $0x110] sm:$0xff]
                %296 = vst [vmem:[%s260 + $0x88] sm:$0xff] %v295
                %v297 = vld [vmem:[%s259 + $0x120] sm:$0xff]
                %298 = vst [vmem:[%s260 + $0x90] sm:$0xff] %v297
                %v299 = vld [vmem:[%s259 + $0x130] sm:$0xff]
                %300 = vst [vmem:[%s260 + $0x98] sm:$0xff] %v299
                %v301 = vld [vmem:[%s259 + $0x140] sm:$0xff]
                %302 = vst [vmem:[%s260 + $0xa0] sm:$0xff] %v301
                %v303 = vld [vmem:[%s259 + $0x150] sm:$0xff]
                %304 = vst [vmem:[%s260 + $0xa8] sm:$0xff] %v303
                %v305 = vld [vmem:[%s259 + $0x160] sm:$0xff]
                %306 = vst [vmem:[%s260 + $0xb0] sm:$0xff] %v305
                %v307 = vld [vmem:[%s259 + $0x170] sm:$0xff]
                %308 = vst [vmem:[%s260 + $0xb8] sm:$0xff] %v307
                %v309 = vld [vmem:[%s259 + $0x180] sm:$0xff]
                %310 = vst [vmem:[%s260 + $0xc0] sm:$0xff] %v309
                %v311 = vld [vmem:[%s259 + $0x190] sm:$0xff]
                %312 = vst [vmem:[%s260 + $0xc8] sm:$0xff] %v311
                %v313 = vld [vmem:[%s259 + $0x1a0] sm:$0xff]
                %314 = vst [vmem:[%s260 + $0xd0] sm:$0xff] %v313
                %v315 = vld [vmem:[%s259 + $0x1b0] sm:$0xff]
                %316 = vst [vmem:[%s260 + $0xd8] sm:$0xff] %v315
                %v317 = vld [vmem:[%s259 + $0x1c0] sm:$0xff]
                %318 = vst [vmem:[%s260 + $0xe0] sm:$0xff] %v317
                %v319 = vld [vmem:[%s259 + $0x1d0] sm:$0xff]
                %320 = vst [vmem:[%s260 + $0xe8] sm:$0xff] %v319
                %v321 = vld [vmem:[%s259 + $0x1e0] sm:$0xff]
                %322 = vst [vmem:[%s260 + $0xf0] sm:$0xff] %v321
                %v323 = vld [vmem:[%s259 + $0x1f0] sm:$0xff]
                %324 = vst [vmem:[%s260 + $0xf8] sm:$0xff] %v323
                %v325 = vld [vmem:[%s259 + $0x200] sm:$0xff]
                %326 = vst [vmem:[%s260 + $0x100] sm:$0xff] %v325
                %v327 = vld [vmem:[%s259 + $0x210] sm:$0xff]
                %328 = vst [vmem:[%s260 + $0x108] sm:$0xff] %v327
                %v329 = vld [vmem:[%s259 + $0x220] sm:$0xff]
                %330 = vst [vmem:[%s260 + $0x110] sm:$0xff] %v329
                %v331 = vld [vmem:[%s259 + $0x230] sm:$0xff]
                %332 = vst [vmem:[%s260 + $0x118] sm:$0xff] %v331
                %v333 = vld [vmem:[%s259 + $0x240] sm:$0xff]
                %334 = vst [vmem:[%s260 + $0x120] sm:$0xff] %v333
                %v335 = vld [vmem:[%s259 + $0x250] sm:$0xff]
                %336 = vst [vmem:[%s260 + $0x128] sm:$0xff] %v335
                %v337 = vld [vmem:[%s259 + $0x260] sm:$0xff]
                %338 = vst [vmem:[%s260 + $0x130] sm:$0xff] %v337
                %v339 = vld [vmem:[%s259 + $0x270] sm:$0xff]
                %340 = vst [vmem:[%s260 + $0x138] sm:$0xff] %v339
                %v341 = vld [vmem:[%s259 + $0x280] sm:$0xff]
                %342 = vst [vmem:[%s260 + $0x140] sm:$0xff] %v341
                %v343 = vld [vmem:[%s259 + $0x290] sm:$0xff]
                %344 = vst [vmem:[%s260 + $0x148] sm:$0xff] %v343
                %v345 = vld [vmem:[%s259 + $0x2a0] sm:$0xff]
                %346 = vst [vmem:[%s260 + $0x150] sm:$0xff] %v345
                %v347 = vld [vmem:[%s259 + $0x2b0] sm:$0xff]
                %348 = vst [vmem:[%s260 + $0x158] sm:$0xff] %v347
                %v349 = vld [vmem:[%s259 + $0x2c0] sm:$0xff]
                %350 = vst [vmem:[%s260 + $0x160] sm:$0xff] %v349
                %v351 = vld [vmem:[%s259 + $0x2d0] sm:$0xff]
                %352 = vst [vmem:[%s260 + $0x168] sm:$0xff] %v351
                %v353 = vld [vmem:[%s259 + $0x2e0] sm:$0xff]
                %354 = vst [vmem:[%s260 + $0x170] sm:$0xff] %v353
                %v355 = vld [vmem:[%s259 + $0x2f0] sm:$0xff]
                %356 = vst [vmem:[%s260 + $0x178] sm:$0xff] %v355
                %v357 = vld [vmem:[%s259 + $0x300] sm:$0xff]
                %358 = vst [vmem:[%s260 + $0x180] sm:$0xff] %v357
                %v359 = vld [vmem:[%s259 + $0x310] sm:$0xff]
                %360 = vst [vmem:[%s260 + $0x188] sm:$0xff] %v359
                %v361 = vld [vmem:[%s259 + $0x320] sm:$0xff]
                %362 = vst [vmem:[%s260 + $0x190] sm:$0xff] %v361
                %v363 = vld [vmem:[%s259 + $0x330] sm:$0xff]
                %364 = vst [vmem:[%s260 + $0x198] sm:$0xff] %v363
                %v365 = vld [vmem:[%s259 + $0x340] sm:$0xff]
                %366 = vst [vmem:[%s260 + $0x1a0] sm:$0xff] %v365
                %v367 = vld [vmem:[%s259 + $0x350] sm:$0xff]
                %368 = vst [vmem:[%s260 + $0x1a8] sm:$0xff] %v367
                %v369 = vld [vmem:[%s259 + $0x360] sm:$0xff]
                %370 = vst [vmem:[%s260 + $0x1b0] sm:$0xff] %v369
                %v371 = vld [vmem:[%s259 + $0x370] sm:$0xff]
                %372 = vst [vmem:[%s260 + $0x1b8] sm:$0xff] %v371
                %v373 = vld [vmem:[%s259 + $0x380] sm:$0xff]
                %374 = vst [vmem:[%s260 + $0x1c0] sm:$0xff] %v373
                %v375 = vld [vmem:[%s259 + $0x390] sm:$0xff]
                %376 = vst [vmem:[%s260 + $0x1c8] sm:$0xff] %v375
                %v377 = vld [vmem:[%s259 + $0x3a0] sm:$0xff]
                %378 = vst [vmem:[%s260 + $0x1d0] sm:$0xff] %v377
                %v379 = vld [vmem:[%s259 + $0x3b0] sm:$0xff]
                %380 = vst [vmem:[%s260 + $0x1d8] sm:$0xff] %v379
                %v381 = vld [vmem:[%s259 + $0x3c0] sm:$0xff]
                %382 = vst [vmem:[%s260 + $0x1e0] sm:$0xff] %v381
                %v383 = vld [vmem:[%s259 + $0x3d0] sm:$0xff]
                %384 = vst [vmem:[%s260 + $0x1e8] sm:$0xff] %v383
                %v385 = vld [vmem:[%s259 + $0x3e0] sm:$0xff]
                %386 = vst [vmem:[%s260 + $0x1f0] sm:$0xff] %v385
                %v387 = vld [vmem:[%s259 + $0x3f0] sm:$0xff]
                %388 = vst [vmem:[%s260 + $0x1f8] sm:$0xff] %v387
              $region45: #{_lambda_.1} parent=39 // loop_footer
                %s258 = sadd.s32 1, %s254
              $region46: #{_lambda_.1} parent=39 // loop_footer_branch
                %253 = sbr.rel target = $region42
              $region47: #{_lambda_.1} parent=39 // loop_exit
                _
            $region40: #{_lambda_.1} parent=31 // pred_fallthru
              _
          $region32: #{_lambda_.1} parent=27 // pred_fallthru
            _
          %529 = vnop
        $region28: #{_lambda_.1} parent=23 // pred_fallthru
          _
        // Predicated region
        $region63: #{_lambda_.1} parent=23 // pred_check
          %p530 = pneg %p80
        $region64: #{_lambda_.1} parent=23 // pred_check_branch
          %532 = sbr.rel (%p530) target = $region66
        $region65: #{_lambda_.1} parent=23 // pred_region
          %s533 = sand.u32 %s70, 1
          %s534 = sand.u32 %s70, 1
          %s535 = smul.addr %s534, 512
          %s536 = scalar_lea.vmem [#allocation3], %s535
          %s537 = smul.u32 2, %s13
          %s538 = smul.addr %s537, 4
          %s539 = scalar_lea.vmem %s2, %s538
          // Predicated region
          $region67: #{_lambda_.1} parent=65 // pred_check
            _
          $region68: #{_lambda_.1} parent=65 // pred_check_branch
            %541 = sbr.rel (0) target = $region70
          $region69: #{_lambda_.1} parent=65 // pred_region
            // Predicated region
            $region71: #{_lambda_.1} parent=69 // pred_check
              _
            $region72: #{_lambda_.1} parent=69 // pred_check_branch
              %543 = sbr.rel (0) target = $region74
            $region73: #{_lambda_.1} parent=69 // pred_region
              // Predicated region
              $region86: #{_lambda_.1} parent=73 // pred_check
                _
              $region87: #{_lambda_.1} parent=73 // pred_check_branch
                %684 = sbr.rel (0) target = $region89
              $region88: #{_lambda_.1} parent=73 // pred_region
                loop: start=0, step=1, limit=1
                $region90: #{_lambda_.1} parent=88 // loop_pre_header
                  _
                $region91: #{_lambda_.1} parent=88 // loop_header
                  %s686 = sphi 0, %s690
                  %p687 = scmp.ge.s32.totalorder %s686, 1
                  %s691 = sphi %s539, %s539
                  %s692 = sphi %s536, %s536
                $region92: #{_lambda_.1} parent=88 // loop_header_branch
                  %689 = sbr.rel (%p687) target = $region96
                $region93: #{_lambda_.1} parent=88 // loop_body
                  %v693 = vld [vmem:[%s691] sm:$0xff]
                  %694 = vst [vmem:[%s692] sm:$0xff] %v693
                  %v695 = vld [vmem:[%s691 + $0x10] sm:$0xff]
                  %696 = vst [vmem:[%s692 + $0x8] sm:$0xff] %v695
                  %v697 = vld [vmem:[%s691 + $0x20] sm:$0xff]
                  %698 = vst [vmem:[%s692 + $0x10] sm:$0xff] %v697
                  %v699 = vld [vmem:[%s691 + $0x30] sm:$0xff]
                  %700 = vst [vmem:[%s692 + $0x18] sm:$0xff] %v699
                  %v701 = vld [vmem:[%s691 + $0x40] sm:$0xff]
                  %702 = vst [vmem:[%s692 + $0x20] sm:$0xff] %v701
                  %v703 = vld [vmem:[%s691 + $0x50] sm:$0xff]
                  %704 = vst [vmem:[%s692 + $0x28] sm:$0xff] %v703
                  %v705 = vld [vmem:[%s691 + $0x60] sm:$0xff]
                  %706 = vst [vmem:[%s692 + $0x30] sm:$0xff] %v705
                  %v707 = vld [vmem:[%s691 + $0x70] sm:$0xff]
                  %708 = vst [vmem:[%s692 + $0x38] sm:$0xff] %v707
                  %v709 = vld [vmem:[%s691 + $0x80] sm:$0xff]
                  %710 = vst [vmem:[%s692 + $0x40] sm:$0xff] %v709
                  %v711 = vld [vmem:[%s691 + $0x90] sm:$0xff]
                  %712 = vst [vmem:[%s692 + $0x48] sm:$0xff] %v711
                  %v713 = vld [vmem:[%s691 + $0xa0] sm:$0xff]
                  %714 = vst [vmem:[%s692 + $0x50] sm:$0xff] %v713
                  %v715 = vld [vmem:[%s691 + $0xb0] sm:$0xff]
                  %716 = vst [vmem:[%s692 + $0x58] sm:$0xff] %v715
                  %v717 = vld [vmem:[%s691 + $0xc0] sm:$0xff]
                  %718 = vst [vmem:[%s692 + $0x60] sm:$0xff] %v717
                  %v719 = vld [vmem:[%s691 + $0xd0] sm:$0xff]
                  %720 = vst [vmem:[%s692 + $0x68] sm:$0xff] %v719
                  %v721 = vld [vmem:[%s691 + $0xe0] sm:$0xff]
                  %722 = vst [vmem:[%s692 + $0x70] sm:$0xff] %v721
                  %v723 = vld [vmem:[%s691 + $0xf0] sm:$0xff]
                  %724 = vst [vmem:[%s692 + $0x78] sm:$0xff] %v723
                  %v725 = vld [vmem:[%s691 + $0x100] sm:$0xff]
                  %726 = vst [vmem:[%s692 + $0x80] sm:$0xff] %v725
                  %v727 = vld [vmem:[%s691 + $0x110] sm:$0xff]
                  %728 = vst [vmem:[%s692 + $0x88] sm:$0xff] %v727
                  %v729 = vld [vmem:[%s691 + $0x120] sm:$0xff]
                  %730 = vst [vmem:[%s692 + $0x90] sm:$0xff] %v729
                  %v731 = vld [vmem:[%s691 + $0x130] sm:$0xff]
                  %732 = vst [vmem:[%s692 + $0x98] sm:$0xff] %v731
                  %v733 = vld [vmem:[%s691 + $0x140] sm:$0xff]
                  %734 = vst [vmem:[%s692 + $0xa0] sm:$0xff] %v733
                  %v735 = vld [vmem:[%s691 + $0x150] sm:$0xff]
                  %736 = vst [vmem:[%s692 + $0xa8] sm:$0xff] %v735
                  %v737 = vld [vmem:[%s691 + $0x160] sm:$0xff]
                  %738 = vst [vmem:[%s692 + $0xb0] sm:$0xff] %v737
                  %v739 = vld [vmem:[%s691 + $0x170] sm:$0xff]
                  %740 = vst [vmem:[%s692 + $0xb8] sm:$0xff] %v739
                  %v741 = vld [vmem:[%s691 + $0x180] sm:$0xff]
                  %742 = vst [vmem:[%s692 + $0xc0] sm:$0xff] %v741
                  %v743 = vld [vmem:[%s691 + $0x190] sm:$0xff]
                  %744 = vst [vmem:[%s692 + $0xc8] sm:$0xff] %v743
                  %v745 = vld [vmem:[%s691 + $0x1a0] sm:$0xff]
                  %746 = vst [vmem:[%s692 + $0xd0] sm:$0xff] %v745
                  %v747 = vld [vmem:[%s691 + $0x1b0] sm:$0xff]
                  %748 = vst [vmem:[%s692 + $0xd8] sm:$0xff] %v747
                  %v749 = vld [vmem:[%s691 + $0x1c0] sm:$0xff]
                  %750 = vst [vmem:[%s692 + $0xe0] sm:$0xff] %v749
                  %v751 = vld [vmem:[%s691 + $0x1d0] sm:$0xff]
                  %752 = vst [vmem:[%s692 + $0xe8] sm:$0xff] %v751
                  %v753 = vld [vmem:[%s691 + $0x1e0] sm:$0xff]
                  %754 = vst [vmem:[%s692 + $0xf0] sm:$0xff] %v753
                  %v755 = vld [vmem:[%s691 + $0x1f0] sm:$0xff]
                  %756 = vst [vmem:[%s692 + $0xf8] sm:$0xff] %v755
                  %v757 = vld [vmem:[%s691 + $0x200] sm:$0xff]
                  %758 = vst [vmem:[%s692 + $0x100] sm:$0xff] %v757
                  %v759 = vld [vmem:[%s691 + $0x210] sm:$0xff]
                  %760 = vst [vmem:[%s692 + $0x108] sm:$0xff] %v759
                  %v761 = vld [vmem:[%s691 + $0x220] sm:$0xff]
                  %762 = vst [vmem:[%s692 + $0x110] sm:$0xff] %v761
                  %v763 = vld [vmem:[%s691 + $0x230] sm:$0xff]
                  %764 = vst [vmem:[%s692 + $0x118] sm:$0xff] %v763
                  %v765 = vld [vmem:[%s691 + $0x240] sm:$0xff]
                  %766 = vst [vmem:[%s692 + $0x120] sm:$0xff] %v765
                  %v767 = vld [vmem:[%s691 + $0x250] sm:$0xff]
                  %768 = vst [vmem:[%s692 + $0x128] sm:$0xff] %v767
                  %v769 = vld [vmem:[%s691 + $0x260] sm:$0xff]
                  %770 = vst [vmem:[%s692 + $0x130] sm:$0xff] %v769
                  %v771 = vld [vmem:[%s691 + $0x270] sm:$0xff]
                  %772 = vst [vmem:[%s692 + $0x138] sm:$0xff] %v771
                  %v773 = vld [vmem:[%s691 + $0x280] sm:$0xff]
                  %774 = vst [vmem:[%s692 + $0x140] sm:$0xff] %v773
                  %v775 = vld [vmem:[%s691 + $0x290] sm:$0xff]
                  %776 = vst [vmem:[%s692 + $0x148] sm:$0xff] %v775
                  %v777 = vld [vmem:[%s691 + $0x2a0] sm:$0xff]
                  %778 = vst [vmem:[%s692 + $0x150] sm:$0xff] %v777
                  %v779 = vld [vmem:[%s691 + $0x2b0] sm:$0xff]
                  %780 = vst [vmem:[%s692 + $0x158] sm:$0xff] %v779
                  %v781 = vld [vmem:[%s691 + $0x2c0] sm:$0xff]
                  %782 = vst [vmem:[%s692 + $0x160] sm:$0xff] %v781
                  %v783 = vld [vmem:[%s691 + $0x2d0] sm:$0xff]
                  %784 = vst [vmem:[%s692 + $0x168] sm:$0xff] %v783
                  %v785 = vld [vmem:[%s691 + $0x2e0] sm:$0xff]
                  %786 = vst [vmem:[%s692 + $0x170] sm:$0xff] %v785
                  %v787 = vld [vmem:[%s691 + $0x2f0] sm:$0xff]
                  %788 = vst [vmem:[%s692 + $0x178] sm:$0xff] %v787
                  %v789 = vld [vmem:[%s691 + $0x300] sm:$0xff]
                  %790 = vst [vmem:[%s692 + $0x180] sm:$0xff] %v789
                  %v791 = vld [vmem:[%s691 + $0x310] sm:$0xff]
                  %792 = vst [vmem:[%s692 + $0x188] sm:$0xff] %v791
                  %v793 = vld [vmem:[%s691 + $0x320] sm:$0xff]
                  %794 = vst [vmem:[%s692 + $0x190] sm:$0xff] %v793
                  %v795 = vld [vmem:[%s691 + $0x330] sm:$0xff]
                  %796 = vst [vmem:[%s692 + $0x198] sm:$0xff] %v795
                  %v797 = vld [vmem:[%s691 + $0x340] sm:$0xff]
                  %798 = vst [vmem:[%s692 + $0x1a0] sm:$0xff] %v797
                  %v799 = vld [vmem:[%s691 + $0x350] sm:$0xff]
                  %800 = vst [vmem:[%s692 + $0x1a8] sm:$0xff] %v799
                  %v801 = vld [vmem:[%s691 + $0x360] sm:$0xff]
                  %802 = vst [vmem:[%s692 + $0x1b0] sm:$0xff] %v801
                  %v803 = vld [vmem:[%s691 + $0x370] sm:$0xff]
                  %804 = vst [vmem:[%s692 + $0x1b8] sm:$0xff] %v803
                  %v805 = vld [vmem:[%s691 + $0x380] sm:$0xff]
                  %806 = vst [vmem:[%s692 + $0x1c0] sm:$0xff] %v805
                  %v807 = vld [vmem:[%s691 + $0x390] sm:$0xff]
                  %808 = vst [vmem:[%s692 + $0x1c8] sm:$0xff] %v807
                  %v809 = vld [vmem:[%s691 + $0x3a0] sm:$0xff]
                  %810 = vst [vmem:[%s692 + $0x1d0] sm:$0xff] %v809
                  %v811 = vld [vmem:[%s691 + $0x3b0] sm:$0xff]
                  %812 = vst [vmem:[%s692 + $0x1d8] sm:$0xff] %v811
                  %v813 = vld [vmem:[%s691 + $0x3c0] sm:$0xff]
                  %814 = vst [vmem:[%s692 + $0x1e0] sm:$0xff] %v813
                  %v815 = vld [vmem:[%s691 + $0x3d0] sm:$0xff]
                  %816 = vst [vmem:[%s692 + $0x1e8] sm:$0xff] %v815
                  %v817 = vld [vmem:[%s691 + $0x3e0] sm:$0xff]
                  %818 = vst [vmem:[%s692 + $0x1f0] sm:$0xff] %v817
                  %v819 = vld [vmem:[%s691 + $0x3f0] sm:$0xff]
                  %820 = vst [vmem:[%s692 + $0x1f8] sm:$0xff] %v819
                $region94: #{_lambda_.1} parent=88 // loop_footer
                  %s690 = sadd.s32 1, %s686
                $region95: #{_lambda_.1} parent=88 // loop_footer_branch
                  %685 = sbr.rel target = $region91
                $region96: #{_lambda_.1} parent=88 // loop_exit
                  _
              $region89: #{_lambda_.1} parent=73 // pred_fallthru
                _
              // Predicated region
              $region97: #{_lambda_.1} parent=73 // pred_check
                _
              $region98: #{_lambda_.1} parent=73 // pred_check_branch
                %822 = sbr.rel target = $region100
              $region99: #{_lambda_.1} parent=73 // pred_region
                _
              $region100: #{_lambda_.1} parent=73 // pred_fallthru
                _
            $region74: #{_lambda_.1} parent=69 // pred_fallthru
              _
            // Predicated region
            $region75: #{_lambda_.1} parent=69 // pred_check
              _
            $region76: #{_lambda_.1} parent=69 // pred_check_branch
              %545 = sbr.rel target = $region78
            $region77: #{_lambda_.1} parent=69 // pred_region
              loop: start=0, step=1, limit=1
              $region79: #{_lambda_.1} parent=77 // loop_pre_header
                _
              $region80: #{_lambda_.1} parent=77 // loop_header
                %s548 = sphi 0, %s552
                %p549 = scmp.ge.s32.totalorder %s548, 1
                %s553 = sphi %s539, %s539
                %s554 = sphi %s536, %s536
              $region81: #{_lambda_.1} parent=77 // loop_header_branch
                %551 = sbr.rel (%p549) target = $region85
              $region82: #{_lambda_.1} parent=77 // loop_body
                %v555 = vld [vmem:[%s553] sm:$0xff]
                %556 = vst [vmem:[%s554] sm:$0xff] %v555
                %v557 = vld [vmem:[%s553 + $0x10] sm:$0xff]
                %558 = vst [vmem:[%s554 + $0x8] sm:$0xff] %v557
                %v559 = vld [vmem:[%s553 + $0x20] sm:$0xff]
                %560 = vst [vmem:[%s554 + $0x10] sm:$0xff] %v559
                %v561 = vld [vmem:[%s553 + $0x30] sm:$0xff]
                %562 = vst [vmem:[%s554 + $0x18] sm:$0xff] %v561
                %v563 = vld [vmem:[%s553 + $0x40] sm:$0xff]
                %564 = vst [vmem:[%s554 + $0x20] sm:$0xff] %v563
                %v565 = vld [vmem:[%s553 + $0x50] sm:$0xff]
                %566 = vst [vmem:[%s554 + $0x28] sm:$0xff] %v565
                %v567 = vld [vmem:[%s553 + $0x60] sm:$0xff]
                %568 = vst [vmem:[%s554 + $0x30] sm:$0xff] %v567
                %v569 = vld [vmem:[%s553 + $0x70] sm:$0xff]
                %570 = vst [vmem:[%s554 + $0x38] sm:$0xff] %v569
                %v571 = vld [vmem:[%s553 + $0x80] sm:$0xff]
                %572 = vst [vmem:[%s554 + $0x40] sm:$0xff] %v571
                %v573 = vld [vmem:[%s553 + $0x90] sm:$0xff]
                %574 = vst [vmem:[%s554 + $0x48] sm:$0xff] %v573
                %v575 = vld [vmem:[%s553 + $0xa0] sm:$0xff]
                %576 = vst [vmem:[%s554 + $0x50] sm:$0xff] %v575
                %v577 = vld [vmem:[%s553 + $0xb0] sm:$0xff]
                %578 = vst [vmem:[%s554 + $0x58] sm:$0xff] %v577
                %v579 = vld [vmem:[%s553 + $0xc0] sm:$0xff]
                %580 = vst [vmem:[%s554 + $0x60] sm:$0xff] %v579
                %v581 = vld [vmem:[%s553 + $0xd0] sm:$0xff]
                %582 = vst [vmem:[%s554 + $0x68] sm:$0xff] %v581
                %v583 = vld [vmem:[%s553 + $0xe0] sm:$0xff]
                %584 = vst [vmem:[%s554 + $0x70] sm:$0xff] %v583
                %v585 = vld [vmem:[%s553 + $0xf0] sm:$0xff]
                %586 = vst [vmem:[%s554 + $0x78] sm:$0xff] %v585
                %v587 = vld [vmem:[%s553 + $0x100] sm:$0xff]
                %588 = vst [vmem:[%s554 + $0x80] sm:$0xff] %v587
                %v589 = vld [vmem:[%s553 + $0x110] sm:$0xff]
                %590 = vst [vmem:[%s554 + $0x88] sm:$0xff] %v589
                %v591 = vld [vmem:[%s553 + $0x120] sm:$0xff]
                %592 = vst [vmem:[%s554 + $0x90] sm:$0xff] %v591
                %v593 = vld [vmem:[%s553 + $0x130] sm:$0xff]
                %594 = vst [vmem:[%s554 + $0x98] sm:$0xff] %v593
                %v595 = vld [vmem:[%s553 + $0x140] sm:$0xff]
                %596 = vst [vmem:[%s554 + $0xa0] sm:$0xff] %v595
                %v597 = vld [vmem:[%s553 + $0x150] sm:$0xff]
                %598 = vst [vmem:[%s554 + $0xa8] sm:$0xff] %v597
                %v599 = vld [vmem:[%s553 + $0x160] sm:$0xff]
                %600 = vst [vmem:[%s554 + $0xb0] sm:$0xff] %v599
                %v601 = vld [vmem:[%s553 + $0x170] sm:$0xff]
                %602 = vst [vmem:[%s554 + $0xb8] sm:$0xff] %v601
                %v603 = vld [vmem:[%s553 + $0x180] sm:$0xff]
                %604 = vst [vmem:[%s554 + $0xc0] sm:$0xff] %v603
                %v605 = vld [vmem:[%s553 + $0x190] sm:$0xff]
                %606 = vst [vmem:[%s554 + $0xc8] sm:$0xff] %v605
                %v607 = vld [vmem:[%s553 + $0x1a0] sm:$0xff]
                %608 = vst [vmem:[%s554 + $0xd0] sm:$0xff] %v607
                %v609 = vld [vmem:[%s553 + $0x1b0] sm:$0xff]
                %610 = vst [vmem:[%s554 + $0xd8] sm:$0xff] %v609
                %v611 = vld [vmem:[%s553 + $0x1c0] sm:$0xff]
                %612 = vst [vmem:[%s554 + $0xe0] sm:$0xff] %v611
                %v613 = vld [vmem:[%s553 + $0x1d0] sm:$0xff]
                %614 = vst [vmem:[%s554 + $0xe8] sm:$0xff] %v613
                %v615 = vld [vmem:[%s553 + $0x1e0] sm:$0xff]
                %616 = vst [vmem:[%s554 + $0xf0] sm:$0xff] %v615
                %v617 = vld [vmem:[%s553 + $0x1f0] sm:$0xff]
                %618 = vst [vmem:[%s554 + $0xf8] sm:$0xff] %v617
                %v619 = vld [vmem:[%s553 + $0x200] sm:$0xff]
                %620 = vst [vmem:[%s554 + $0x100] sm:$0xff] %v619
                %v621 = vld [vmem:[%s553 + $0x210] sm:$0xff]
                %622 = vst [vmem:[%s554 + $0x108] sm:$0xff] %v621
                %v623 = vld [vmem:[%s553 + $0x220] sm:$0xff]
                %624 = vst [vmem:[%s554 + $0x110] sm:$0xff] %v623
                %v625 = vld [vmem:[%s553 + $0x230] sm:$0xff]
                %626 = vst [vmem:[%s554 + $0x118] sm:$0xff] %v625
                %v627 = vld [vmem:[%s553 + $0x240] sm:$0xff]
                %628 = vst [vmem:[%s554 + $0x120] sm:$0xff] %v627
                %v629 = vld [vmem:[%s553 + $0x250] sm:$0xff]
                %630 = vst [vmem:[%s554 + $0x128] sm:$0xff] %v629
                %v631 = vld [vmem:[%s553 + $0x260] sm:$0xff]
                %632 = vst [vmem:[%s554 + $0x130] sm:$0xff] %v631
                %v633 = vld [vmem:[%s553 + $0x270] sm:$0xff]
                %634 = vst [vmem:[%s554 + $0x138] sm:$0xff] %v633
                %v635 = vld [vmem:[%s553 + $0x280] sm:$0xff]
                %636 = vst [vmem:[%s554 + $0x140] sm:$0xff] %v635
                %v637 = vld [vmem:[%s553 + $0x290] sm:$0xff]
                %638 = vst [vmem:[%s554 + $0x148] sm:$0xff] %v637
                %v639 = vld [vmem:[%s553 + $0x2a0] sm:$0xff]
                %640 = vst [vmem:[%s554 + $0x150] sm:$0xff] %v639
                %v641 = vld [vmem:[%s553 + $0x2b0] sm:$0xff]
                %642 = vst [vmem:[%s554 + $0x158] sm:$0xff] %v641
                %v643 = vld [vmem:[%s553 + $0x2c0] sm:$0xff]
                %644 = vst [vmem:[%s554 + $0x160] sm:$0xff] %v643
                %v645 = vld [vmem:[%s553 + $0x2d0] sm:$0xff]
                %646 = vst [vmem:[%s554 + $0x168] sm:$0xff] %v645
                %v647 = vld [vmem:[%s553 + $0x2e0] sm:$0xff]
                %648 = vst [vmem:[%s554 + $0x170] sm:$0xff] %v647
                %v649 = vld [vmem:[%s553 + $0x2f0] sm:$0xff]
                %650 = vst [vmem:[%s554 + $0x178] sm:$0xff] %v649
                %v651 = vld [vmem:[%s553 + $0x300] sm:$0xff]
                %652 = vst [vmem:[%s554 + $0x180] sm:$0xff] %v651
                %v653 = vld [vmem:[%s553 + $0x310] sm:$0xff]
                %654 = vst [vmem:[%s554 + $0x188] sm:$0xff] %v653
                %v655 = vld [vmem:[%s553 + $0x320] sm:$0xff]
                %656 = vst [vmem:[%s554 + $0x190] sm:$0xff] %v655
                %v657 = vld [vmem:[%s553 + $0x330] sm:$0xff]
                %658 = vst [vmem:[%s554 + $0x198] sm:$0xff] %v657
                %v659 = vld [vmem:[%s553 + $0x340] sm:$0xff]
                %660 = vst [vmem:[%s554 + $0x1a0] sm:$0xff] %v659
                %v661 = vld [vmem:[%s553 + $0x350] sm:$0xff]
                %662 = vst [vmem:[%s554 + $0x1a8] sm:$0xff] %v661
                %v663 = vld [vmem:[%s553 + $0x360] sm:$0xff]
                %664 = vst [vmem:[%s554 + $0x1b0] sm:$0xff] %v663
                %v665 = vld [vmem:[%s553 + $0x370] sm:$0xff]
                %666 = vst [vmem:[%s554 + $0x1b8] sm:$0xff] %v665
                %v667 = vld [vmem:[%s553 + $0x380] sm:$0xff]
                %668 = vst [vmem:[%s554 + $0x1c0] sm:$0xff] %v667
                %v669 = vld [vmem:[%s553 + $0x390] sm:$0xff]
                %670 = vst [vmem:[%s554 + $0x1c8] sm:$0xff] %v669
                %v671 = vld [vmem:[%s553 + $0x3a0] sm:$0xff]
                %672 = vst [vmem:[%s554 + $0x1d0] sm:$0xff] %v671
                %v673 = vld [vmem:[%s553 + $0x3b0] sm:$0xff]
                %674 = vst [vmem:[%s554 + $0x1d8] sm:$0xff] %v673
                %v675 = vld [vmem:[%s553 + $0x3c0] sm:$0xff]
                %676 = vst [vmem:[%s554 + $0x1e0] sm:$0xff] %v675
                %v677 = vld [vmem:[%s553 + $0x3d0] sm:$0xff]
                %678 = vst [vmem:[%s554 + $0x1e8] sm:$0xff] %v677
                %v679 = vld [vmem:[%s553 + $0x3e0] sm:$0xff]
                %680 = vst [vmem:[%s554 + $0x1f0] sm:$0xff] %v679
                %v681 = vld [vmem:[%s553 + $0x3f0] sm:$0xff]
                %682 = vst [vmem:[%s554 + $0x1f8] sm:$0xff] %v681
              $region83: #{_lambda_.1} parent=77 // loop_footer
                %s552 = sadd.s32 1, %s548
              $region84: #{_lambda_.1} parent=77 // loop_footer_branch
                %547 = sbr.rel target = $region80
              $region85: #{_lambda_.1} parent=77 // loop_exit
                _
            $region78: #{_lambda_.1} parent=69 // pred_fallthru
              _
          $region70: #{_lambda_.1} parent=65 // pred_fallthru
            _
          %823 = vnop
        $region66: #{_lambda_.1} parent=23 // pred_fallthru
          _
        // Predicated region
        $region101: #{_lambda_.1} parent=23 // pred_check
          %p824 = pneg %p106
        $region102: #{_lambda_.1} parent=23 // pred_check_branch
          %826 = sbr.rel (%p824) target = $region104
        $region103: #{_lambda_.1} parent=23 // pred_region
          %s827 = sand.u32 %s96, 1
          %s828 = sand.u32 %s96, 1
          %s829 = smul.addr %s828, 512
          %s830 = scalar_lea.vmem [#allocation4], %s829
          %s831 = smul.u32 2, %s13
          %s832 = smul.addr %s831, 4
          %s833 = scalar_lea.vmem %s3, %s832
          // Predicated region
          $region105: #{_lambda_.1} parent=103 // pred_check
            _
          $region106: #{_lambda_.1} parent=103 // pred_check_branch
            %835 = sbr.rel (0) target = $region108
          $region107: #{_lambda_.1} parent=103 // pred_region
            // Predicated region
            $region109: #{_lambda_.1} parent=107 // pred_check
              _
            $region110: #{_lambda_.1} parent=107 // pred_check_branch
              %837 = sbr.rel (0) target = $region112
            $region111: #{_lambda_.1} parent=107 // pred_region
              // Predicated region
              $region124: #{_lambda_.1} parent=111 // pred_check
                _
              $region125: #{_lambda_.1} parent=111 // pred_check_branch
                %978 = sbr.rel (0) target = $region127
              $region126: #{_lambda_.1} parent=111 // pred_region
                loop: start=0, step=1, limit=1
                $region128: #{_lambda_.1} parent=126 // loop_pre_header
                  _
                $region129: #{_lambda_.1} parent=126 // loop_header
                  %s980 = sphi 0, %s984
                  %p981 = scmp.ge.s32.totalorder %s980, 1
                  %s985 = sphi %s833, %s833
                  %s986 = sphi %s830, %s830
                $region130: #{_lambda_.1} parent=126 // loop_header_branch
                  %983 = sbr.rel (%p981) target = $region134
                $region131: #{_lambda_.1} parent=126 // loop_body
                  %v987 = vld [vmem:[%s985] sm:$0xff]
                  %988 = vst [vmem:[%s986] sm:$0xff] %v987
                  %v989 = vld [vmem:[%s985 + $0x10] sm:$0xff]
                  %990 = vst [vmem:[%s986 + $0x8] sm:$0xff] %v989
                  %v991 = vld [vmem:[%s985 + $0x20] sm:$0xff]
                  %992 = vst [vmem:[%s986 + $0x10] sm:$0xff] %v991
                  %v993 = vld [vmem:[%s985 + $0x30] sm:$0xff]
                  %994 = vst [vmem:[%s986 + $0x18] sm:$0xff] %v993
                  %v995 = vld [vmem:[%s985 + $0x40] sm:$0xff]
                  %996 = vst [vmem:[%s986 + $0x20] sm:$0xff] %v995
                  %v997 = vld [vmem:[%s985 + $0x50] sm:$0xff]
                  %998 = vst [vmem:[%s986 + $0x28] sm:$0xff] %v997
                  %v999 = vld [vmem:[%s985 + $0x60] sm:$0xff]
                  %1000 = vst [vmem:[%s986 + $0x30] sm:$0xff] %v999
                  %v1001 = vld [vmem:[%s985 + $0x70] sm:$0xff]
                  %1002 = vst [vmem:[%s986 + $0x38] sm:$0xff] %v1001
                  %v1003 = vld [vmem:[%s985 + $0x80] sm:$0xff]
                  %1004 = vst [vmem:[%s986 + $0x40] sm:$0xff] %v1003
                  %v1005 = vld [vmem:[%s985 + $0x90] sm:$0xff]
                  %1006 = vst [vmem:[%s986 + $0x48] sm:$0xff] %v1005
                  %v1007 = vld [vmem:[%s985 + $0xa0] sm:$0xff]
                  %1008 = vst [vmem:[%s986 + $0x50] sm:$0xff] %v1007
                  %v1009 = vld [vmem:[%s985 + $0xb0] sm:$0xff]
                  %1010 = vst [vmem:[%s986 + $0x58] sm:$0xff] %v1009
                  %v1011 = vld [vmem:[%s985 + $0xc0] sm:$0xff]
                  %1012 = vst [vmem:[%s986 + $0x60] sm:$0xff] %v1011
                  %v1013 = vld [vmem:[%s985 + $0xd0] sm:$0xff]
                  %1014 = vst [vmem:[%s986 + $0x68] sm:$0xff] %v1013
                  %v1015 = vld [vmem:[%s985 + $0xe0] sm:$0xff]
                  %1016 = vst [vmem:[%s986 + $0x70] sm:$0xff] %v1015
                  %v1017 = vld [vmem:[%s985 + $0xf0] sm:$0xff]
                  %1018 = vst [vmem:[%s986 + $0x78] sm:$0xff] %v1017
                  %v1019 = vld [vmem:[%s985 + $0x100] sm:$0xff]
                  %1020 = vst [vmem:[%s986 + $0x80] sm:$0xff] %v1019
                  %v1021 = vld [vmem:[%s985 + $0x110] sm:$0xff]
                  %1022 = vst [vmem:[%s986 + $0x88] sm:$0xff] %v1021
                  %v1023 = vld [vmem:[%s985 + $0x120] sm:$0xff]
                  %1024 = vst [vmem:[%s986 + $0x90] sm:$0xff] %v1023
                  %v1025 = vld [vmem:[%s985 + $0x130] sm:$0xff]
                  %1026 = vst [vmem:[%s986 + $0x98] sm:$0xff] %v1025
                  %v1027 = vld [vmem:[%s985 + $0x140] sm:$0xff]
                  %1028 = vst [vmem:[%s986 + $0xa0] sm:$0xff] %v1027
                  %v1029 = vld [vmem:[%s985 + $0x150] sm:$0xff]
                  %1030 = vst [vmem:[%s986 + $0xa8] sm:$0xff] %v1029
                  %v1031 = vld [vmem:[%s985 + $0x160] sm:$0xff]
                  %1032 = vst [vmem:[%s986 + $0xb0] sm:$0xff] %v1031
                  %v1033 = vld [vmem:[%s985 + $0x170] sm:$0xff]
                  %1034 = vst [vmem:[%s986 + $0xb8] sm:$0xff] %v1033
                  %v1035 = vld [vmem:[%s985 + $0x180] sm:$0xff]
                  %1036 = vst [vmem:[%s986 + $0xc0] sm:$0xff] %v1035
                  %v1037 = vld [vmem:[%s985 + $0x190] sm:$0xff]
                  %1038 = vst [vmem:[%s986 + $0xc8] sm:$0xff] %v1037
                  %v1039 = vld [vmem:[%s985 + $0x1a0] sm:$0xff]
                  %1040 = vst [vmem:[%s986 + $0xd0] sm:$0xff] %v1039
                  %v1041 = vld [vmem:[%s985 + $0x1b0] sm:$0xff]
                  %1042 = vst [vmem:[%s986 + $0xd8] sm:$0xff] %v1041
                  %v1043 = vld [vmem:[%s985 + $0x1c0] sm:$0xff]
                  %1044 = vst [vmem:[%s986 + $0xe0] sm:$0xff] %v1043
                  %v1045 = vld [vmem:[%s985 + $0x1d0] sm:$0xff]
                  %1046 = vst [vmem:[%s986 + $0xe8] sm:$0xff] %v1045
                  %v1047 = vld [vmem:[%s985 + $0x1e0] sm:$0xff]
                  %1048 = vst [vmem:[%s986 + $0xf0] sm:$0xff] %v1047
                  %v1049 = vld [vmem:[%s985 + $0x1f0] sm:$0xff]
                  %1050 = vst [vmem:[%s986 + $0xf8] sm:$0xff] %v1049
                  %v1051 = vld [vmem:[%s985 + $0x200] sm:$0xff]
                  %1052 = vst [vmem:[%s986 + $0x100] sm:$0xff] %v1051
                  %v1053 = vld [vmem:[%s985 + $0x210] sm:$0xff]
                  %1054 = vst [vmem:[%s986 + $0x108] sm:$0xff] %v1053
                  %v1055 = vld [vmem:[%s985 + $0x220] sm:$0xff]
                  %1056 = vst [vmem:[%s986 + $0x110] sm:$0xff] %v1055
                  %v1057 = vld [vmem:[%s985 + $0x230] sm:$0xff]
                  %1058 = vst [vmem:[%s986 + $0x118] sm:$0xff] %v1057
                  %v1059 = vld [vmem:[%s985 + $0x240] sm:$0xff]
                  %1060 = vst [vmem:[%s986 + $0x120] sm:$0xff] %v1059
                  %v1061 = vld [vmem:[%s985 + $0x250] sm:$0xff]
                  %1062 = vst [vmem:[%s986 + $0x128] sm:$0xff] %v1061
                  %v1063 = vld [vmem:[%s985 + $0x260] sm:$0xff]
                  %1064 = vst [vmem:[%s986 + $0x130] sm:$0xff] %v1063
                  %v1065 = vld [vmem:[%s985 + $0x270] sm:$0xff]
                  %1066 = vst [vmem:[%s986 + $0x138] sm:$0xff] %v1065
                  %v1067 = vld [vmem:[%s985 + $0x280] sm:$0xff]
                  %1068 = vst [vmem:[%s986 + $0x140] sm:$0xff] %v1067
                  %v1069 = vld [vmem:[%s985 + $0x290] sm:$0xff]
                  %1070 = vst [vmem:[%s986 + $0x148] sm:$0xff] %v1069
                  %v1071 = vld [vmem:[%s985 + $0x2a0] sm:$0xff]
                  %1072 = vst [vmem:[%s986 + $0x150] sm:$0xff] %v1071
                  %v1073 = vld [vmem:[%s985 + $0x2b0] sm:$0xff]
                  %1074 = vst [vmem:[%s986 + $0x158] sm:$0xff] %v1073
                  %v1075 = vld [vmem:[%s985 + $0x2c0] sm:$0xff]
                  %1076 = vst [vmem:[%s986 + $0x160] sm:$0xff] %v1075
                  %v1077 = vld [vmem:[%s985 + $0x2d0] sm:$0xff]
                  %1078 = vst [vmem:[%s986 + $0x168] sm:$0xff] %v1077
                  %v1079 = vld [vmem:[%s985 + $0x2e0] sm:$0xff]
                  %1080 = vst [vmem:[%s986 + $0x170] sm:$0xff] %v1079
                  %v1081 = vld [vmem:[%s985 + $0x2f0] sm:$0xff]
                  %1082 = vst [vmem:[%s986 + $0x178] sm:$0xff] %v1081
                  %v1083 = vld [vmem:[%s985 + $0x300] sm:$0xff]
                  %1084 = vst [vmem:[%s986 + $0x180] sm:$0xff] %v1083
                  %v1085 = vld [vmem:[%s985 + $0x310] sm:$0xff]
                  %1086 = vst [vmem:[%s986 + $0x188] sm:$0xff] %v1085
                  %v1087 = vld [vmem:[%s985 + $0x320] sm:$0xff]
                  %1088 = vst [vmem:[%s986 + $0x190] sm:$0xff] %v1087
                  %v1089 = vld [vmem:[%s985 + $0x330] sm:$0xff]
                  %1090 = vst [vmem:[%s986 + $0x198] sm:$0xff] %v1089
                  %v1091 = vld [vmem:[%s985 + $0x340] sm:$0xff]
                  %1092 = vst [vmem:[%s986 + $0x1a0] sm:$0xff] %v1091
                  %v1093 = vld [vmem:[%s985 + $0x350] sm:$0xff]
                  %1094 = vst [vmem:[%s986 + $0x1a8] sm:$0xff] %v1093
                  %v1095 = vld [vmem:[%s985 + $0x360] sm:$0xff]
                  %1096 = vst [vmem:[%s986 + $0x1b0] sm:$0xff] %v1095
                  %v1097 = vld [vmem:[%s985 + $0x370] sm:$0xff]
                  %1098 = vst [vmem:[%s986 + $0x1b8] sm:$0xff] %v1097
                  %v1099 = vld [vmem:[%s985 + $0x380] sm:$0xff]
                  %1100 = vst [vmem:[%s986 + $0x1c0] sm:$0xff] %v1099
                  %v1101 = vld [vmem:[%s985 + $0x390] sm:$0xff]
                  %1102 = vst [vmem:[%s986 + $0x1c8] sm:$0xff] %v1101
                  %v1103 = vld [vmem:[%s985 + $0x3a0] sm:$0xff]
                  %1104 = vst [vmem:[%s986 + $0x1d0] sm:$0xff] %v1103
                  %v1105 = vld [vmem:[%s985 + $0x3b0] sm:$0xff]
                  %1106 = vst [vmem:[%s986 + $0x1d8] sm:$0xff] %v1105
                  %v1107 = vld [vmem:[%s985 + $0x3c0] sm:$0xff]
                  %1108 = vst [vmem:[%s986 + $0x1e0] sm:$0xff] %v1107
                  %v1109 = vld [vmem:[%s985 + $0x3d0] sm:$0xff]
                  %1110 = vst [vmem:[%s986 + $0x1e8] sm:$0xff] %v1109
                  %v1111 = vld [vmem:[%s985 + $0x3e0] sm:$0xff]
                  %1112 = vst [vmem:[%s986 + $0x1f0] sm:$0xff] %v1111
                  %v1113 = vld [vmem:[%s985 + $0x3f0] sm:$0xff]
                  %1114 = vst [vmem:[%s986 + $0x1f8] sm:$0xff] %v1113
                $region132: #{_lambda_.1} parent=126 // loop_footer
                  %s984 = sadd.s32 1, %s980
                $region133: #{_lambda_.1} parent=126 // loop_footer_branch
                  %979 = sbr.rel target = $region129
                $region134: #{_lambda_.1} parent=126 // loop_exit
                  _
              $region127: #{_lambda_.1} parent=111 // pred_fallthru
                _
              // Predicated region
              $region135: #{_lambda_.1} parent=111 // pred_check
                _
              $region136: #{_lambda_.1} parent=111 // pred_check_branch
                %1116 = sbr.rel target = $region138
              $region137: #{_lambda_.1} parent=111 // pred_region
                _
              $region138: #{_lambda_.1} parent=111 // pred_fallthru
                _
            $region112: #{_lambda_.1} parent=107 // pred_fallthru
              _
            // Predicated region
            $region113: #{_lambda_.1} parent=107 // pred_check
              _
            $region114: #{_lambda_.1} parent=107 // pred_check_branch
              %839 = sbr.rel target = $region116
            $region115: #{_lambda_.1} parent=107 // pred_region
              loop: start=0, step=1, limit=1
              $region117: #{_lambda_.1} parent=115 // loop_pre_header
                _
              $region118: #{_lambda_.1} parent=115 // loop_header
                %s842 = sphi 0, %s846
                %p843 = scmp.ge.s32.totalorder %s842, 1
                %s847 = sphi %s833, %s833
                %s848 = sphi %s830, %s830
              $region119: #{_lambda_.1} parent=115 // loop_header_branch
                %845 = sbr.rel (%p843) target = $region123
              $region120: #{_lambda_.1} parent=115 // loop_body
                %v849 = vld [vmem:[%s847] sm:$0xff]
                %850 = vst [vmem:[%s848] sm:$0xff] %v849
                %v851 = vld [vmem:[%s847 + $0x10] sm:$0xff]
                %852 = vst [vmem:[%s848 + $0x8] sm:$0xff] %v851
                %v853 = vld [vmem:[%s847 + $0x20] sm:$0xff]
                %854 = vst [vmem:[%s848 + $0x10] sm:$0xff] %v853
                %v855 = vld [vmem:[%s847 + $0x30] sm:$0xff]
                %856 = vst [vmem:[%s848 + $0x18] sm:$0xff] %v855
                %v857 = vld [vmem:[%s847 + $0x40] sm:$0xff]
                %858 = vst [vmem:[%s848 + $0x20] sm:$0xff] %v857
                %v859 = vld [vmem:[%s847 + $0x50] sm:$0xff]
                %860 = vst [vmem:[%s848 + $0x28] sm:$0xff] %v859
                %v861 = vld [vmem:[%s847 + $0x60] sm:$0xff]
                %862 = vst [vmem:[%s848 + $0x30] sm:$0xff] %v861
                %v863 = vld [vmem:[%s847 + $0x70] sm:$0xff]
                %864 = vst [vmem:[%s848 + $0x38] sm:$0xff] %v863
                %v865 = vld [vmem:[%s847 + $0x80] sm:$0xff]
                %866 = vst [vmem:[%s848 + $0x40] sm:$0xff] %v865
                %v867 = vld [vmem:[%s847 + $0x90] sm:$0xff]
                %868 = vst [vmem:[%s848 + $0x48] sm:$0xff] %v867
                %v869 = vld [vmem:[%s847 + $0xa0] sm:$0xff]
                %870 = vst [vmem:[%s848 + $0x50] sm:$0xff] %v869
                %v871 = vld [vmem:[%s847 + $0xb0] sm:$0xff]
                %872 = vst [vmem:[%s848 + $0x58] sm:$0xff] %v871
                %v873 = vld [vmem:[%s847 + $0xc0] sm:$0xff]
                %874 = vst [vmem:[%s848 + $0x60] sm:$0xff] %v873
                %v875 = vld [vmem:[%s847 + $0xd0] sm:$0xff]
                %876 = vst [vmem:[%s848 + $0x68] sm:$0xff] %v875
                %v877 = vld [vmem:[%s847 + $0xe0] sm:$0xff]
                %878 = vst [vmem:[%s848 + $0x70] sm:$0xff] %v877
                %v879 = vld [vmem:[%s847 + $0xf0] sm:$0xff]
                %880 = vst [vmem:[%s848 + $0x78] sm:$0xff] %v879
                %v881 = vld [vmem:[%s847 + $0x100] sm:$0xff]
                %882 = vst [vmem:[%s848 + $0x80] sm:$0xff] %v881
                %v883 = vld [vmem:[%s847 + $0x110] sm:$0xff]
                %884 = vst [vmem:[%s848 + $0x88] sm:$0xff] %v883
                %v885 = vld [vmem:[%s847 + $0x120] sm:$0xff]
                %886 = vst [vmem:[%s848 + $0x90] sm:$0xff] %v885
                %v887 = vld [vmem:[%s847 + $0x130] sm:$0xff]
                %888 = vst [vmem:[%s848 + $0x98] sm:$0xff] %v887
                %v889 = vld [vmem:[%s847 + $0x140] sm:$0xff]
                %890 = vst [vmem:[%s848 + $0xa0] sm:$0xff] %v889
                %v891 = vld [vmem:[%s847 + $0x150] sm:$0xff]
                %892 = vst [vmem:[%s848 + $0xa8] sm:$0xff] %v891
                %v893 = vld [vmem:[%s847 + $0x160] sm:$0xff]
                %894 = vst [vmem:[%s848 + $0xb0] sm:$0xff] %v893
                %v895 = vld [vmem:[%s847 + $0x170] sm:$0xff]
                %896 = vst [vmem:[%s848 + $0xb8] sm:$0xff] %v895
                %v897 = vld [vmem:[%s847 + $0x180] sm:$0xff]
                %898 = vst [vmem:[%s848 + $0xc0] sm:$0xff] %v897
                %v899 = vld [vmem:[%s847 + $0x190] sm:$0xff]
                %900 = vst [vmem:[%s848 + $0xc8] sm:$0xff] %v899
                %v901 = vld [vmem:[%s847 + $0x1a0] sm:$0xff]
                %902 = vst [vmem:[%s848 + $0xd0] sm:$0xff] %v901
                %v903 = vld [vmem:[%s847 + $0x1b0] sm:$0xff]
                %904 = vst [vmem:[%s848 + $0xd8] sm:$0xff] %v903
                %v905 = vld [vmem:[%s847 + $0x1c0] sm:$0xff]
                %906 = vst [vmem:[%s848 + $0xe0] sm:$0xff] %v905
                %v907 = vld [vmem:[%s847 + $0x1d0] sm:$0xff]
                %908 = vst [vmem:[%s848 + $0xe8] sm:$0xff] %v907
                %v909 = vld [vmem:[%s847 + $0x1e0] sm:$0xff]
                %910 = vst [vmem:[%s848 + $0xf0] sm:$0xff] %v909
                %v911 = vld [vmem:[%s847 + $0x1f0] sm:$0xff]
                %912 = vst [vmem:[%s848 + $0xf8] sm:$0xff] %v911
                %v913 = vld [vmem:[%s847 + $0x200] sm:$0xff]
                %914 = vst [vmem:[%s848 + $0x100] sm:$0xff] %v913
                %v915 = vld [vmem:[%s847 + $0x210] sm:$0xff]
                %916 = vst [vmem:[%s848 + $0x108] sm:$0xff] %v915
                %v917 = vld [vmem:[%s847 + $0x220] sm:$0xff]
                %918 = vst [vmem:[%s848 + $0x110] sm:$0xff] %v917
                %v919 = vld [vmem:[%s847 + $0x230] sm:$0xff]
                %920 = vst [vmem:[%s848 + $0x118] sm:$0xff] %v919
                %v921 = vld [vmem:[%s847 + $0x240] sm:$0xff]
                %922 = vst [vmem:[%s848 + $0x120] sm:$0xff] %v921
                %v923 = vld [vmem:[%s847 + $0x250] sm:$0xff]
                %924 = vst [vmem:[%s848 + $0x128] sm:$0xff] %v923
                %v925 = vld [vmem:[%s847 + $0x260] sm:$0xff]
                %926 = vst [vmem:[%s848 + $0x130] sm:$0xff] %v925
                %v927 = vld [vmem:[%s847 + $0x270] sm:$0xff]
                %928 = vst [vmem:[%s848 + $0x138] sm:$0xff] %v927
                %v929 = vld [vmem:[%s847 + $0x280] sm:$0xff]
                %930 = vst [vmem:[%s848 + $0x140] sm:$0xff] %v929
                %v931 = vld [vmem:[%s847 + $0x290] sm:$0xff]
                %932 = vst [vmem:[%s848 + $0x148] sm:$0xff] %v931
                %v933 = vld [vmem:[%s847 + $0x2a0] sm:$0xff]
                %934 = vst [vmem:[%s848 + $0x150] sm:$0xff] %v933
                %v935 = vld [vmem:[%s847 + $0x2b0] sm:$0xff]
                %936 = vst [vmem:[%s848 + $0x158] sm:$0xff] %v935
                %v937 = vld [vmem:[%s847 + $0x2c0] sm:$0xff]
                %938 = vst [vmem:[%s848 + $0x160] sm:$0xff] %v937
                %v939 = vld [vmem:[%s847 + $0x2d0] sm:$0xff]
                %940 = vst [vmem:[%s848 + $0x168] sm:$0xff] %v939
                %v941 = vld [vmem:[%s847 + $0x2e0] sm:$0xff]
                %942 = vst [vmem:[%s848 + $0x170] sm:$0xff] %v941
                %v943 = vld [vmem:[%s847 + $0x2f0] sm:$0xff]
                %944 = vst [vmem:[%s848 + $0x178] sm:$0xff] %v943
                %v945 = vld [vmem:[%s847 + $0x300] sm:$0xff]
                %946 = vst [vmem:[%s848 + $0x180] sm:$0xff] %v945
                %v947 = vld [vmem:[%s847 + $0x310] sm:$0xff]
                %948 = vst [vmem:[%s848 + $0x188] sm:$0xff] %v947
                %v949 = vld [vmem:[%s847 + $0x320] sm:$0xff]
                %950 = vst [vmem:[%s848 + $0x190] sm:$0xff] %v949
                %v951 = vld [vmem:[%s847 + $0x330] sm:$0xff]
                %952 = vst [vmem:[%s848 + $0x198] sm:$0xff] %v951
                %v953 = vld [vmem:[%s847 + $0x340] sm:$0xff]
                %954 = vst [vmem:[%s848 + $0x1a0] sm:$0xff] %v953
                %v955 = vld [vmem:[%s847 + $0x350] sm:$0xff]
                %956 = vst [vmem:[%s848 + $0x1a8] sm:$0xff] %v955
                %v957 = vld [vmem:[%s847 + $0x360] sm:$0xff]
                %958 = vst [vmem:[%s848 + $0x1b0] sm:$0xff] %v957
                %v959 = vld [vmem:[%s847 + $0x370] sm:$0xff]
                %960 = vst [vmem:[%s848 + $0x1b8] sm:$0xff] %v959
                %v961 = vld [vmem:[%s847 + $0x380] sm:$0xff]
                %962 = vst [vmem:[%s848 + $0x1c0] sm:$0xff] %v961
                %v963 = vld [vmem:[%s847 + $0x390] sm:$0xff]
                %964 = vst [vmem:[%s848 + $0x1c8] sm:$0xff] %v963
                %v965 = vld [vmem:[%s847 + $0x3a0] sm:$0xff]
                %966 = vst [vmem:[%s848 + $0x1d0] sm:$0xff] %v965
                %v967 = vld [vmem:[%s847 + $0x3b0] sm:$0xff]
                %968 = vst [vmem:[%s848 + $0x1d8] sm:$0xff] %v967
                %v969 = vld [vmem:[%s847 + $0x3c0] sm:$0xff]
                %970 = vst [vmem:[%s848 + $0x1e0] sm:$0xff] %v969
                %v971 = vld [vmem:[%s847 + $0x3d0] sm:$0xff]
                %972 = vst [vmem:[%s848 + $0x1e8] sm:$0xff] %v971
                %v973 = vld [vmem:[%s847 + $0x3e0] sm:$0xff]
                %974 = vst [vmem:[%s848 + $0x1f0] sm:$0xff] %v973
                %v975 = vld [vmem:[%s847 + $0x3f0] sm:$0xff]
                %976 = vst [vmem:[%s848 + $0x1f8] sm:$0xff] %v975
              $region121: #{_lambda_.1} parent=115 // loop_footer
                %s846 = sadd.s32 1, %s842
              $region122: #{_lambda_.1} parent=115 // loop_footer_branch
                %841 = sbr.rel target = $region118
              $region123: #{_lambda_.1} parent=115 // loop_exit
                _
            $region116: #{_lambda_.1} parent=107 // pred_fallthru
              _
          $region108: #{_lambda_.1} parent=103 // pred_fallthru
            _
          %1117 = vnop
        $region104: #{_lambda_.1} parent=23 // pred_fallthru
          _
        // Predicated region
        $region139: #{_lambda_.1} parent=23 // pred_check
          %p1118 = pneg %p132
        $region140: #{_lambda_.1} parent=23 // pred_check_branch
          %1120 = sbr.rel (%p1118) target = $region142
        $region141: #{_lambda_.1} parent=23 // pred_region
          %s1121 = smul.u32 2, %s13
          %p1122 = scmp.lt.s32.totalorder %s1121, 3
          %s1123 = scalar_select %p1122, %s1121, 3
          %s1124 = smul.addr %s1123, 4
          %s1125 = scalar_lea.vmem %s4, %s1124
          %s1126 = smul.u32 2, %s13
        $region142: #{_lambda_.1} parent=23 // pred_fallthru
          _
        // Predicated region
        $region143: #{_lambda_.1} parent=23 // pred_check
          %p1127 = pneg %p158
        $region144: #{_lambda_.1} parent=23 // pred_check_branch
          %1129 = sbr.rel (%p1127) target = $region146
        $region145: #{_lambda_.1} parent=23 // pred_region
          %s1130 = sand.u32 %s148, 1
          %s1131 = sand.u32 %s148, 1
          %s1132 = smul.addr %s1131, 128
          %s1133 = scalar_lea.vmem [#allocation5], %s1132
          %s1134 = smul.u32 2, %s13
          %s1135 = smul.addr %s1134, 8
          %s1136 = scalar_lea.vmem %s5, %s1135
          // Predicated region
          $region147: #{_lambda_.1} parent=145 // pred_check
            _
          $region148: #{_lambda_.1} parent=145 // pred_check_branch
            %1138 = sbr.rel (0) target = $region150
          $region149: #{_lambda_.1} parent=145 // pred_region
            // Predicated region
            $region151: #{_lambda_.1} parent=149 // pred_check
              _
            $region152: #{_lambda_.1} parent=149 // pred_check_branch
              %1140 = sbr.rel (0) target = $region154
            $region153: #{_lambda_.1} parent=149 // pred_region
              loop: start=0, step=1, limit=1
              $region155: #{_lambda_.1} parent=153 // loop_pre_header
                _
              $region156: #{_lambda_.1} parent=153 // loop_header
                %s1142 = sphi 0, %s1146
                %p1143 = scmp.ge.s32.totalorder %s1142, 1
                %s1147 = sphi %s1136, %s1136
                %s1148 = sphi %s1133, %s1133
              $region157: #{_lambda_.1} parent=153 // loop_header_branch
                %1145 = sbr.rel (%p1143) target = $region161
              $region158: #{_lambda_.1} parent=153 // loop_body
                %v1149 = vld [vmem:[%s1147] sm:$0xff]
                %1150 = vst [vmem:[%s1148] sm:$0xff] %v1149
                %v1151 = vld [vmem:[%s1147 + $0x8] sm:$0xff]
                %1152 = vst [vmem:[%s1148 + $0x8] sm:$0xff] %v1151
                %v1153 = vld [vmem:[%s1147 + $0x20] sm:$0xff]
                %1154 = vst [vmem:[%s1148 + $0x10] sm:$0xff] %v1153
                %v1155 = vld [vmem:[%s1147 + $0x28] sm:$0xff]
                %1156 = vst [vmem:[%s1148 + $0x18] sm:$0xff] %v1155
                %v1157 = vld [vmem:[%s1147 + $0x40] sm:$0xff]
                %1158 = vst [vmem:[%s1148 + $0x20] sm:$0xff] %v1157
                %v1159 = vld [vmem:[%s1147 + $0x48] sm:$0xff]
                %1160 = vst [vmem:[%s1148 + $0x28] sm:$0xff] %v1159
                %v1161 = vld [vmem:[%s1147 + $0x60] sm:$0xff]
                %1162 = vst [vmem:[%s1148 + $0x30] sm:$0xff] %v1161
                %v1163 = vld [vmem:[%s1147 + $0x68] sm:$0xff]
                %1164 = vst [vmem:[%s1148 + $0x38] sm:$0xff] %v1163
                %v1165 = vld [vmem:[%s1147 + $0x80] sm:$0xff]
                %1166 = vst [vmem:[%s1148 + $0x40] sm:$0xff] %v1165
                %v1167 = vld [vmem:[%s1147 + $0x88] sm:$0xff]
                %1168 = vst [vmem:[%s1148 + $0x48] sm:$0xff] %v1167
                %v1169 = vld [vmem:[%s1147 + $0xa0] sm:$0xff]
                %1170 = vst [vmem:[%s1148 + $0x50] sm:$0xff] %v1169
                %v1171 = vld [vmem:[%s1147 + $0xa8] sm:$0xff]
                %1172 = vst [vmem:[%s1148 + $0x58] sm:$0xff] %v1171
                %v1173 = vld [vmem:[%s1147 + $0xc0] sm:$0xff]
                %1174 = vst [vmem:[%s1148 + $0x60] sm:$0xff] %v1173
                %v1175 = vld [vmem:[%s1147 + $0xc8] sm:$0xff]
                %1176 = vst [vmem:[%s1148 + $0x68] sm:$0xff] %v1175
                %v1177 = vld [vmem:[%s1147 + $0xe0] sm:$0xff]
                %1178 = vst [vmem:[%s1148 + $0x70] sm:$0xff] %v1177
                %v1179 = vld [vmem:[%s1147 + $0xe8] sm:$0xff]
                %1180 = vst [vmem:[%s1148 + $0x78] sm:$0xff] %v1179
              $region159: #{_lambda_.1} parent=153 // loop_footer
                %s1146 = sadd.s32 1, %s1142
              $region160: #{_lambda_.1} parent=153 // loop_footer_branch
                %1141 = sbr.rel target = $region156
              $region161: #{_lambda_.1} parent=153 // loop_exit
                _
            $region154: #{_lambda_.1} parent=149 // pred_fallthru
              _
            // Predicated region
            $region162: #{_lambda_.1} parent=149 // pred_check
              _
            $region163: #{_lambda_.1} parent=149 // pred_check_branch
              %1182 = sbr.rel target = $region165
            $region164: #{_lambda_.1} parent=149 // pred_region
              _
            $region165: #{_lambda_.1} parent=149 // pred_fallthru
              _
          $region150: #{_lambda_.1} parent=145 // pred_fallthru
            _
          %1183 = vnop
        $region146: #{_lambda_.1} parent=23 // pred_fallthru
          _
      $region24: #{_lambda_.1} parent=5 // pred_fallthru
        _
      %p1184 = scmp.le.s32.totalorder 1, %s13
      %p1185 = scmp.lt.s32.totalorder %s13, 3
      %p1186 = pnand %p1184, %p1185
      %p1187 = pneg %p1186
      // Predicated region
      $region166: #{_lambda_.1} parent=5 // pred_check
        _
      $region167: #{_lambda_.1} parent=5 // pred_check_branch
        %1189 = sbr.rel (%p1186) target = $region169
      $region168: #{_lambda_.1} parent=5 // pred_region
        %s1190 = ssub.s32 %s13, 1
        %s1191 = sand.u32 %s47, 1
        %s1192 = sand.u32 %s47, 1
        %s1193 = smul.addr %s1192, 512
        %s1194 = scalar_lea.vmem [#allocation2], %s1193
        // Predicated region
        $region170: #{_lambda_.1} parent=168 // pred_check
          %p1195 = pneg %p60
        $region171: #{_lambda_.1} parent=168 // pred_check_branch
          %1197 = sbr.rel (%p1195) target = $region173
        $region172: #{_lambda_.1} parent=168 // pred_region
          _
        $region173: #{_lambda_.1} parent=168 // pred_fallthru
          _
        %s1198 = sand.u32 %s73, 1
        %s1199 = sand.u32 %s73, 1
        %s1200 = smul.addr %s1199, 512
        %s1201 = scalar_lea.vmem [#allocation3], %s1200
        // Predicated region
        $region174: #{_lambda_.1} parent=168 // pred_check
          %p1202 = pneg %p86
        $region175: #{_lambda_.1} parent=168 // pred_check_branch
          %1204 = sbr.rel (%p1202) target = $region177
        $region176: #{_lambda_.1} parent=168 // pred_region
          _
        $region177: #{_lambda_.1} parent=168 // pred_fallthru
          _
        %s1205 = sand.u32 %s99, 1
        %s1206 = sand.u32 %s99, 1
        %s1207 = smul.addr %s1206, 512
        %s1208 = scalar_lea.vmem [#allocation4], %s1207
        // Predicated region
        $region178: #{_lambda_.1} parent=168 // pred_check
          %p1209 = pneg %p112
        $region179: #{_lambda_.1} parent=168 // pred_check_branch
          %1211 = sbr.rel (%p1209) target = $region181
        $region180: #{_lambda_.1} parent=168 // pred_region
          _
        $region181: #{_lambda_.1} parent=168 // pred_fallthru
          _
        %s1212 = sand.u32 %s151, 1
        %s1213 = sand.u32 %s151, 1
        %s1214 = smul.addr %s1213, 128
        %s1215 = scalar_lea.vmem [#allocation5], %s1214
        // Predicated region
        $region182: #{_lambda_.1} parent=168 // pred_check
          %p1216 = pneg %p164
        $region183: #{_lambda_.1} parent=168 // pred_check_branch
          %1218 = sbr.rel (%p1216) target = $region185
        $region184: #{_lambda_.1} parent=168 // pred_region
          _
        $region185: #{_lambda_.1} parent=168 // pred_fallthru
          _
        %p1219 = pneg %p34
        %p1220 = pneg %p31
        %s1221 = sand.u32 %s47, 1
        %s1222 = sand.u32 %s47, 1
        %s1223 = smul.addr %s1222, 512
        %s1224 = scalar_lea.vmem [#allocation2], %s1223
        %p1225 = pneg %p60
        %p1226 = pneg %p57
        %s1227 = sand.u32 %s73, 1
        %s1228 = sand.u32 %s73, 1
        %s1229 = smul.addr %s1228, 512
        %s1230 = scalar_lea.vmem [#allocation3], %s1229
        %p1231 = pneg %p86
        %p1232 = pneg %p83
        %s1233 = sand.u32 %s99, 1
        %s1234 = sand.u32 %s99, 1
        %s1235 = smul.addr %s1234, 512
        %s1236 = scalar_lea.vmem [#allocation4], %s1235
        %p1237 = pneg %p112
        %p1238 = pneg %p109
        %s1239 = smul.u32 2, %s18
        %p1240 = scmp.lt.s32.totalorder %s1239, 3
        %s1241 = scalar_select %p1240, %s1239, 3
        %s1242 = smul.addr %s1241, 4
        %s1243 = scalar_lea.vmem %s4, %s1242
        %p1244 = pneg %p138
        %p1245 = pneg %p135
        %s1246 = sand.u32 %s151, 1
        %s1247 = sand.u32 %s151, 1
        %s1248 = smul.addr %s1247, 128
        %s1249 = scalar_lea.vmem [#allocation5], %s1248
        %p1250 = pneg %p164
        %p1251 = pneg %p161
        %p1252 = pneg %p185
        %p1253 = pneg %p182
        %p1254 = pneg %p211
        %p1255 = pneg %p208
        %s1256 = sand.u32 %s198, 1
        %s1257 = sand.u32 %s198, 1
        %s1258 = smul.addr %s1257, 16
        %s1259 = scalar_lea.vmem [#allocation6], %s1258
        %s1260 = smul.u32 2, %s18
        %s1261 = smul.u32 2, %s18
        %s1262 = smul.u32 2, %s18
        %s1263 = smul.u32 2, %s18
        %p1264 = scmp.lt.s32.totalorder %s1263, 3
        %s1265 = scalar_select %p1264, %s1263, 3
        %s1266 = smul.addr %s1265, 4
        %s1267 = scalar_lea.vmem %s4, %s1266
        %s1268 = smul.u32 2, %s18
        %s1269 = smul.u32 2, %s18
        %s1270 = smul.u32 2, %s18
        %v1271 = vld [vmem:[%s0] sm:$0xf]
        %v1272 = vld [vmem:[%s1267] sm:$0x77]
        %v1273 = vld [vmem:[%s1194] sm:$0xff]
        %v1274 = vld [vmem:[%s1194 + $0x8] sm:$0xff]
        %v1275 = vld [vmem:[%s1194 + $0x10] sm:$0xff]
        %v1276 = vld [vmem:[%s1194 + $0x18] sm:$0xff]
        %v1277 = vld [vmem:[%s1194 + $0x20] sm:$0xff]
        %v1278 = vld [vmem:[%s1194 + $0x28] sm:$0xff]
        %v1279 = vld [vmem:[%s1194 + $0x30] sm:$0xff]
        %v1280 = vld [vmem:[%s1194 + $0x38] sm:$0xff]
        %v1281 = vld [vmem:[%s1194 + $0x40] sm:$0xff]
        %v1282 = vld [vmem:[%s1194 + $0x48] sm:$0xff]
        %v1283 = vld [vmem:[%s1194 + $0x50] sm:$0xff]
        %v1284 = vld [vmem:[%s1194 + $0x58] sm:$0xff]
        %v1285 = vld [vmem:[%s1194 + $0x60] sm:$0xff]
        %v1286 = vld [vmem:[%s1194 + $0x68] sm:$0xff]
        %v1287 = vld [vmem:[%s1194 + $0x70] sm:$0xff]
        %v1288 = vld [vmem:[%s1194 + $0x78] sm:$0xff]
        %v1289 = vld [vmem:[%s1194 + $0x80] sm:$0xff]
        %v1290 = vld [vmem:[%s1194 + $0x88] sm:$0xff]
        %v1291 = vld [vmem:[%s1194 + $0x90] sm:$0xff]
        %v1292 = vld [vmem:[%s1194 + $0x98] sm:$0xff]
        %v1293 = vld [vmem:[%s1194 + $0xa0] sm:$0xff]
        %v1294 = vld [vmem:[%s1194 + $0xa8] sm:$0xff]
        %v1295 = vld [vmem:[%s1194 + $0xb0] sm:$0xff]
        %v1296 = vld [vmem:[%s1194 + $0xb8] sm:$0xff]
        %v1297 = vld [vmem:[%s1194 + $0xc0] sm:$0xff]
        %v1298 = vld [vmem:[%s1194 + $0xc8] sm:$0xff]
        %v1299 = vld [vmem:[%s1194 + $0xd0] sm:$0xff]
        %v1300 = vld [vmem:[%s1194 + $0xd8] sm:$0xff]
        %v1301 = vld [vmem:[%s1194 + $0xe0] sm:$0xff]
        %v1302 = vld [vmem:[%s1194 + $0xe8] sm:$0xff]
        %v1303 = vld [vmem:[%s1194 + $0xf0] sm:$0xff]
        %v1304 = vld [vmem:[%s1194 + $0xf8] sm:$0xff]
        %v1305 = vld [vmem:[%s1194 + $0x100] sm:$0xff]
        %v1306 = vld [vmem:[%s1194 + $0x108] sm:$0xff]
        %v1307 = vld [vmem:[%s1194 + $0x110] sm:$0xff]
        %v1308 = vld [vmem:[%s1194 + $0x118] sm:$0xff]
        %v1309 = vld [vmem:[%s1194 + $0x120] sm:$0xff]
        %v1310 = vld [vmem:[%s1194 + $0x128] sm:$0xff]
        %v1311 = vld [vmem:[%s1194 + $0x130] sm:$0xff]
        %v1312 = vld [vmem:[%s1194 + $0x138] sm:$0xff]
        %v1313 = vld [vmem:[%s1194 + $0x140] sm:$0xff]
        %v1314 = vld [vmem:[%s1194 + $0x148] sm:$0xff]
        %v1315 = vld [vmem:[%s1194 + $0x150] sm:$0xff]
        %v1316 = vld [vmem:[%s1194 + $0x158] sm:$0xff]
        %v1317 = vld [vmem:[%s1194 + $0x160] sm:$0xff]
        %v1318 = vld [vmem:[%s1194 + $0x168] sm:$0xff]
        %v1319 = vld [vmem:[%s1194 + $0x170] sm:$0xff]
        %v1320 = vld [vmem:[%s1194 + $0x178] sm:$0xff]
        %v1321 = vld [vmem:[%s1194 + $0x180] sm:$0xff]
        %v1322 = vld [vmem:[%s1194 + $0x188] sm:$0xff]
        %v1323 = vld [vmem:[%s1194 + $0x190] sm:$0xff]
        %v1324 = vld [vmem:[%s1194 + $0x198] sm:$0xff]
        %v1325 = vld [vmem:[%s1194 + $0x1a0] sm:$0xff]
        %v1326 = vld [vmem:[%s1194 + $0x1a8] sm:$0xff]
        %v1327 = vld [vmem:[%s1194 + $0x1b0] sm:$0xff]
        %v1328 = vld [vmem:[%s1194 + $0x1b8] sm:$0xff]
        %v1329 = vld [vmem:[%s1194 + $0x1c0] sm:$0xff]
        %v1330 = vld [vmem:[%s1194 + $0x1c8] sm:$0xff]
        %v1331 = vld [vmem:[%s1194 + $0x1d0] sm:$0xff]
        %v1332 = vld [vmem:[%s1194 + $0x1d8] sm:$0xff]
        %v1333 = vld [vmem:[%s1194 + $0x1e0] sm:$0xff]
        %v1334 = vld [vmem:[%s1194 + $0x1e8] sm:$0xff]
        %v1335 = vld [vmem:[%s1194 + $0x1f0] sm:$0xff]
        %v1336 = vld [vmem:[%s1194 + $0x1f8] sm:$0xff]
        %v1338 = vlaneseq
        %v1339 = vshrl.u32 %v1338, 7
        %v1340 = vsub.s32 0, %v1339
        %v1341 = vrot.slane %v1272, %v1340
        %v1342 = vlaneseq
        %v1343 = vshrl.u32 %v1342, 7
        %v1344 = vsub.s32 4, %v1343
        %v1345 = vrot.slane %v1272, %v1344
        %v1348 = vlaneseq
        %v1349 = vshrl.u32 %v1348, 7
        %v1350 = vsub.s32 0, %v1349
        %v1351 = vrot.slane %v1341, %v1350
        %v1352 = vlaneseq
        %v1353 = vshrl.u32 %v1352, 7
        %v1354 = vsub.s32 0, %v1353
        %v1355 = vrot.slane %v1345, %v1354
        %v1358 = vunpack.c.l.s4 1966171168
        %v1359 = vunpack.c.0.s8 %v1358
        %v1360 = vlaneseq
        %v1361 = vshrl.u32 %v1360, 7
        %v1362 = vsub.s32 %v1359, %v1361
        %v1363 = vrot.slane %v1271, %v1362
        %v1364 = vcombine.high %v1363, %v1363
        %v1366 = vunpack.c.l.s4 1966171168
        %v1367 = vunpack.c.0.s8 %v1366
        %v1368 = vlaneseq
        %v1369 = vshrl.u32 %v1368, 7
        %v1370 = vsub.s32 %v1367, %v1369
        %v1371 = vrot.slane %v1363, %v1370
        %v1373 = vunpack.c.l.s4 1966171168
        %v1374 = vunpack.c.0.s8 %v1373
        %v1375 = vlaneseq
        %v1376 = vshrl.u32 %v1375, 7
        %v1377 = vsub.s32 %v1374, %v1376
        %v1378 = vrot.slane %v1364, %v1377
        %v1379 = vcombine.high %v1371, %v1371
        %v1380 = vcombine.high %v1378, %v1378
        %v1449 = vunpack.c.l.b16 %v1273
        %v1450 = vunpack.c.h.b16 %v1273
        %v1451 = vunpack.c.l.b16 %v1274
        %v1452 = vunpack.c.h.b16 %v1274
        %v1453 = vunpack.c.l.b16 %v1275
        %v1454 = vunpack.c.h.b16 %v1275
        %v1455 = vunpack.c.l.b16 %v1276
        %v1456 = vunpack.c.h.b16 %v1276
        %v1457 = vunpack.c.l.b16 %v1277
        %v1458 = vunpack.c.h.b16 %v1277
        %v1459 = vunpack.c.l.b16 %v1278
        %v1460 = vunpack.c.h.b16 %v1278
        %v1461 = vunpack.c.l.b16 %v1279
        %v1462 = vunpack.c.h.b16 %v1279
        %v1463 = vunpack.c.l.b16 %v1280
        %v1464 = vunpack.c.h.b16 %v1280
        %v1465 = vunpack.c.l.b16 %v1281
        %v1466 = vunpack.c.h.b16 %v1281
        %v1467 = vunpack.c.l.b16 %v1282
        %v1468 = vunpack.c.h.b16 %v1282
        %v1469 = vunpack.c.l.b16 %v1283
        %v1470 = vunpack.c.h.b16 %v1283
        %v1471 = vunpack.c.l.b16 %v1284
        %v1472 = vunpack.c.h.b16 %v1284
        %v1473 = vunpack.c.l.b16 %v1285
        %v1474 = vunpack.c.h.b16 %v1285
        %v1475 = vunpack.c.l.b16 %v1286
        %v1476 = vunpack.c.h.b16 %v1286
        %v1477 = vunpack.c.l.b16 %v1287
        %v1478 = vunpack.c.h.b16 %v1287
        %v1479 = vunpack.c.l.b16 %v1288
        %v1480 = vunpack.c.h.b16 %v1288
        %v1481 = vunpack.c.l.b16 %v1289
        %v1482 = vunpack.c.h.b16 %v1289
        %v1483 = vunpack.c.l.b16 %v1290
        %v1484 = vunpack.c.h.b16 %v1290
        %v1485 = vunpack.c.l.b16 %v1291
        %v1486 = vunpack.c.h.b16 %v1291
        %v1487 = vunpack.c.l.b16 %v1292
        %v1488 = vunpack.c.h.b16 %v1292
        %v1489 = vunpack.c.l.b16 %v1293
        %v1490 = vunpack.c.h.b16 %v1293
        %v1491 = vunpack.c.l.b16 %v1294
        %v1492 = vunpack.c.h.b16 %v1294
        %v1493 = vunpack.c.l.b16 %v1295
        %v1494 = vunpack.c.h.b16 %v1295
        %v1495 = vunpack.c.l.b16 %v1296
        %v1496 = vunpack.c.h.b16 %v1296
        %v1497 = vunpack.c.l.b16 %v1297
        %v1498 = vunpack.c.h.b16 %v1297
        %v1499 = vunpack.c.l.b16 %v1298
        %v1500 = vunpack.c.h.b16 %v1298
        %v1501 = vunpack.c.l.b16 %v1299
        %v1502 = vunpack.c.h.b16 %v1299
        %v1503 = vunpack.c.l.b16 %v1300
        %v1504 = vunpack.c.h.b16 %v1300
        %v1505 = vunpack.c.l.b16 %v1301
        %v1506 = vunpack.c.h.b16 %v1301
        %v1507 = vunpack.c.l.b16 %v1302
        %v1508 = vunpack.c.h.b16 %v1302
        %v1509 = vunpack.c.l.b16 %v1303
        %v1510 = vunpack.c.h.b16 %v1303
        %v1511 = vunpack.c.l.b16 %v1304
        %v1512 = vunpack.c.h.b16 %v1304
        %v1513 = vunpack.c.l.b16 %v1305
        %v1514 = vunpack.c.h.b16 %v1305
        %v1515 = vunpack.c.l.b16 %v1306
        %v1516 = vunpack.c.h.b16 %v1306
        %v1517 = vunpack.c.l.b16 %v1307
        %v1518 = vunpack.c.h.b16 %v1307
        %v1519 = vunpack.c.l.b16 %v1308
        %v1520 = vunpack.c.h.b16 %v1308
        %v1521 = vunpack.c.l.b16 %v1309
        %v1522 = vunpack.c.h.b16 %v1309
        %v1523 = vunpack.c.l.b16 %v1310
        %v1524 = vunpack.c.h.b16 %v1310
        %v1525 = vunpack.c.l.b16 %v1311
        %v1526 = vunpack.c.h.b16 %v1311
        %v1527 = vunpack.c.l.b16 %v1312
        %v1528 = vunpack.c.h.b16 %v1312
        %v1529 = vunpack.c.l.b16 %v1313
        %v1530 = vunpack.c.h.b16 %v1313
        %v1531 = vunpack.c.l.b16 %v1314
        %v1532 = vunpack.c.h.b16 %v1314
        %v1533 = vunpack.c.l.b16 %v1315
        %v1534 = vunpack.c.h.b16 %v1315
        %v1535 = vunpack.c.l.b16 %v1316
        %v1536 = vunpack.c.h.b16 %v1316
        %v1537 = vunpack.c.l.b16 %v1317
        %v1538 = vunpack.c.h.b16 %v1317
        %v1539 = vunpack.c.l.b16 %v1318
        %v1540 = vunpack.c.h.b16 %v1318
        %v1541 = vunpack.c.l.b16 %v1319
        %v1542 = vunpack.c.h.b16 %v1319
        %v1543 = vunpack.c.l.b16 %v1320
        %v1544 = vunpack.c.h.b16 %v1320
        %v1545 = vunpack.c.l.b16 %v1321
        %v1546 = vunpack.c.h.b16 %v1321
        %v1547 = vunpack.c.l.b16 %v1322
        %v1548 = vunpack.c.h.b16 %v1322
        %v1549 = vunpack.c.l.b16 %v1323
        %v1550 = vunpack.c.h.b16 %v1323
        %v1551 = vunpack.c.l.b16 %v1324
        %v1552 = vunpack.c.h.b16 %v1324
        %v1553 = vunpack.c.l.b16 %v1325
        %v1554 = vunpack.c.h.b16 %v1325
        %v1555 = vunpack.c.l.b16 %v1326
        %v1556 = vunpack.c.h.b16 %v1326
        %v1557 = vunpack.c.l.b16 %v1327
        %v1558 = vunpack.c.h.b16 %v1327
        %v1559 = vunpack.c.l.b16 %v1328
        %v1560 = vunpack.c.h.b16 %v1328
        %v1561 = vunpack.c.l.b16 %v1329
        %v1562 = vunpack.c.h.b16 %v1329
        %v1563 = vunpack.c.l.b16 %v1330
        %v1564 = vunpack.c.h.b16 %v1330
        %v1565 = vunpack.c.l.b16 %v1331
        %v1566 = vunpack.c.h.b16 %v1331
        %v1567 = vunpack.c.l.b16 %v1332
        %v1568 = vunpack.c.h.b16 %v1332
        %v1569 = vunpack.c.l.b16 %v1333
        %v1570 = vunpack.c.h.b16 %v1333
        %v1571 = vunpack.c.l.b16 %v1334
        %v1572 = vunpack.c.h.b16 %v1334
        %v1573 = vunpack.c.l.b16 %v1335
        %v1574 = vunpack.c.h.b16 %v1335
        %v1575 = vunpack.c.l.b16 %v1336
        %v1576 = vunpack.c.h.b16 %v1336
        %v1577 = vpack.c.b16 %v1451, %v1449
        %v1578 = vpack.c.b16 %v1452, %v1450
        %v1579 = vpack.c.b16 %v1455, %v1453
        %v1580 = vpack.c.b16 %v1456, %v1454
        %v1581 = vpack.c.b16 %v1459, %v1457
        %v1582 = vpack.c.b16 %v1460, %v1458
        %v1583 = vpack.c.b16 %v1463, %v1461
        %v1584 = vpack.c.b16 %v1464, %v1462
        %v1585 = vpack.c.b16 %v1467, %v1465
        %v1586 = vpack.c.b16 %v1468, %v1466
        %v1587 = vpack.c.b16 %v1471, %v1469
        %v1588 = vpack.c.b16 %v1472, %v1470
        %v1589 = vpack.c.b16 %v1475, %v1473
        %v1590 = vpack.c.b16 %v1476, %v1474
        %v1591 = vpack.c.b16 %v1479, %v1477
        %v1592 = vpack.c.b16 %v1480, %v1478
        %v1593 = vpack.c.b16 %v1483, %v1481
        %v1594 = vpack.c.b16 %v1484, %v1482
        %v1595 = vpack.c.b16 %v1487, %v1485
        %v1596 = vpack.c.b16 %v1488, %v1486
        %v1597 = vpack.c.b16 %v1491, %v1489
        %v1598 = vpack.c.b16 %v1492, %v1490
        %v1599 = vpack.c.b16 %v1495, %v1493
        %v1600 = vpack.c.b16 %v1496, %v1494
        %v1601 = vpack.c.b16 %v1499, %v1497
        %v1602 = vpack.c.b16 %v1500, %v1498
        %v1603 = vpack.c.b16 %v1503, %v1501
        %v1604 = vpack.c.b16 %v1504, %v1502
        %v1605 = vpack.c.b16 %v1507, %v1505
        %v1606 = vpack.c.b16 %v1508, %v1506
        %v1607 = vpack.c.b16 %v1511, %v1509
        %v1608 = vpack.c.b16 %v1512, %v1510
        %v1609 = vpack.c.b16 %v1515, %v1513
        %v1610 = vpack.c.b16 %v1516, %v1514
        %v1611 = vpack.c.b16 %v1519, %v1517
        %v1612 = vpack.c.b16 %v1520, %v1518
        %v1613 = vpack.c.b16 %v1523, %v1521
        %v1614 = vpack.c.b16 %v1524, %v1522
        %v1615 = vpack.c.b16 %v1527, %v1525
        %v1616 = vpack.c.b16 %v1528, %v1526
        %v1617 = vpack.c.b16 %v1531, %v1529
        %v1618 = vpack.c.b16 %v1532, %v1530
        %v1619 = vpack.c.b16 %v1535, %v1533
        %v1620 = vpack.c.b16 %v1536, %v1534
        %v1621 = vpack.c.b16 %v1539, %v1537
        %v1622 = vpack.c.b16 %v1540, %v1538
        %v1623 = vpack.c.b16 %v1543, %v1541
        %v1624 = vpack.c.b16 %v1544, %v1542
        %v1625 = vpack.c.b16 %v1547, %v1545
        %v1626 = vpack.c.b16 %v1548, %v1546
        %v1627 = vpack.c.b16 %v1551, %v1549
        %v1628 = vpack.c.b16 %v1552, %v1550
        %v1629 = vpack.c.b16 %v1555, %v1553
        %v1630 = vpack.c.b16 %v1556, %v1554
        %v1631 = vpack.c.b16 %v1559, %v1557
        %v1632 = vpack.c.b16 %v1560, %v1558
        %v1633 = vpack.c.b16 %v1563, %v1561
        %v1634 = vpack.c.b16 %v1564, %v1562
        %v1635 = vpack.c.b16 %v1567, %v1565
        %v1636 = vpack.c.b16 %v1568, %v1566
        %v1637 = vpack.c.b16 %v1571, %v1569
        %v1638 = vpack.c.b16 %v1572, %v1570
        %v1639 = vpack.c.b16 %v1575, %v1573
        %v1640 = vpack.c.b16 %v1576, %v1574
        %1705 = vmatprep.subr.bf16.mxu0 %v1578
        %1706 = vmatpush1.bf16.msra.mxu0 %v1577
        %1707 = vmatprep.subr.bf16.mxu0 %v1580
        %1708 = vmatpush1.bf16.msra.mxu0 %v1579
        %1709 = vmatprep.subr.bf16.mxu0 %v1582
        %1710 = vmatpush1.bf16.msra.mxu0 %v1581
        %1711 = vmatprep.subr.bf16.mxu0 %v1584
        %1712 = vmatpush1.bf16.msra.mxu0 %v1583
        %1713 = vmatprep.subr.bf16.mxu0 %v1586
        %1714 = vmatpush1.bf16.msra.mxu0 %v1585
        %1715 = vmatprep.subr.bf16.mxu0 %v1588
        %1716 = vmatpush1.bf16.msra.mxu0 %v1587
        %1717 = vmatprep.subr.bf16.mxu0 %v1590
        %1718 = vmatpush1.bf16.msra.mxu0 %v1589
        %1719 = vmatprep.subr.bf16.mxu0 %v1592
        %1720 = vmatpush1.bf16.msra.mxu0 %v1591
        %1721 = vmatprep.subr.bf16.mxu0 %v1594
        %1722 = vmatpush1.bf16.msra.mxu0 %v1593
        %1723 = vmatprep.subr.bf16.mxu0 %v1596
        %1724 = vmatpush1.bf16.msra.mxu0 %v1595
        %1725 = vmatprep.subr.bf16.mxu0 %v1598
        %1726 = vmatpush1.bf16.msra.mxu0 %v1597
        %1727 = vmatprep.subr.bf16.mxu0 %v1600
        %1728 = vmatpush1.bf16.msra.mxu0 %v1599
        %1729 = vmatprep.subr.bf16.mxu0 %v1602
        %1730 = vmatpush1.bf16.msra.mxu0 %v1601
        %1731 = vmatprep.subr.bf16.mxu0 %v1604
        %1732 = vmatpush1.bf16.msra.mxu0 %v1603
        %1733 = vmatprep.subr.bf16.mxu0 %v1606
        %1734 = vmatpush1.bf16.msra.mxu0 %v1605
        %1735 = vmatprep.subr.bf16.mxu0 %v1608
        %1736 = vmatpush1.bf16.msra.mxu0 %v1607
        %1737 = vmatprep.mubr.bf16.mxu0 %v1378
        %1738 = vmatmul.mubr.bf16.gmra.mrb[0].mxu0 %v1371
        %v1739 = vpop.f32.mrb[0].mxu0
        %v1740 = vadd.f32 %v1351, %v1739
        %v1741 = vpop.f32.mrb[0].mxu0
        %v1742 = vadd.f32 %v1355, %v1741
        %v1743 = vpop.f32.mrb[0].mxu0
        %v1744 = vpop.f32.mrb[0].mxu0
        %1745 = vdwg.mxu0
        %1746 = vmatprep.subr.bf16.mxu0 %v1610
        %1747 = vmatpush1.bf16.msra.mxu0 %v1609
        %1748 = vmatprep.subr.bf16.mxu0 %v1612
        %1749 = vmatpush1.bf16.msra.mxu0 %v1611
        %1750 = vmatprep.subr.bf16.mxu0 %v1614
        %1751 = vmatpush1.bf16.msra.mxu0 %v1613
        %1752 = vmatprep.subr.bf16.mxu0 %v1616
        %1753 = vmatpush1.bf16.msra.mxu0 %v1615
        %1754 = vmatprep.subr.bf16.mxu0 %v1618
        %1755 = vmatpush1.bf16.msra.mxu0 %v1617
        %1756 = vmatprep.subr.bf16.mxu0 %v1620
        %1757 = vmatpush1.bf16.msra.mxu0 %v1619
        %1758 = vmatprep.subr.bf16.mxu0 %v1622
        %1759 = vmatpush1.bf16.msra.mxu0 %v1621
        %1760 = vmatprep.subr.bf16.mxu0 %v1624
        %1761 = vmatpush1.bf16.msra.mxu0 %v1623
        %1762 = vmatprep.subr.bf16.mxu0 %v1626
        %1763 = vmatpush1.bf16.msra.mxu0 %v1625
        %1764 = vmatprep.subr.bf16.mxu0 %v1628
        %1765 = vmatpush1.bf16.msra.mxu0 %v1627
        %1766 = vmatprep.subr.bf16.mxu0 %v1630
        %1767 = vmatpush1.bf16.msra.mxu0 %v1629
        %1768 = vmatprep.subr.bf16.mxu0 %v1632
        %1769 = vmatpush1.bf16.msra.mxu0 %v1631
        %1770 = vmatprep.subr.bf16.mxu0 %v1634
        %1771 = vmatpush1.bf16.msra.mxu0 %v1633
        %1772 = vmatprep.subr.bf16.mxu0 %v1636
        %1773 = vmatpush1.bf16.msra.mxu0 %v1635
        %1774 = vmatprep.subr.bf16.mxu0 %v1638
        %1775 = vmatpush1.bf16.msra.mxu0 %v1637
        %1776 = vmatprep.subr.bf16.mxu0 %v1640
        %1777 = vmatpush1.bf16.msra.mxu0 %v1639
        %1778 = vmatprep.mubr.bf16.mxu0 %v1380
        %1779 = vmatmul.mubr.bf16.gmra.mrb[0].mxu0 %v1379
        %v1780 = vpop.f32.mrb[0].mxu0
        %v1781 = vadd.f32 %v1740, %v1780
        %v1782 = vpop.f32.mrb[0].mxu0
        %v1783 = vadd.f32 %v1742, %v1782
        %v1784 = vpop.f32.mrb[0].mxu0
        %v1785 = vpop.f32.mrb[0].mxu0
        %1786 = vdwg.mxu0
        %v1787 = vld [vmem:[%s1201] sm:$0xff]
        %v1788 = vld [vmem:[%s1201 + $0x8] sm:$0xff]
        %v1789 = vld [vmem:[%s1201 + $0x10] sm:$0xff]
        %v1790 = vld [vmem:[%s1201 + $0x18] sm:$0xff]
        %v1791 = vld [vmem:[%s1201 + $0x20] sm:$0xff]
        %v1792 = vld [vmem:[%s1201 + $0x28] sm:$0xff]
        %v1793 = vld [vmem:[%s1201 + $0x30] sm:$0xff]
        %v1794 = vld [vmem:[%s1201 + $0x38] sm:$0xff]
        %v1795 = vld [vmem:[%s1201 + $0x40] sm:$0xff]
        %v1796 = vld [vmem:[%s1201 + $0x48] sm:$0xff]
        %v1797 = vld [vmem:[%s1201 + $0x50] sm:$0xff]
        %v1798 = vld [vmem:[%s1201 + $0x58] sm:$0xff]
        %v1799 = vld [vmem:[%s1201 + $0x60] sm:$0xff]
        %v1800 = vld [vmem:[%s1201 + $0x68] sm:$0xff]
        %v1801 = vld [vmem:[%s1201 + $0x70] sm:$0xff]
        %v1802 = vld [vmem:[%s1201 + $0x78] sm:$0xff]
        %v1803 = vld [vmem:[%s1201 + $0x80] sm:$0xff]
        %v1804 = vld [vmem:[%s1201 + $0x88] sm:$0xff]
        %v1805 = vld [vmem:[%s1201 + $0x90] sm:$0xff]
        %v1806 = vld [vmem:[%s1201 + $0x98] sm:$0xff]
        %v1807 = vld [vmem:[%s1201 + $0xa0] sm:$0xff]
        %v1808 = vld [vmem:[%s1201 + $0xa8] sm:$0xff]
        %v1809 = vld [vmem:[%s1201 + $0xb0] sm:$0xff]
        %v1810 = vld [vmem:[%s1201 + $0xb8] sm:$0xff]
        %v1811 = vld [vmem:[%s1201 + $0xc0] sm:$0xff]
        %v1812 = vld [vmem:[%s1201 + $0xc8] sm:$0xff]
        %v1813 = vld [vmem:[%s1201 + $0xd0] sm:$0xff]
        %v1814 = vld [vmem:[%s1201 + $0xd8] sm:$0xff]
        %v1815 = vld [vmem:[%s1201 + $0xe0] sm:$0xff]
        %v1816 = vld [vmem:[%s1201 + $0xe8] sm:$0xff]
        %v1817 = vld [vmem:[%s1201 + $0xf0] sm:$0xff]
        %v1818 = vld [vmem:[%s1201 + $0xf8] sm:$0xff]
        %v1819 = vld [vmem:[%s1201 + $0x100] sm:$0xff]
        %v1820 = vld [vmem:[%s1201 + $0x108] sm:$0xff]
        %v1821 = vld [vmem:[%s1201 + $0x110] sm:$0xff]
        %v1822 = vld [vmem:[%s1201 + $0x118] sm:$0xff]
        %v1823 = vld [vmem:[%s1201 + $0x120] sm:$0xff]
        %v1824 = vld [vmem:[%s1201 + $0x128] sm:$0xff]
        %v1825 = vld [vmem:[%s1201 + $0x130] sm:$0xff]
        %v1826 = vld [vmem:[%s1201 + $0x138] sm:$0xff]
        %v1827 = vld [vmem:[%s1201 + $0x140] sm:$0xff]
        %v1828 = vld [vmem:[%s1201 + $0x148] sm:$0xff]
        %v1829 = vld [vmem:[%s1201 + $0x150] sm:$0xff]
        %v1830 = vld [vmem:[%s1201 + $0x158] sm:$0xff]
        %v1831 = vld [vmem:[%s1201 + $0x160] sm:$0xff]
        %v1832 = vld [vmem:[%s1201 + $0x168] sm:$0xff]
        %v1833 = vld [vmem:[%s1201 + $0x170] sm:$0xff]
        %v1834 = vld [vmem:[%s1201 + $0x178] sm:$0xff]
        %v1835 = vld [vmem:[%s1201 + $0x180] sm:$0xff]
        %v1836 = vld [vmem:[%s1201 + $0x188] sm:$0xff]
        %v1837 = vld [vmem:[%s1201 + $0x190] sm:$0xff]
        %v1838 = vld [vmem:[%s1201 + $0x198] sm:$0xff]
        %v1839 = vld [vmem:[%s1201 + $0x1a0] sm:$0xff]
        %v1840 = vld [vmem:[%s1201 + $0x1a8] sm:$0xff]
        %v1841 = vld [vmem:[%s1201 + $0x1b0] sm:$0xff]
        %v1842 = vld [vmem:[%s1201 + $0x1b8] sm:$0xff]
        %v1843 = vld [vmem:[%s1201 + $0x1c0] sm:$0xff]
        %v1844 = vld [vmem:[%s1201 + $0x1c8] sm:$0xff]
        %v1845 = vld [vmem:[%s1201 + $0x1d0] sm:$0xff]
        %v1846 = vld [vmem:[%s1201 + $0x1d8] sm:$0xff]
        %v1847 = vld [vmem:[%s1201 + $0x1e0] sm:$0xff]
        %v1848 = vld [vmem:[%s1201 + $0x1e8] sm:$0xff]
        %v1849 = vld [vmem:[%s1201 + $0x1f0] sm:$0xff]
        %v1850 = vld [vmem:[%s1201 + $0x1f8] sm:$0xff]
        %v1851 = vlaneseq
        %v1852 = vshrl.u32 %v1851, 7
        %v1853 = vsub.s32 1, %v1852
        %v1854 = vrot.slane %v1272, %v1853
        %v1855 = vlaneseq
        %v1856 = vshrl.u32 %v1855, 7
        %v1857 = vsub.s32 5, %v1856
        %v1858 = vrot.slane %v1272, %v1857
        %v1861 = vlaneseq
        %v1862 = vshrl.u32 %v1861, 7
        %v1863 = vsub.s32 1, %v1862
        %v1864 = vrot.slane %v1854, %v1863
        %v1865 = vlaneseq
        %v1866 = vshrl.u32 %v1865, 7
        %v1867 = vsub.s32 1, %v1866
        %v1868 = vrot.slane %v1858, %v1867
        %v1933 = vunpack.c.l.b16 %v1787
        %v1934 = vunpack.c.h.b16 %v1787
        %v1935 = vunpack.c.l.b16 %v1788
        %v1936 = vunpack.c.h.b16 %v1788
        %v1937 = vunpack.c.l.b16 %v1789
        %v1938 = vunpack.c.h.b16 %v1789
        %v1939 = vunpack.c.l.b16 %v1790
        %v1940 = vunpack.c.h.b16 %v1790
        %v1941 = vunpack.c.l.b16 %v1791
        %v1942 = vunpack.c.h.b16 %v1791
        %v1943 = vunpack.c.l.b16 %v1792
        %v1944 = vunpack.c.h.b16 %v1792
        %v1945 = vunpack.c.l.b16 %v1793
        %v1946 = vunpack.c.h.b16 %v1793
        %v1947 = vunpack.c.l.b16 %v1794
        %v1948 = vunpack.c.h.b16 %v1794
        %v1949 = vunpack.c.l.b16 %v1795
        %v1950 = vunpack.c.h.b16 %v1795
        %v1951 = vunpack.c.l.b16 %v1796
        %v1952 = vunpack.c.h.b16 %v1796
        %v1953 = vunpack.c.l.b16 %v1797
        %v1954 = vunpack.c.h.b16 %v1797
        %v1955 = vunpack.c.l.b16 %v1798
        %v1956 = vunpack.c.h.b16 %v1798
        %v1957 = vunpack.c.l.b16 %v1799
        %v1958 = vunpack.c.h.b16 %v1799
        %v1959 = vunpack.c.l.b16 %v1800
        %v1960 = vunpack.c.h.b16 %v1800
        %v1961 = vunpack.c.l.b16 %v1801
        %v1962 = vunpack.c.h.b16 %v1801
        %v1963 = vunpack.c.l.b16 %v1802
        %v1964 = vunpack.c.h.b16 %v1802
        %v1965 = vunpack.c.l.b16 %v1803
        %v1966 = vunpack.c.h.b16 %v1803
        %v1967 = vunpack.c.l.b16 %v1804
        %v1968 = vunpack.c.h.b16 %v1804
        %v1969 = vunpack.c.l.b16 %v1805
        %v1970 = vunpack.c.h.b16 %v1805
        %v1971 = vunpack.c.l.b16 %v1806
        %v1972 = vunpack.c.h.b16 %v1806
        %v1973 = vunpack.c.l.b16 %v1807
        %v1974 = vunpack.c.h.b16 %v1807
        %v1975 = vunpack.c.l.b16 %v1808
        %v1976 = vunpack.c.h.b16 %v1808
        %v1977 = vunpack.c.l.b16 %v1809
        %v1978 = vunpack.c.h.b16 %v1809
        %v1979 = vunpack.c.l.b16 %v1810
        %v1980 = vunpack.c.h.b16 %v1810
        %v1981 = vunpack.c.l.b16 %v1811
        %v1982 = vunpack.c.h.b16 %v1811
        %v1983 = vunpack.c.l.b16 %v1812
        %v1984 = vunpack.c.h.b16 %v1812
        %v1985 = vunpack.c.l.b16 %v1813
        %v1986 = vunpack.c.h.b16 %v1813
        %v1987 = vunpack.c.l.b16 %v1814
        %v1988 = vunpack.c.h.b16 %v1814
        %v1989 = vunpack.c.l.b16 %v1815
        %v1990 = vunpack.c.h.b16 %v1815
        %v1991 = vunpack.c.l.b16 %v1816
        %v1992 = vunpack.c.h.b16 %v1816
        %v1993 = vunpack.c.l.b16 %v1817
        %v1994 = vunpack.c.h.b16 %v1817
        %v1995 = vunpack.c.l.b16 %v1818
        %v1996 = vunpack.c.h.b16 %v1818
        %v1997 = vunpack.c.l.b16 %v1819
        %v1998 = vunpack.c.h.b16 %v1819
        %v1999 = vunpack.c.l.b16 %v1820
        %v2000 = vunpack.c.h.b16 %v1820
        %v2001 = vunpack.c.l.b16 %v1821
        %v2002 = vunpack.c.h.b16 %v1821
        %v2003 = vunpack.c.l.b16 %v1822
        %v2004 = vunpack.c.h.b16 %v1822
        %v2005 = vunpack.c.l.b16 %v1823
        %v2006 = vunpack.c.h.b16 %v1823
        %v2007 = vunpack.c.l.b16 %v1824
        %v2008 = vunpack.c.h.b16 %v1824
        %v2009 = vunpack.c.l.b16 %v1825
        %v2010 = vunpack.c.h.b16 %v1825
        %v2011 = vunpack.c.l.b16 %v1826
        %v2012 = vunpack.c.h.b16 %v1826
        %v2013 = vunpack.c.l.b16 %v1827
        %v2014 = vunpack.c.h.b16 %v1827
        %v2015 = vunpack.c.l.b16 %v1828
        %v2016 = vunpack.c.h.b16 %v1828
        %v2017 = vunpack.c.l.b16 %v1829
        %v2018 = vunpack.c.h.b16 %v1829
        %v2019 = vunpack.c.l.b16 %v1830
        %v2020 = vunpack.c.h.b16 %v1830
        %v2021 = vunpack.c.l.b16 %v1831
        %v2022 = vunpack.c.h.b16 %v1831
        %v2023 = vunpack.c.l.b16 %v1832
        %v2024 = vunpack.c.h.b16 %v1832
        %v2025 = vunpack.c.l.b16 %v1833
        %v2026 = vunpack.c.h.b16 %v1833
        %v2027 = vunpack.c.l.b16 %v1834
        %v2028 = vunpack.c.h.b16 %v1834
        %v2029 = vunpack.c.l.b16 %v1835
        %v2030 = vunpack.c.h.b16 %v1835
        %v2031 = vunpack.c.l.b16 %v1836
        %v2032 = vunpack.c.h.b16 %v1836
        %v2033 = vunpack.c.l.b16 %v1837
        %v2034 = vunpack.c.h.b16 %v1837
        %v2035 = vunpack.c.l.b16 %v1838
        %v2036 = vunpack.c.h.b16 %v1838
        %v2037 = vunpack.c.l.b16 %v1839
        %v2038 = vunpack.c.h.b16 %v1839
        %v2039 = vunpack.c.l.b16 %v1840
        %v2040 = vunpack.c.h.b16 %v1840
        %v2041 = vunpack.c.l.b16 %v1841
        %v2042 = vunpack.c.h.b16 %v1841
        %v2043 = vunpack.c.l.b16 %v1842
        %v2044 = vunpack.c.h.b16 %v1842
        %v2045 = vunpack.c.l.b16 %v1843
        %v2046 = vunpack.c.h.b16 %v1843
        %v2047 = vunpack.c.l.b16 %v1844
        %v2048 = vunpack.c.h.b16 %v1844
        %v2049 = vunpack.c.l.b16 %v1845
        %v2050 = vunpack.c.h.b16 %v1845
        %v2051 = vunpack.c.l.b16 %v1846
        %v2052 = vunpack.c.h.b16 %v1846
        %v2053 = vunpack.c.l.b16 %v1847
        %v2054 = vunpack.c.h.b16 %v1847
        %v2055 = vunpack.c.l.b16 %v1848
        %v2056 = vunpack.c.h.b16 %v1848
        %v2057 = vunpack.c.l.b16 %v1849
        %v2058 = vunpack.c.h.b16 %v1849
        %v2059 = vunpack.c.l.b16 %v1850
        %v2060 = vunpack.c.h.b16 %v1850
        %v2061 = vpack.c.b16 %v1935, %v1933
        %v2062 = vpack.c.b16 %v1936, %v1934
        %v2063 = vpack.c.b16 %v1939, %v1937
        %v2064 = vpack.c.b16 %v1940, %v1938
        %v2065 = vpack.c.b16 %v1943, %v1941
        %v2066 = vpack.c.b16 %v1944, %v1942
        %v2067 = vpack.c.b16 %v1947, %v1945
        %v2068 = vpack.c.b16 %v1948, %v1946
        %v2069 = vpack.c.b16 %v1951, %v1949
        %v2070 = vpack.c.b16 %v1952, %v1950
        %v2071 = vpack.c.b16 %v1955, %v1953
        %v2072 = vpack.c.b16 %v1956, %v1954
        %v2073 = vpack.c.b16 %v1959, %v1957
        %v2074 = vpack.c.b16 %v1960, %v1958
        %v2075 = vpack.c.b16 %v1963, %v1961
        %v2076 = vpack.c.b16 %v1964, %v1962
        %v2077 = vpack.c.b16 %v1967, %v1965
        %v2078 = vpack.c.b16 %v1968, %v1966
        %v2079 = vpack.c.b16 %v1971, %v1969
        %v2080 = vpack.c.b16 %v1972, %v1970
        %v2081 = vpack.c.b16 %v1975, %v1973
        %v2082 = vpack.c.b16 %v1976, %v1974
        %v2083 = vpack.c.b16 %v1979, %v1977
        %v2084 = vpack.c.b16 %v1980, %v1978
        %v2085 = vpack.c.b16 %v1983, %v1981
        %v2086 = vpack.c.b16 %v1984, %v1982
        %v2087 = vpack.c.b16 %v1987, %v1985
        %v2088 = vpack.c.b16 %v1988, %v1986
        %v2089 = vpack.c.b16 %v1991, %v1989
        %v2090 = vpack.c.b16 %v1992, %v1990
        %v2091 = vpack.c.b16 %v1995, %v1993
        %v2092 = vpack.c.b16 %v1996, %v1994
        %v2093 = vpack.c.b16 %v1999, %v1997
        %v2094 = vpack.c.b16 %v2000, %v1998
        %v2095 = vpack.c.b16 %v2003, %v2001
        %v2096 = vpack.c.b16 %v2004, %v2002
        %v2097 = vpack.c.b16 %v2007, %v2005
        %v2098 = vpack.c.b16 %v2008, %v2006
        %v2099 = vpack.c.b16 %v2011, %v2009
        %v2100 = vpack.c.b16 %v2012, %v2010
        %v2101 = vpack.c.b16 %v2015, %v2013
        %v2102 = vpack.c.b16 %v2016, %v2014
        %v2103 = vpack.c.b16 %v2019, %v2017
        %v2104 = vpack.c.b16 %v2020, %v2018
        %v2105 = vpack.c.b16 %v2023, %v2021
        %v2106 = vpack.c.b16 %v2024, %v2022
        %v2107 = vpack.c.b16 %v2027, %v2025
        %v2108 = vpack.c.b16 %v2028, %v2026
        %v2109 = vpack.c.b16 %v2031, %v2029
        %v2110 = vpack.c.b16 %v2032, %v2030
        %v2111 = vpack.c.b16 %v2035, %v2033
        %v2112 = vpack.c.b16 %v2036, %v2034
        %v2113 = vpack.c.b16 %v2039, %v2037
        %v2114 = vpack.c.b16 %v2040, %v2038
        %v2115 = vpack.c.b16 %v2043, %v2041
        %v2116 = vpack.c.b16 %v2044, %v2042
        %v2117 = vpack.c.b16 %v2047, %v2045
        %v2118 = vpack.c.b16 %v2048, %v2046
        %v2119 = vpack.c.b16 %v2051, %v2049
        %v2120 = vpack.c.b16 %v2052, %v2050
        %v2121 = vpack.c.b16 %v2055, %v2053
        %v2122 = vpack.c.b16 %v2056, %v2054
        %v2123 = vpack.c.b16 %v2059, %v2057
        %v2124 = vpack.c.b16 %v2060, %v2058
        %2189 = vmatprep.subr.bf16.mxu0 %v2062
        %2190 = vmatpush1.bf16.msra.mxu0 %v2061
        %2191 = vmatprep.subr.bf16.mxu0 %v2064
        %2192 = vmatpush1.bf16.msra.mxu0 %v2063
        %2193 = vmatprep.subr.bf16.mxu0 %v2066
        %2194 = vmatpush1.bf16.msra.mxu0 %v2065
        %2195 = vmatprep.subr.bf16.mxu0 %v2068
        %2196 = vmatpush1.bf16.msra.mxu0 %v2067
        %2197 = vmatprep.subr.bf16.mxu0 %v2070
        %2198 = vmatpush1.bf16.msra.mxu0 %v2069
        %2199 = vmatprep.subr.bf16.mxu0 %v2072
        %2200 = vmatpush1.bf16.msra.mxu0 %v2071
        %2201 = vmatprep.subr.bf16.mxu0 %v2074
        %2202 = vmatpush1.bf16.msra.mxu0 %v2073
        %2203 = vmatprep.subr.bf16.mxu0 %v2076
        %2204 = vmatpush1.bf16.msra.mxu0 %v2075
        %2205 = vmatprep.subr.bf16.mxu0 %v2078
        %2206 = vmatpush1.bf16.msra.mxu0 %v2077
        %2207 = vmatprep.subr.bf16.mxu0 %v2080
        %2208 = vmatpush1.bf16.msra.mxu0 %v2079
        %2209 = vmatprep.subr.bf16.mxu0 %v2082
        %2210 = vmatpush1.bf16.msra.mxu0 %v2081
        %2211 = vmatprep.subr.bf16.mxu0 %v2084
        %2212 = vmatpush1.bf16.msra.mxu0 %v2083
        %2213 = vmatprep.subr.bf16.mxu0 %v2086
        %2214 = vmatpush1.bf16.msra.mxu0 %v2085
        %2215 = vmatprep.subr.bf16.mxu0 %v2088
        %2216 = vmatpush1.bf16.msra.mxu0 %v2087
        %2217 = vmatprep.subr.bf16.mxu0 %v2090
        %2218 = vmatpush1.bf16.msra.mxu0 %v2089
        %2219 = vmatprep.subr.bf16.mxu0 %v2092
        %2220 = vmatpush1.bf16.msra.mxu0 %v2091
        %2221 = vmatprep.mubr.bf16.mxu0 %v1378
        %2222 = vmatmul.mubr.bf16.gmra.mrb[0].mxu0 %v1371
        %v2223 = vpop.f32.mrb[0].mxu0
        %v2224 = vadd.f32 %v1864, %v2223
        %v2225 = vpop.f32.mrb[0].mxu0
        %v2226 = vadd.f32 %v1868, %v2225
        %v2227 = vpop.f32.mrb[0].mxu0
        %v2228 = vpop.f32.mrb[0].mxu0
        %2229 = vdwg.mxu0
        %2230 = vmatprep.subr.bf16.mxu0 %v2094
        %2231 = vmatpush1.bf16.msra.mxu0 %v2093
        %2232 = vmatprep.subr.bf16.mxu0 %v2096
        %2233 = vmatpush1.bf16.msra.mxu0 %v2095
        %2234 = vmatprep.subr.bf16.mxu0 %v2098
        %2235 = vmatpush1.bf16.msra.mxu0 %v2097
        %2236 = vmatprep.subr.bf16.mxu0 %v2100
        %2237 = vmatpush1.bf16.msra.mxu0 %v2099
        %2238 = vmatprep.subr.bf16.mxu0 %v2102
        %2239 = vmatpush1.bf16.msra.mxu0 %v2101
        %2240 = vmatprep.subr.bf16.mxu0 %v2104
        %2241 = vmatpush1.bf16.msra.mxu0 %v2103
        %2242 = vmatprep.subr.bf16.mxu0 %v2106
        %2243 = vmatpush1.bf16.msra.mxu0 %v2105
        %2244 = vmatprep.subr.bf16.mxu0 %v2108
        %2245 = vmatpush1.bf16.msra.mxu0 %v2107
        %2246 = vmatprep.subr.bf16.mxu0 %v2110
        %2247 = vmatpush1.bf16.msra.mxu0 %v2109
        %2248 = vmatprep.subr.bf16.mxu0 %v2112
        %2249 = vmatpush1.bf16.msra.mxu0 %v2111
        %2250 = vmatprep.subr.bf16.mxu0 %v2114
        %2251 = vmatpush1.bf16.msra.mxu0 %v2113
        %2252 = vmatprep.subr.bf16.mxu0 %v2116
        %2253 = vmatpush1.bf16.msra.mxu0 %v2115
        %2254 = vmatprep.subr.bf16.mxu0 %v2118
        %2255 = vmatpush1.bf16.msra.mxu0 %v2117
        %2256 = vmatprep.subr.bf16.mxu0 %v2120
        %2257 = vmatpush1.bf16.msra.mxu0 %v2119
        %2258 = vmatprep.subr.bf16.mxu0 %v2122
        %2259 = vmatpush1.bf16.msra.mxu0 %v2121
        %2260 = vmatprep.subr.bf16.mxu0 %v2124
        %2261 = vmatpush1.bf16.msra.mxu0 %v2123
        %2262 = vmatprep.mubr.bf16.mxu0 %v1380
        %2263 = vmatmul.mubr.bf16.gmra.mrb[0].mxu0 %v1379
        %v2264 = vpop.f32.mrb[0].mxu0
        %v2265 = vadd.f32 %v2224, %v2264
        %v2266 = vpop.f32.mrb[0].mxu0
        %v2267 = vadd.f32 %v2226, %v2266
        %v2268 = vpop.f32.mrb[0].mxu0
        %v2269 = vpop.f32.mrb[0].mxu0
        %2270 = vdwg.mxu0
        %v2271 = vld [vmem:[%s1208] sm:$0xff]
        %v2272 = vld [vmem:[%s1208 + $0x8] sm:$0xff]
        %v2273 = vld [vmem:[%s1208 + $0x10] sm:$0xff]
        %v2274 = vld [vmem:[%s1208 + $0x18] sm:$0xff]
        %v2275 = vld [vmem:[%s1208 + $0x20] sm:$0xff]
        %v2276 = vld [vmem:[%s1208 + $0x28] sm:$0xff]
        %v2277 = vld [vmem:[%s1208 + $0x30] sm:$0xff]
        %v2278 = vld [vmem:[%s1208 + $0x38] sm:$0xff]
        %v2279 = vld [vmem:[%s1208 + $0x40] sm:$0xff]
        %v2280 = vld [vmem:[%s1208 + $0x48] sm:$0xff]
        %v2281 = vld [vmem:[%s1208 + $0x50] sm:$0xff]
        %v2282 = vld [vmem:[%s1208 + $0x58] sm:$0xff]
        %v2283 = vld [vmem:[%s1208 + $0x60] sm:$0xff]
        %v2284 = vld [vmem:[%s1208 + $0x68] sm:$0xff]
        %v2285 = vld [vmem:[%s1208 + $0x70] sm:$0xff]
        %v2286 = vld [vmem:[%s1208 + $0x78] sm:$0xff]
        %v2287 = vld [vmem:[%s1208 + $0x80] sm:$0xff]
        %v2288 = vld [vmem:[%s1208 + $0x88] sm:$0xff]
        %v2289 = vld [vmem:[%s1208 + $0x90] sm:$0xff]
        %v2290 = vld [vmem:[%s1208 + $0x98] sm:$0xff]
        %v2291 = vld [vmem:[%s1208 + $0xa0] sm:$0xff]
        %v2292 = vld [vmem:[%s1208 + $0xa8] sm:$0xff]
        %v2293 = vld [vmem:[%s1208 + $0xb0] sm:$0xff]
        %v2294 = vld [vmem:[%s1208 + $0xb8] sm:$0xff]
        %v2295 = vld [vmem:[%s1208 + $0xc0] sm:$0xff]
        %v2296 = vld [vmem:[%s1208 + $0xc8] sm:$0xff]
        %v2297 = vld [vmem:[%s1208 + $0xd0] sm:$0xff]
        %v2298 = vld [vmem:[%s1208 + $0xd8] sm:$0xff]
        %v2299 = vld [vmem:[%s1208 + $0xe0] sm:$0xff]
        %v2300 = vld [vmem:[%s1208 + $0xe8] sm:$0xff]
        %v2301 = vld [vmem:[%s1208 + $0xf0] sm:$0xff]
        %v2302 = vld [vmem:[%s1208 + $0xf8] sm:$0xff]
        %v2303 = vld [vmem:[%s1208 + $0x100] sm:$0xff]
        %v2304 = vld [vmem:[%s1208 + $0x108] sm:$0xff]
        %v2305 = vld [vmem:[%s1208 + $0x110] sm:$0xff]
        %v2306 = vld [vmem:[%s1208 + $0x118] sm:$0xff]
        %v2307 = vld [vmem:[%s1208 + $0x120] sm:$0xff]
        %v2308 = vld [vmem:[%s1208 + $0x128] sm:$0xff]
        %v2309 = vld [vmem:[%s1208 + $0x130] sm:$0xff]
        %v2310 = vld [vmem:[%s1208 + $0x138] sm:$0xff]
        %v2311 = vld [vmem:[%s1208 + $0x140] sm:$0xff]
        %v2312 = vld [vmem:[%s1208 + $0x148] sm:$0xff]
        %v2313 = vld [vmem:[%s1208 + $0x150] sm:$0xff]
        %v2314 = vld [vmem:[%s1208 + $0x158] sm:$0xff]
        %v2315 = vld [vmem:[%s1208 + $0x160] sm:$0xff]
        %v2316 = vld [vmem:[%s1208 + $0x168] sm:$0xff]
        %v2317 = vld [vmem:[%s1208 + $0x170] sm:$0xff]
        %v2318 = vld [vmem:[%s1208 + $0x178] sm:$0xff]
        %v2319 = vld [vmem:[%s1208 + $0x180] sm:$0xff]
        %v2320 = vld [vmem:[%s1208 + $0x188] sm:$0xff]
        %v2321 = vld [vmem:[%s1208 + $0x190] sm:$0xff]
        %v2322 = vld [vmem:[%s1208 + $0x198] sm:$0xff]
        %v2323 = vld [vmem:[%s1208 + $0x1a0] sm:$0xff]
        %v2324 = vld [vmem:[%s1208 + $0x1a8] sm:$0xff]
        %v2325 = vld [vmem:[%s1208 + $0x1b0] sm:$0xff]
        %v2326 = vld [vmem:[%s1208 + $0x1b8] sm:$0xff]
        %v2327 = vld [vmem:[%s1208 + $0x1c0] sm:$0xff]
        %v2328 = vld [vmem:[%s1208 + $0x1c8] sm:$0xff]
        %v2329 = vld [vmem:[%s1208 + $0x1d0] sm:$0xff]
        %v2330 = vld [vmem:[%s1208 + $0x1d8] sm:$0xff]
        %v2331 = vld [vmem:[%s1208 + $0x1e0] sm:$0xff]
        %v2332 = vld [vmem:[%s1208 + $0x1e8] sm:$0xff]
        %v2333 = vld [vmem:[%s1208 + $0x1f0] sm:$0xff]
        %v2334 = vld [vmem:[%s1208 + $0x1f8] sm:$0xff]
        %v2335 = vlaneseq
        %v2336 = vshrl.u32 %v2335, 7
        %v2337 = vsub.s32 2, %v2336
        %v2338 = vrot.slane %v1272, %v2337
        %v2339 = vlaneseq
        %v2340 = vshrl.u32 %v2339, 7
        %v2341 = vsub.s32 6, %v2340
        %v2342 = vrot.slane %v1272, %v2341
        %v2345 = vlaneseq
        %v2346 = vshrl.u32 %v2345, 7
        %v2347 = vsub.s32 2, %v2346
        %v2348 = vrot.slane %v2338, %v2347
        %v2349 = vlaneseq
        %v2350 = vshrl.u32 %v2349, 7
        %v2351 = vsub.s32 2, %v2350
        %v2352 = vrot.slane %v2342, %v2351
        %v2417 = vunpack.c.l.b16 %v2271
        %v2418 = vunpack.c.h.b16 %v2271
        %v2419 = vunpack.c.l.b16 %v2272
        %v2420 = vunpack.c.h.b16 %v2272
        %v2421 = vunpack.c.l.b16 %v2273
        %v2422 = vunpack.c.h.b16 %v2273
        %v2423 = vunpack.c.l.b16 %v2274
        %v2424 = vunpack.c.h.b16 %v2274
        %v2425 = vunpack.c.l.b16 %v2275
        %v2426 = vunpack.c.h.b16 %v2275
        %v2427 = vunpack.c.l.b16 %v2276
        %v2428 = vunpack.c.h.b16 %v2276
        %v2429 = vunpack.c.l.b16 %v2277
        %v2430 = vunpack.c.h.b16 %v2277
        %v2431 = vunpack.c.l.b16 %v2278
        %v2432 = vunpack.c.h.b16 %v2278
        %v2433 = vunpack.c.l.b16 %v2279
        %v2434 = vunpack.c.h.b16 %v2279
        %v2435 = vunpack.c.l.b16 %v2280
        %v2436 = vunpack.c.h.b16 %v2280
        %v2437 = vunpack.c.l.b16 %v2281
        %v2438 = vunpack.c.h.b16 %v2281
        %v2439 = vunpack.c.l.b16 %v2282
        %v2440 = vunpack.c.h.b16 %v2282
        %v2441 = vunpack.c.l.b16 %v2283
        %v2442 = vunpack.c.h.b16 %v2283
        %v2443 = vunpack.c.l.b16 %v2284
        %v2444 = vunpack.c.h.b16 %v2284
        %v2445 = vunpack.c.l.b16 %v2285
        %v2446 = vunpack.c.h.b16 %v2285
        %v2447 = vunpack.c.l.b16 %v2286
        %v2448 = vunpack.c.h.b16 %v2286
        %v2449 = vunpack.c.l.b16 %v2287
        %v2450 = vunpack.c.h.b16 %v2287
        %v2451 = vunpack.c.l.b16 %v2288
        %v2452 = vunpack.c.h.b16 %v2288
        %v2453 = vunpack.c.l.b16 %v2289
        %v2454 = vunpack.c.h.b16 %v2289
        %v2455 = vunpack.c.l.b16 %v2290
        %v2456 = vunpack.c.h.b16 %v2290
        %v2457 = vunpack.c.l.b16 %v2291
        %v2458 = vunpack.c.h.b16 %v2291
        %v2459 = vunpack.c.l.b16 %v2292
        %v2460 = vunpack.c.h.b16 %v2292
        %v2461 = vunpack.c.l.b16 %v2293
        %v2462 = vunpack.c.h.b16 %v2293
        %v2463 = vunpack.c.l.b16 %v2294
        %v2464 = vunpack.c.h.b16 %v2294
        %v2465 = vunpack.c.l.b16 %v2295
        %v2466 = vunpack.c.h.b16 %v2295
        %v2467 = vunpack.c.l.b16 %v2296
        %v2468 = vunpack.c.h.b16 %v2296
        %v2469 = vunpack.c.l.b16 %v2297
        %v2470 = vunpack.c.h.b16 %v2297
        %v2471 = vunpack.c.l.b16 %v2298
        %v2472 = vunpack.c.h.b16 %v2298
        %v2473 = vunpack.c.l.b16 %v2299
        %v2474 = vunpack.c.h.b16 %v2299
        %v2475 = vunpack.c.l.b16 %v2300
        %v2476 = vunpack.c.h.b16 %v2300
        %v2477 = vunpack.c.l.b16 %v2301
        %v2478 = vunpack.c.h.b16 %v2301
        %v2479 = vunpack.c.l.b16 %v2302
        %v2480 = vunpack.c.h.b16 %v2302
        %v2481 = vunpack.c.l.b16 %v2303
        %v2482 = vunpack.c.h.b16 %v2303
        %v2483 = vunpack.c.l.b16 %v2304
        %v2484 = vunpack.c.h.b16 %v2304
        %v2485 = vunpack.c.l.b16 %v2305
        %v2486 = vunpack.c.h.b16 %v2305
        %v2487 = vunpack.c.l.b16 %v2306
        %v2488 = vunpack.c.h.b16 %v2306
        %v2489 = vunpack.c.l.b16 %v2307
        %v2490 = vunpack.c.h.b16 %v2307
        %v2491 = vunpack.c.l.b16 %v2308
        %v2492 = vunpack.c.h.b16 %v2308
        %v2493 = vunpack.c.l.b16 %v2309
        %v2494 = vunpack.c.h.b16 %v2309
        %v2495 = vunpack.c.l.b16 %v2310
        %v2496 = vunpack.c.h.b16 %v2310
        %v2497 = vunpack.c.l.b16 %v2311
        %v2498 = vunpack.c.h.b16 %v2311
        %v2499 = vunpack.c.l.b16 %v2312
        %v2500 = vunpack.c.h.b16 %v2312
        %v2501 = vunpack.c.l.b16 %v2313
        %v2502 = vunpack.c.h.b16 %v2313
        %v2503 = vunpack.c.l.b16 %v2314
        %v2504 = vunpack.c.h.b16 %v2314
        %v2505 = vunpack.c.l.b16 %v2315
        %v2506 = vunpack.c.h.b16 %v2315
        %v2507 = vunpack.c.l.b16 %v2316
        %v2508 = vunpack.c.h.b16 %v2316
        %v2509 = vunpack.c.l.b16 %v2317
        %v2510 = vunpack.c.h.b16 %v2317
        %v2511 = vunpack.c.l.b16 %v2318
        %v2512 = vunpack.c.h.b16 %v2318
        %v2513 = vunpack.c.l.b16 %v2319
        %v2514 = vunpack.c.h.b16 %v2319
        %v2515 = vunpack.c.l.b16 %v2320
        %v2516 = vunpack.c.h.b16 %v2320
        %v2517 = vunpack.c.l.b16 %v2321
        %v2518 = vunpack.c.h.b16 %v2321
        %v2519 = vunpack.c.l.b16 %v2322
        %v2520 = vunpack.c.h.b16 %v2322
        %v2521 = vunpack.c.l.b16 %v2323
        %v2522 = vunpack.c.h.b16 %v2323
        %v2523 = vunpack.c.l.b16 %v2324
        %v2524 = vunpack.c.h.b16 %v2324
        %v2525 = vunpack.c.l.b16 %v2325
        %v2526 = vunpack.c.h.b16 %v2325
        %v2527 = vunpack.c.l.b16 %v2326
        %v2528 = vunpack.c.h.b16 %v2326
        %v2529 = vunpack.c.l.b16 %v2327
        %v2530 = vunpack.c.h.b16 %v2327
        %v2531 = vunpack.c.l.b16 %v2328
        %v2532 = vunpack.c.h.b16 %v2328
        %v2533 = vunpack.c.l.b16 %v2329
        %v2534 = vunpack.c.h.b16 %v2329
        %v2535 = vunpack.c.l.b16 %v2330
        %v2536 = vunpack.c.h.b16 %v2330
        %v2537 = vunpack.c.l.b16 %v2331
        %v2538 = vunpack.c.h.b16 %v2331
        %v2539 = vunpack.c.l.b16 %v2332
        %v2540 = vunpack.c.h.b16 %v2332
        %v2541 = vunpack.c.l.b16 %v2333
        %v2542 = vunpack.c.h.b16 %v2333
        %v2543 = vunpack.c.l.b16 %v2334
        %v2544 = vunpack.c.h.b16 %v2334
        %v2545 = vpack.c.b16 %v2419, %v2417
        %v2546 = vpack.c.b16 %v2420, %v2418
        %v2547 = vpack.c.b16 %v2423, %v2421
        %v2548 = vpack.c.b16 %v2424, %v2422
        %v2549 = vpack.c.b16 %v2427, %v2425
        %v2550 = vpack.c.b16 %v2428, %v2426
        %v2551 = vpack.c.b16 %v2431, %v2429
        %v2552 = vpack.c.b16 %v2432, %v2430
        %v2553 = vpack.c.b16 %v2435, %v2433
        %v2554 = vpack.c.b16 %v2436, %v2434
        %v2555 = vpack.c.b16 %v2439, %v2437
        %v2556 = vpack.c.b16 %v2440, %v2438
        %v2557 = vpack.c.b16 %v2443, %v2441
        %v2558 = vpack.c.b16 %v2444, %v2442
        %v2559 = vpack.c.b16 %v2447, %v2445
        %v2560 = vpack.c.b16 %v2448, %v2446
        %v2561 = vpack.c.b16 %v2451, %v2449
        %v2562 = vpack.c.b16 %v2452, %v2450
        %v2563 = vpack.c.b16 %v2455, %v2453
        %v2564 = vpack.c.b16 %v2456, %v2454
        %v2565 = vpack.c.b16 %v2459, %v2457
        %v2566 = vpack.c.b16 %v2460, %v2458
        %v2567 = vpack.c.b16 %v2463, %v2461
        %v2568 = vpack.c.b16 %v2464, %v2462
        %v2569 = vpack.c.b16 %v2467, %v2465
        %v2570 = vpack.c.b16 %v2468, %v2466
        %v2571 = vpack.c.b16 %v2471, %v2469
        %v2572 = vpack.c.b16 %v2472, %v2470
        %v2573 = vpack.c.b16 %v2475, %v2473
        %v2574 = vpack.c.b16 %v2476, %v2474
        %v2575 = vpack.c.b16 %v2479, %v2477
        %v2576 = vpack.c.b16 %v2480, %v2478
        %v2577 = vpack.c.b16 %v2483, %v2481
        %v2578 = vpack.c.b16 %v2484, %v2482
        %v2579 = vpack.c.b16 %v2487, %v2485
        %v2580 = vpack.c.b16 %v2488, %v2486
        %v2581 = vpack.c.b16 %v2491, %v2489
        %v2582 = vpack.c.b16 %v2492, %v2490
        %v2583 = vpack.c.b16 %v2495, %v2493
        %v2584 = vpack.c.b16 %v2496, %v2494
        %v2585 = vpack.c.b16 %v2499, %v2497
        %v2586 = vpack.c.b16 %v2500, %v2498
        %v2587 = vpack.c.b16 %v2503, %v2501
        %v2588 = vpack.c.b16 %v2504, %v2502
        %v2589 = vpack.c.b16 %v2507, %v2505
        %v2590 = vpack.c.b16 %v2508, %v2506
        %v2591 = vpack.c.b16 %v2511, %v2509
        %v2592 = vpack.c.b16 %v2512, %v2510
        %v2593 = vpack.c.b16 %v2515, %v2513
        %v2594 = vpack.c.b16 %v2516, %v2514
        %v2595 = vpack.c.b16 %v2519, %v2517
        %v2596 = vpack.c.b16 %v2520, %v2518
        %v2597 = vpack.c.b16 %v2523, %v2521
        %v2598 = vpack.c.b16 %v2524, %v2522
        %v2599 = vpack.c.b16 %v2527, %v2525
        %v2600 = vpack.c.b16 %v2528, %v2526
        %v2601 = vpack.c.b16 %v2531, %v2529
        %v2602 = vpack.c.b16 %v2532, %v2530
        %v2603 = vpack.c.b16 %v2535, %v2533
        %v2604 = vpack.c.b16 %v2536, %v2534
        %v2605 = vpack.c.b16 %v2539, %v2537
        %v2606 = vpack.c.b16 %v2540, %v2538
        %v2607 = vpack.c.b16 %v2543, %v2541
        %v2608 = vpack.c.b16 %v2544, %v2542
        %2673 = vmatprep.subr.bf16.mxu0 %v2546
        %2674 = vmatpush1.bf16.msra.mxu0 %v2545
        %2675 = vmatprep.subr.bf16.mxu0 %v2548
        %2676 = vmatpush1.bf16.msra.mxu0 %v2547
        %2677 = vmatprep.subr.bf16.mxu0 %v2550
        %2678 = vmatpush1.bf16.msra.mxu0 %v2549
        %2679 = vmatprep.subr.bf16.mxu0 %v2552
        %2680 = vmatpush1.bf16.msra.mxu0 %v2551
        %2681 = vmatprep.subr.bf16.mxu0 %v2554
        %2682 = vmatpush1.bf16.msra.mxu0 %v2553
        %2683 = vmatprep.subr.bf16.mxu0 %v2556
        %2684 = vmatpush1.bf16.msra.mxu0 %v2555
        %2685 = vmatprep.subr.bf16.mxu0 %v2558
        %2686 = vmatpush1.bf16.msra.mxu0 %v2557
        %2687 = vmatprep.subr.bf16.mxu0 %v2560
        %2688 = vmatpush1.bf16.msra.mxu0 %v2559
        %2689 = vmatprep.subr.bf16.mxu0 %v2562
        %2690 = vmatpush1.bf16.msra.mxu0 %v2561
        %2691 = vmatprep.subr.bf16.mxu0 %v2564
        %2692 = vmatpush1.bf16.msra.mxu0 %v2563
        %2693 = vmatprep.subr.bf16.mxu0 %v2566
        %2694 = vmatpush1.bf16.msra.mxu0 %v2565
        %2695 = vmatprep.subr.bf16.mxu0 %v2568
        %2696 = vmatpush1.bf16.msra.mxu0 %v2567
        %2697 = vmatprep.subr.bf16.mxu0 %v2570
        %2698 = vmatpush1.bf16.msra.mxu0 %v2569
        %2699 = vmatprep.subr.bf16.mxu0 %v2572
        %2700 = vmatpush1.bf16.msra.mxu0 %v2571
        %2701 = vmatprep.subr.bf16.mxu0 %v2574
        %2702 = vmatpush1.bf16.msra.mxu0 %v2573
        %2703 = vmatprep.subr.bf16.mxu0 %v2576
        %2704 = vmatpush1.bf16.msra.mxu0 %v2575
        %2705 = vmatprep.mubr.bf16.mxu0 %v1378
        %2706 = vmatmul.mubr.bf16.gmra.mrb[0].mxu0 %v1371
        %v2707 = vpop.f32.mrb[0].mxu0
        %v2708 = vadd.f32 %v2348, %v2707
        %v2709 = vpop.f32.mrb[0].mxu0
        %v2710 = vadd.f32 %v2352, %v2709
        %v2711 = vpop.f32.mrb[0].mxu0
        %v2712 = vpop.f32.mrb[0].mxu0
        %2713 = vdwg.mxu0
        %2714 = vmatprep.subr.bf16.mxu0 %v2578
        %2715 = vmatpush1.bf16.msra.mxu0 %v2577
        %2716 = vmatprep.subr.bf16.mxu0 %v2580
        %2717 = vmatpush1.bf16.msra.mxu0 %v2579
        %2718 = vmatprep.subr.bf16.mxu0 %v2582
        %2719 = vmatpush1.bf16.msra.mxu0 %v2581
        %2720 = vmatprep.subr.bf16.mxu0 %v2584
        %2721 = vmatpush1.bf16.msra.mxu0 %v2583
        %2722 = vmatprep.subr.bf16.mxu0 %v2586
        %2723 = vmatpush1.bf16.msra.mxu0 %v2585
        %2724 = vmatprep.subr.bf16.mxu0 %v2588
        %2725 = vmatpush1.bf16.msra.mxu0 %v2587
        %2726 = vmatprep.subr.bf16.mxu0 %v2590
        %2727 = vmatpush1.bf16.msra.mxu0 %v2589
        %2728 = vmatprep.subr.bf16.mxu0 %v2592
        %2729 = vmatpush1.bf16.msra.mxu0 %v2591
        %2730 = vmatprep.subr.bf16.mxu0 %v2594
        %2731 = vmatpush1.bf16.msra.mxu0 %v2593
        %2732 = vmatprep.subr.bf16.mxu0 %v2596
        %2733 = vmatpush1.bf16.msra.mxu0 %v2595
        %2734 = vmatprep.subr.bf16.mxu0 %v2598
        %2735 = vmatpush1.bf16.msra.mxu0 %v2597
        %2736 = vmatprep.subr.bf16.mxu0 %v2600
        %2737 = vmatpush1.bf16.msra.mxu0 %v2599
        %2738 = vmatprep.subr.bf16.mxu0 %v2602
        %2739 = vmatpush1.bf16.msra.mxu0 %v2601
        %2740 = vmatprep.subr.bf16.mxu0 %v2604
        %2741 = vmatpush1.bf16.msra.mxu0 %v2603
        %2742 = vmatprep.subr.bf16.mxu0 %v2606
        %2743 = vmatpush1.bf16.msra.mxu0 %v2605
        %2744 = vmatprep.subr.bf16.mxu0 %v2608
        %2745 = vmatpush1.bf16.msra.mxu0 %v2607
        %2746 = vmatprep.mubr.bf16.mxu0 %v1380
        %2747 = vmatmul.mubr.bf16.gmra.mrb[0].mxu0 %v1379
        %v2748 = vpop.f32.mrb[0].mxu0
        %v2749 = vadd.f32 %v2708, %v2748
        %v2750 = vpop.f32.mrb[0].mxu0
        %v2751 = vadd.f32 %v2710, %v2750
        %v2752 = vpop.f32.mrb[0].mxu0
        %v2753 = vpop.f32.mrb[0].mxu0
        %2754 = vdwg.mxu0
        %v2755 = vld [vmem:[%s6] sm:$0xff]
        %v2756 = vld [vmem:[%s6 + $0x8] sm:$0xff]
        %v2757 = vld [vmem:[%s6 + $0x10] sm:$0xff]
        %v2758 = vld [vmem:[%s1215] sm:$0xff]
        %v2759 = vld [vmem:[%s1215 + $0x8] sm:$0xff]
        %v2760 = vld [vmem:[%s1215 + $0x10] sm:$0xff]
        %v2761 = vld [vmem:[%s1215 + $0x18] sm:$0xff]
        %v2762 = vld [vmem:[%s1215 + $0x20] sm:$0xff]
        %v2763 = vld [vmem:[%s1215 + $0x28] sm:$0xff]
        %v2764 = vld [vmem:[%s1215 + $0x30] sm:$0xff]
        %v2765 = vld [vmem:[%s1215 + $0x38] sm:$0xff]
        %v2766 = vld [vmem:[%s1215 + $0x40] sm:$0xff]
        %v2767 = vld [vmem:[%s1215 + $0x48] sm:$0xff]
        %v2768 = vld [vmem:[%s1215 + $0x50] sm:$0xff]
        %v2769 = vld [vmem:[%s1215 + $0x58] sm:$0xff]
        %v2770 = vld [vmem:[%s1215 + $0x60] sm:$0xff]
        %v2771 = vld [vmem:[%s1215 + $0x68] sm:$0xff]
        %v2772 = vld [vmem:[%s1215 + $0x70] sm:$0xff]
        %v2773 = vld [vmem:[%s1215 + $0x78] sm:$0xff]
        %vm2774 = vcmask 523264
        %v2776 = vsel %vm2774, %v2755, 0
        %v2779 = vsel %vm2774, %v2756, 0
        %v2782 = vsel %vm2774, %v2757, 0
        %2784 = vmatprep.subr.mxu0 %v2759
        %2785 = vmatpush1.msra.mxu0 %v2758
        %2786 = vmatprep.subr.mxu0 %v2761
        %2787 = vmatpush1.msra.mxu0 %v2760
        %2788 = vmatprep.subr.mxu0 %v2763
        %2789 = vmatpush1.msra.mxu0 %v2762
        %2790 = vmatprep.subr.mxu0 %v2765
        %2791 = vmatpush1.msra.mxu0 %v2764
        %2792 = vmatprep.subr.mxu0 %v2767
        %2793 = vmatpush1.msra.mxu0 %v2766
        %2794 = vmatprep.subr.mxu0 %v2769
        %2795 = vmatpush1.msra.mxu0 %v2768
        %2796 = vmatprep.subr.mxu0 %v2771
        %2797 = vmatpush1.msra.mxu0 %v2770
        %2798 = vmatprep.subr.mxu0 %v2773
        %2799 = vmatpush1.msra.mxu0 %v2772
        %2800 = vmatprep.subr.mxu0 0.0
        %2801 = vmatpush1.msra.mxu0 0.0
        %2802 = vmatprep.subr.mxu0 0.0
        %2803 = vmatpush1.msra.mxu0 0.0
        %2804 = vmatprep.subr.mxu0 0.0
        %2805 = vmatpush1.msra.mxu0 0.0
        %2806 = vmatprep.subr.mxu0 0.0
        %2807 = vmatpush1.msra.mxu0 0.0
        %2808 = vmatprep.subr.mxu0 0.0
        %2809 = vmatpush1.msra.mxu0 0.0
        %2810 = vmatprep.subr.mxu0 0.0
        %2811 = vmatpush1.msra.mxu0 0.0
        %2812 = vmatprep.subr.mxu0 0.0
        %2813 = vmatpush1.msra.mxu0 0.0
        %2814 = vmatprep.subr.mxu0 0.0
        %2815 = vmatpush1.msra.mxu0 0.0
        %2816 = vmatprep.subr.mxu0 0.0
        %2817 = vmatpush1.msra.mxu0 0.0
        %2818 = vmatprep.subr.mxu0 0.0
        %2819 = vmatpush1.msra.mxu0 0.0
        %2820 = vmatprep.subr.mxu0 0.0
        %2821 = vmatpush1.msra.mxu0 0.0
        %2822 = vmatprep.subr.mxu0 0.0
        %2823 = vmatpush1.msra.mxu0 0.0
        %2824 = vmatprep.subr.mxu0 0.0
        %2825 = vmatpush1.msra.mxu0 0.0
        %2826 = vmatprep.subr.mxu0 0.0
        %2827 = vmatpush1.msra.mxu0 0.0
        %2828 = vmatprep.subr.mxu0 0.0
        %2829 = vmatpush1.msra.mxu0 0.0
        %2830 = vmatprep.subr.mxu0 0.0
        %2831 = vmatpush1.msra.mxu0 0.0
        %2832 = vmatprep.subr.mxu0 0.0
        %2833 = vmatpush1.msra.mxu0 0.0
        %2834 = vmatprep.subr.mxu0 0.0
        %2835 = vmatpush1.msra.mxu0 0.0
        %2836 = vmatprep.subr.mxu0 0.0
        %2837 = vmatpush1.msra.mxu0 0.0
        %2838 = vmatprep.subr.mxu0 0.0
        %2839 = vmatpush1.msra.mxu0 0.0
        %2840 = vmatprep.subr.mxu0 0.0
        %2841 = vmatpush1.msra.mxu0 0.0
        %2842 = vmatprep.subr.mxu0 0.0
        %2843 = vmatpush1.msra.mxu0 0.0
        %2844 = vmatprep.subr.mxu0 0.0
        %2845 = vmatpush1.msra.mxu0 0.0
        %2846 = vmatprep.subr.mxu0 0.0
        %2847 = vmatpush1.msra.mxu0 0.0
        %2848 = vmatprep.mubr.f32.mxu0 0.0
        %2849 = vmatmul.mubr.f32.gmra.mrb[0].mxu0 %v2776
        %v2850 = vpop.f32.mrb[0].mxu0
        %v2851 = vadd.f32 0.0, %v2850
        %v2852 = vpop.f32.mrb[0].mxu0
        %v2853 = vadd.f32 0.0, %v2852
        %2854 = vmatprep.mubr.f32.mxu0 0.0
        %2855 = vmatmul.mubr.f32.gmra.mrb[0].mxu0 %v2779
        %v2856 = vpop.f32.mrb[0].mxu0
        %v2857 = vadd.f32 0.0, %v2856
        %v2858 = vpop.f32.mrb[0].mxu0
        %v2859 = vadd.f32 0.0, %v2858
        %2860 = vmatprep.mubr.f32.mxu0 0.0
        %2861 = vmatmul.mubr.f32.gmra.mrb[0].mxu0 %v2782
        %v2862 = vpop.f32.mrb[0].mxu0
        %v2863 = vadd.f32 0.0, %v2862
        %v2864 = vpop.f32.mrb[0].mxu0
        %v2865 = vadd.f32 0.0, %v2864
        %2866 = vdwg.mxu0
        %v2867 = vlaneseq
        %v2868 = vshrl.u32 %v2867, 7
        %v2869 = vsub.s32 0, %v2868
        %v2870 = vrot.slane %v1781, %v2869
        %v2871 = vlaneseq
        %v2872 = vshrl.u32 %v2871, 7
        %v2873 = vsub.s32 0, %v2872
        %v2874 = vrot.slane %v1783, %v2873
        %v2875 = vmul.f32 %v2851, %v2870
        %v2876 = vmul.f32 %v2853, %v2874
        %v2877 = vlaneseq
        %v2878 = vshrl.u32 %v2877, 7
        %v2879 = vsub.s32 0, %v2878
        %v2880 = vrot.slane %v2265, %v2879
        %v2881 = vlaneseq
        %v2882 = vshrl.u32 %v2881, 7
        %v2883 = vsub.s32 0, %v2882
        %v2884 = vrot.slane %v2267, %v2883
        %v2885 = vmul.f32 %v2851, %v2880
        %v2886 = vmul.f32 %v2853, %v2884
        %v2889 = vrot.slane %v2885, 3
        %v2890 = vrot.slane %v2886, 3
        %v2893 = vadd.f32 %v2875, %v2889
        %v2894 = vadd.f32 %v2876, %v2890
        %v2895 = vlaneseq
        %v2896 = vshrl.u32 %v2895, 7
        %v2897 = vsub.s32 0, %v2896
        %v2898 = vrot.slane %v2749, %v2897
        %v2899 = vlaneseq
        %v2900 = vshrl.u32 %v2899, 7
        %v2901 = vsub.s32 0, %v2900
        %v2902 = vrot.slane %v2751, %v2901
        %v2903 = vmul.f32 %v2851, %v2898
        %v2904 = vmul.f32 %v2853, %v2902
        %v2905 = vmul.f32 %v2857, %v2898
        %v2906 = vmul.f32 %v2859, %v2902
        %vm2911 = vcmask 1041408
        %v2912 = vrot.slane %v2903, 6
        %v2913 = vrot.slane %v2905, 6
        %v2914 = vsel %vm2911, %v2912, %v2913
        %v2915 = vrot.slane %v2904, 6
        %v2916 = vrot.slane %v2906, 6
        %v2917 = vsel %vm2911, %v2915, %v2916
        %v2920 = vadd.f32 %v2893, %v2914
        %v2921 = vadd.f32 %v2894, %v2917
        %v2924 = vrot.slane %v2857, 1
        %v2925 = vrot.slane %v2859, 1
        %v2928 = vadd.f32 %v2920, %v2924
        %v2929 = vadd.f32 %v2921, %v2925
        %v2932 = vcombine.low %v2928, %v2929
        %2934 = vst [vmem:[%s1259] sm:$0x77] %v2932
        %v2935 = vlaneseq
        %v2936 = vshrl.u32 %v2935, 7
        %v2937 = vsub.s32 1, %v2936
        %v2938 = vrot.slane %v1781, %v2937
        %v2939 = vlaneseq
        %v2940 = vshrl.u32 %v2939, 7
        %v2941 = vsub.s32 1, %v2940
        %v2942 = vrot.slane %v1783, %v2941
        %v2943 = vmul.f32 %v2857, %v2938
        %v2944 = vmul.f32 %v2859, %v2942
        %v2945 = vlaneseq
        %v2946 = vshrl.u32 %v2945, 7
        %v2947 = vsub.s32 1, %v2946
        %v2948 = vrot.slane %v2265, %v2947
        %v2949 = vlaneseq
        %v2950 = vshrl.u32 %v2949, 7
        %v2951 = vsub.s32 1, %v2950
        %v2952 = vrot.slane %v2267, %v2951
        %v2953 = vmul.f32 %v2857, %v2948
        %v2954 = vmul.f32 %v2859, %v2952
        %v2955 = vmul.f32 %v2863, %v2948
        %v2956 = vmul.f32 %v2865, %v2952
        %vm2961 = vcmask 1044480
        %v2962 = vrot.slane %v2953, 3
        %v2963 = vrot.slane %v2955, 3
        %v2964 = vsel %vm2961, %v2962, %v2963
        %v2965 = vrot.slane %v2954, 3
        %v2966 = vrot.slane %v2956, 3
        %v2967 = vsel %vm2961, %v2965, %v2966
        %v2970 = vadd.f32 %v2943, %v2964
        %v2971 = vadd.f32 %v2944, %v2967
        %v2972 = vlaneseq
        %v2973 = vshrl.u32 %v2972, 7
        %v2974 = vsub.s32 1, %v2973
        %v2975 = vrot.slane %v2749, %v2974
        %v2976 = vlaneseq
        %v2977 = vshrl.u32 %v2976, 7
        %v2978 = vsub.s32 1, %v2977
        %v2979 = vrot.slane %v2751, %v2978
        %v2980 = vmul.f32 %v2863, %v2975
        %v2981 = vmul.f32 %v2865, %v2979
        %v2984 = vrot.slane %v2980, 6
        %v2985 = vrot.slane %v2981, 6
        %v2988 = vadd.f32 %v2970, %v2984
        %v2989 = vadd.f32 %v2971, %v2985
        %v2992 = vrot.slane %v2863, 1
        %v2993 = vrot.slane %v2865, 1
        %v2996 = vadd.f32 %v2988, %v2992
        %v2997 = vadd.f32 %v2989, %v2993
        %v3000 = vcombine.high %v2996, %v2997
        %s3002 = scalar_lea.vmem %s1259, 8 [#allocation6]
        %3003 = vst [vmem:[%s3002] sm:$0x77] %v3000
        %s3004 = sand.u32 %s198, 1
        %s3005 = sand.u32 %s198, 1
        %s3006 = smul.addr %s3005, 16
        %s3007 = scalar_lea.vmem [#allocation6], %s3006
        // Predicated region
        $region186: #{_lambda_.1} parent=168 // pred_check
          %p3008 = pneg %p208
        $region187: #{_lambda_.1} parent=168 // pred_check_branch
          %3010 = sbr.rel (%p3008) target = $region189
        $region188: #{_lambda_.1} parent=168 // pred_region
          %s3011 = smul.u32 2, %s18
          %s3012 = smul.addr %s3011, 4
          %s3013 = scalar_lea.vmem %s7, %s3012
          // Predicated region
          $region190: #{_lambda_.1} parent=188 // pred_check
            _
          $region191: #{_lambda_.1} parent=188 // pred_check_branch
            %3015 = sbr.rel (0) target = $region193
          $region192: #{_lambda_.1} parent=188 // pred_region
            // Predicated region
            $region194: #{_lambda_.1} parent=192 // pred_check
              _
            $region195: #{_lambda_.1} parent=192 // pred_check_branch
              %3017 = sbr.rel (0) target = $region197
            $region196: #{_lambda_.1} parent=192 // pred_region
              // Predicated region
              $region209: #{_lambda_.1} parent=196 // pred_check
                _
              $region210: #{_lambda_.1} parent=196 // pred_check_branch
                %3034 = sbr.rel (0) target = $region212
              $region211: #{_lambda_.1} parent=196 // pred_region
                loop: start=0, step=1, limit=1
                $region213: #{_lambda_.1} parent=211 // loop_pre_header
                  _
                $region214: #{_lambda_.1} parent=211 // loop_header
                  %s3036 = sphi 0, %s3040
                  %p3037 = scmp.ge.s32.totalorder %s3036, 1
                  %s3041 = sphi %s3007, %s3007
                  %s3042 = sphi %s3013, %s3013
                $region215: #{_lambda_.1} parent=211 // loop_header_branch
                  %3039 = sbr.rel (%p3037) target = $region219
                $region216: #{_lambda_.1} parent=211 // loop_body
                  %v3043 = vld [vmem:[%s3041] sm:$0xff]
                  %3044 = vst [vmem:[%s3042] sm:$0xff] %v3043
                  %v3045 = vld [vmem:[%s3041 + $0x8] sm:$0xff]
                  %3046 = vst [vmem:[%s3042 + $0x10] sm:$0xff] %v3045
                $region217: #{_lambda_.1} parent=211 // loop_footer
                  %s3040 = sadd.s32 1, %s3036
                $region218: #{_lambda_.1} parent=211 // loop_footer_branch
                  %3035 = sbr.rel target = $region214
                $region219: #{_lambda_.1} parent=211 // loop_exit
                  _
              $region212: #{_lambda_.1} parent=196 // pred_fallthru
                _
              // Predicated region
              $region220: #{_lambda_.1} parent=196 // pred_check
                _
              $region221: #{_lambda_.1} parent=196 // pred_check_branch
                %3048 = sbr.rel target = $region223
              $region222: #{_lambda_.1} parent=196 // pred_region
                _
              $region223: #{_lambda_.1} parent=196 // pred_fallthru
                _
            $region197: #{_lambda_.1} parent=192 // pred_fallthru
              _
            // Predicated region
            $region198: #{_lambda_.1} parent=192 // pred_check
              _
            $region199: #{_lambda_.1} parent=192 // pred_check_branch
              %3019 = sbr.rel target = $region201
            $region200: #{_lambda_.1} parent=192 // pred_region
              loop: start=0, step=1, limit=1
              $region202: #{_lambda_.1} parent=200 // loop_pre_header
                _
              $region203: #{_lambda_.1} parent=200 // loop_header
                %s3022 = sphi 0, %s3026
                %p3023 = scmp.ge.s32.totalorder %s3022, 1
                %s3027 = sphi %s3007, %s3007
                %s3028 = sphi %s3013, %s3013
              $region204: #{_lambda_.1} parent=200 // loop_header_branch
                %3025 = sbr.rel (%p3023) target = $region208
              $region205: #{_lambda_.1} parent=200 // loop_body
                %v3029 = vld [vmem:[%s3027] sm:$0xff]
                %3030 = vst [vmem:[%s3028] sm:$0xff] %v3029
                %v3031 = vld [vmem:[%s3027 + $0x8] sm:$0xff]
                %3032 = vst [vmem:[%s3028 + $0x10] sm:$0xff] %v3031
              $region206: #{_lambda_.1} parent=200 // loop_footer
                %s3026 = sadd.s32 1, %s3022
              $region207: #{_lambda_.1} parent=200 // loop_footer_branch
                %3021 = sbr.rel target = $region203
              $region208: #{_lambda_.1} parent=200 // loop_exit
                _
            $region201: #{_lambda_.1} parent=192 // pred_fallthru
              _
          $region193: #{_lambda_.1} parent=188 // pred_fallthru
            _
          %3049 = vnop
        $region189: #{_lambda_.1} parent=168 // pred_fallthru
          _
      $region169: #{_lambda_.1} parent=5 // pred_fallthru
        _
      %p3050 = scmp.le.s32.totalorder 2, %s13
      // Predicated region
      $region224: #{_lambda_.1} parent=5 // pred_check
        %p3051 = pneg %p3050
      $region225: #{_lambda_.1} parent=5 // pred_check_branch
        %3053 = sbr.rel (%p3051) target = $region227
      $region226: #{_lambda_.1} parent=5 // pred_region
        %s3054 = ssub.s32 %s13, 2
        // Predicated region
        $region228: #{_lambda_.1} parent=226 // pred_check
          %p3055 = pneg %p214
        $region229: #{_lambda_.1} parent=226 // pred_check_branch
          %3057 = sbr.rel (%p3055) target = $region231
        $region230: #{_lambda_.1} parent=226 // pred_region
          %s3058 = sand.u32 %s199, 1
          %s3059 = sand.u32 %s199, 1
          %s3060 = smul.addr %s3059, 16
          %s3061 = scalar_lea.vmem [#allocation6], %s3060
        $region231: #{_lambda_.1} parent=226 // pred_fallthru
          _
      $region227: #{_lambda_.1} parent=5 // pred_fallthru
        _
    $region6: #{_lambda_.1} parent=1 // loop_footer
      %s17 = sadd.s32 1, %s13
    $region7: #{_lambda_.1} parent=1 // loop_footer_branch
      %12 = sbr.rel target = $region3
    $region8: #{_lambda_.1} parent=1 // loop_exit
      _

</llo_original>
